<compile_context>
chip_gen: v6e
topology: v6e:2x2x1
jax: 0.10.0
libtpu: 0.0.40
codegen_flags: <defaults>
</compile_context>

<pallas_src>
import math
from functools import partial

import jax
import jax.numpy as jnp
from jax import lax
from jax.experimental import pallas as pl
from jax.experimental.pallas import tpu as pltpu


# ------------------------------ fused kernel --------------------------------
@partial(jax.jit, static_argnames=("out_size",))
def bilstm_forward(x, packed, *, out_size):
    """x: (B, T, I) batch-first, like the PyTorch module. Single kernel launch."""
    x = x.astype(jnp.float32)
    B, T, I = x.shape
    H = packed["whh"].shape[0]
    O = int(out_size)
    H2, H4, H8 = 2 * H, 4 * H, 8 * H

    # Layout plumbing only (no compute hoisted into the wrapper): time-major
    # 2-D rows so each unrolled step slices a contiguous leading-rows block.
    x2d = jnp.transpose(x, (1, 0, 2)).reshape(T * B, I)   # row = t*B + b

    def kernel(x_ref, wih_ref, whh_ref, misc_ref, o_ref):
        # misc layout (rows): [0:2H) fc_w(2H,O) | 2H fc_b | 2H+1 ln_w | 2H+2 ln_b
        #                     | 2H+3 fused gate bias (8H, i/f/o pre-scaled by 0.5)
        bias = misc_ref[H2 + 3:H2 + 4, 0:H8]                       # (1, 8H)

        # Hoisted, fused fwd+bwd input projection: one MXU pass over all steps.
        gx = jnp.dot(x_ref[...], wih_ref[...],
                     preferred_element_type=jnp.float32,
                     precision=lax.Precision.HIGHEST) + bias        # (T*B, 8H)

        whh = whh_ref[...]                                          # (H, 4H)

        def gate_math(z, c_prev):
            # z: (B, 4H) pre-activation, i/f/o columns already scaled by 0.5
            # (folded into weights/bias).  sigmoid(a) = 0.5*(1 + tanh(a/2)):
            # ONE full-width tanh per step instead of 4 sliced sigmoids + tanh.
            t = jnp.tanh(z)
            i_g = 0.5 * (t[:, 0 * H:1 * H] + 1.0)
            g_g = t[:, 2 * H:3 * H]
            o_g = 0.5 * (t[:, 3 * H:4 * H] + 1.0)
            if c_prev is None:                                      # zero state
                c_new = i_g * g_g
            else:
                f_g = 0.5 * (t[:, 1 * H:2 * H] + 1.0)
                c_new = f_g * c_prev + i_g * g_g
            h_new = o_g * jnp.tanh(c_new)
            return h_new, c_new

        # ---- forward direction: fully unrolled, only h/c stay live ----------
        h, c = gate_math(gx[0:B, 0:H4], None)                       # t = 0
        for t in range(1, T):
            z = gx[t * B:(t + 1) * B, 0:H4] + jnp.dot(
                h, whh, preferred_element_type=jnp.float32,
                precision=lax.Precision.HIGHEST)
            h, c = gate_math(z, c)
        h_f = h                                                     # (B, H)

        # ---- backward direction at t = T-1: single zero-state step ----------
        h_b, _ = gate_math(gx[(T - 1) * B:T * B, H4:H8], None)      # (B, H)

        # ---- head: LayerNorm + Linear + Sigmoid ------------------------------
        # TODO(synk): nn.Dropout is identity at inference time; not applied.
        hcat = jnp.concatenate([h_f, h_b], axis=-1)                 # (B, 2H)
        mean = jnp.mean(hcat, axis=-1, keepdims=True)
        var = jnp.mean((hcat - mean) ** 2, axis=-1, keepdims=True)
        y = (hcat - mean) * lax.rsqrt(var + 1e-5)
        y = y * misc_ref[H2 + 1:H2 + 2, 0:H2] + misc_ref[H2 + 2:H2 + 3, 0:H2]
        logits = jnp.dot(y, misc_ref[0:H2, 0:O],
                         preferred_element_type=jnp.float32,
                         precision=lax.Precision.HIGHEST) + misc_ref[H2:H2 + 1, 0:O]
        o_ref[...] = jax.nn.sigmoid(logits)

    vmem = pl.BlockSpec(memory_space=pltpu.MemorySpace.VMEM)
    return pl.pallas_call(
        kernel,
        out_shape=jax.ShapeDtypeStruct((B, O), jnp.float32),
        in_specs=[vmem, vmem, vmem, vmem],
        out_specs=vmem,
    )(x2d, packed["wih"], packed["whh"], packed["misc"])


# ----------------------------- param init -----------------------------------
def init_params(key, input_size, hidden_size, output_size):
    """Torch-equivalent params in reference-friendly layout (x @ W convention)."""
    H = hidden_size
    ks = jax.random.split(key, 9)
    k = 1.0 / math.sqrt(H)

    def u(rk, shape, bound):
        return jax.random.uniform(rk, shape, jnp.float32, -bound, bound)

    wih_f = u(ks[0], (4 * H, input_size), k)
    whh_f = u(ks[1], (4 * H, H), k)
    bih_f = u(ks[2], (4 * H,), k)
    bhh_f = u(ks[3], (4 * H,), k)
    wih_b = u(ks[4], (4 * H, input_size), k)
    whh_b = u(ks[5], (4 * H, H), k)          # used only by the reference
    bih_b = u(ks[6], (4 * H,), k)
    bhh_b = u(ks[7], (4 * H,), k)
    xav = math.sqrt(6.0 / (2 * H + output_size))
    fc_w = u(ks[8], (output_size, 2 * H), xav)          # xavier_uniform_
    fc_b = jnp.zeros((output_size,), jnp.float32)       # zeros_
    ln_w = jnp.ones((2 * H,), jnp.float32)
    ln_b = jnp.zeros((2 * H,), jnp.float32)

    return {
        "wih_f": wih_f.T, "whh_f": whh_f.T, "b_f": (bih_f + bhh_f)[None, :],
        "wih_b": wih_b.T, "whh_b": whh_b.T, "b_b": (bih_b + bhh_b)[None, :],
        "ln_w": ln_w[None, :], "ln_b": ln_b[None, :],
        "fc_w": fc_w.T, "fc_b": fc_b[None, :],
    }


def pack_params(p):
    """Pack kernel operands: fused fwd+bwd W_ih/bias, 0.5-scaled i/f/o gate
    columns (for the sigmoid-via-tanh trick; exact power-of-two scaling), and
    one lane-dense 'misc' buffer holding all small head params."""
    I, H4 = p["wih_f"].shape
    H = H4 // 4
    H2, H8 = 2 * H, 8 * H
    O = p["fc_w"].shape[1]

    def scale_ifo(a):
        col = jnp.arange(a.shape[-1])
        is_g = (col % H4) // H == 2
        return a * jnp.where(is_g, 1.0, 0.5).astype(a.dtype)

    wih = scale_ifo(jnp.concatenate([p["wih_f"], p["wih_b"]], axis=1))   # (I, 8H)
    whh = scale_ifo(p["whh_f"])                                          # (H, 4H)
    bias = scale_ifo(jnp.concatenate([p["b_f"], p["b_b"]], axis=1))      # (1, 8H)

    W = max(H8, O)
    misc = jnp.zeros((H2 + 4, W), jnp.float32)
    misc = misc.at[0:H2, 0:O].set(p["fc_w"])
    misc = misc.at[H2, 0:O].set(p["fc_b"][0])
    misc = misc.at[H2 + 1, 0:H2].set(p["ln_w"][0])
    misc = misc.at[H2 + 2, 0:H2].set(p["ln_b"][0])
    misc = misc.at[H2 + 3, 0:H8].set(bias[0])
    return {"wih": wih, "whh": whh, "misc": misc}


# --------------------------- pure-JAX reference ------------------------------
def _ref_lstm(xt, wih_t, whh_t, b):
    T, B, _ = xt.shape
    H = whh_t.shape[0]

    def step(carry, x_t):
        h, c = carry
        g = (jnp.dot(x_t, wih_t, precision=lax.Precision.HIGHEST)
             + jnp.dot(h, whh_t, precision=lax.Precision.HIGHEST) + b)
        i = jax.nn.sigmoid(g[:, :H]); f = jax.nn.sigmoid(g[:, H:2 * H])
        gg = jnp.tanh(g[:, 2 * H:3 * H]); o = jax.nn.sigmoid(g[:, 3 * H:])
        c = f * c + i * gg
        h = o * jnp.tanh(c)
        return (h, c), h

    init = (jnp.zeros((B, H), jnp.float32), jnp.zeros((B, H), jnp.float32))
    _, hs = jax.lax.scan(step, init, xt)
    return hs


def _ref_forward(x, p):
    # Full bidirectional pass (like nn.LSTM), then output[:, -1, :] -> LN -> fc.
    xt = jnp.transpose(x, (1, 0, 2))
    hs_f = _ref_lstm(xt, p["wih_f"], p["whh_f"], p["b_f"])
    hs_b = _ref_lstm(xt[::-1], p["wih_b"], p["whh_b"], p["b_b"])
    h = jnp.concatenate([hs_f[-1], hs_b[0]], axis=-1)
    mean = jnp.mean(h, -1, keepdims=True)
    var = jnp.mean((h - mean) ** 2, -1, keepdims=True)
    y = (h - mean) / jnp.sqrt(var + 1e-5) * p["ln_w"] + p["ln_b"]
    logits = jnp.dot(y, p["fc_w"], precision=lax.Precision.HIGHEST) + p["fc_b"]
    return jax.nn.sigmoid(logits)


if __name__ == "__main__":
    B, T, I, H, O = 2, 8, 16, 32, 8
    key = jax.random.PRNGKey(0)
    kx, kp = jax.random.split(key)
    x = jax.random.normal(kx, (B, T, I), jnp.float32)

    params = init_params(kp, I, H, O)
    packed = pack_params(params)

    out = bilstm_forward(x, packed, out_size=O)
    out = jax.block_until_ready(out)

    ref = _ref_forward(x, params)
    assert out.shape == (B, O), out.shape
    assert bool(jnp.all(jnp.isfinite(out)))
    assert bool(jnp.allclose(out, ref, rtol=1e-3, atol=5e-4)), (out, ref)
    print("KERNEL_OK")
</pallas_src>

<mosaic_0001>
module attributes {stable_mosaic.version = 11 : i64} {
  func.func @kernel(%arg0: memref<16x16xf32, #tpu.memory_space<vmem>>, %arg1: memref<16x256xf32, #tpu.memory_space<vmem>>, %arg2: memref<32x128xf32, #tpu.memory_space<vmem>>, %arg3: memref<68x256xf32, #tpu.memory_space<vmem>>, %arg4: memref<2x8xf32, #tpu.memory_space<vmem>>) attributes {dimension_semantics = [], scalar_prefetch = 0 : i64, scratch_operands = 0 : i64, tpu.core_type = #tpu.core_type<tc>} {
    %c67 = arith.constant 67 : index
    %c0 = arith.constant 0 : index
    %0 = vector.load %arg3[%c67, %c0] : memref<68x256xf32, #tpu.memory_space<vmem>>, vector<1x256xf32>
    %c0_0 = arith.constant 0 : index
    %c0_1 = arith.constant 0 : index
    %1 = vector.load %arg0[%c0_0, %c0_1] : memref<16x16xf32, #tpu.memory_space<vmem>>, vector<16x16xf32>
    %c0_2 = arith.constant 0 : index
    %c0_3 = arith.constant 0 : index
    %2 = vector.load %arg1[%c0_2, %c0_3] : memref<16x256xf32, #tpu.memory_space<vmem>>, vector<16x256xf32>
    %cst = arith.constant dense<0.000000e+00> : vector<16x256xf32>
    %3 = tpu.matmul %1, %2, %cst {dimension_numbers = #tpu.dot_dimension_numbers<[1], [0], [0], [1], [0, 0, 1, 1], [], []>, precision = #tpu.contract_precision<fp32>} : vector<16x16xf32>, vector<16x256xf32>, vector<16x256xf32> -> vector<16x256xf32>
    %4 = vector.broadcast %0 : vector<1x256xf32> to vector<16x256xf32>
    %5 = arith.addf %3, %4 : vector<16x256xf32>
    %c0_4 = arith.constant 0 : index
    %c0_5 = arith.constant 0 : index
    %6 = vector.load %arg2[%c0_4, %c0_5] : memref<32x128xf32, #tpu.memory_space<vmem>>, vector<32x128xf32>
    %7 = vector.extract_strided_slice %5 {offsets = [0, 0], sizes = [2, 128], strides = [1, 1]} : vector<16x256xf32> to vector<2x128xf32>
    %8 = math.tanh %7 : vector<2x128xf32>
    %9 = vector.extract_strided_slice %8 {offsets = [0, 0], sizes = [2, 32], strides = [1, 1]} : vector<2x128xf32> to vector<2x32xf32>
    %cst_6 = arith.constant 1.000000e+00 : f32
    %10 = vector.broadcast %cst_6 : f32 to vector<2x32xf32>
    %11 = arith.addf %9, %10 : vector<2x32xf32>
    %cst_7 = arith.constant 5.000000e-01 : f32
    %12 = vector.broadcast %cst_7 : f32 to vector<2x32xf32>
    %13 = arith.mulf %12, %11 : vector<2x32xf32>
    %14 = vector.extract_strided_slice %8 {offsets = [0, 64], sizes = [2, 32], strides = [1, 1]} : vector<2x128xf32> to vector<2x32xf32>
    %15 = vector.extract_strided_slice %8 {offsets = [0, 96], sizes = [2, 32], strides = [1, 1]} : vector<2x128xf32> to vector<2x32xf32>
    %cst_8 = arith.constant 1.000000e+00 : f32
    %16 = vector.broadcast %cst_8 : f32 to vector<2x32xf32>
    %17 = arith.addf %15, %16 : vector<2x32xf32>
    %cst_9 = arith.constant 5.000000e-01 : f32
    %18 = vector.broadcast %cst_9 : f32 to vector<2x32xf32>
    %19 = arith.mulf %18, %17 : vector<2x32xf32>
    %20 = arith.mulf %13, %14 : vector<2x32xf32>
    %21 = math.tanh %20 : vector<2x32xf32>
    %22 = arith.mulf %19, %21 : vector<2x32xf32>
    %23 = vector.extract_strided_slice %5 {offsets = [2, 0], sizes = [2, 128], strides = [1, 1]} : vector<16x256xf32> to vector<2x128xf32>
    %cst_10 = arith.constant dense<0.000000e+00> : vector<2x128xf32>
    %24 = tpu.matmul %22, %6, %cst_10 {dimension_numbers = #tpu.dot_dimension_numbers<[1], [0], [0], [1], [0, 0, 1, 1], [], []>, precision = #tpu.contract_precision<fp32>} : vector<2x32xf32>, vector<32x128xf32>, vector<2x128xf32> -> vector<2x128xf32>
    %25 = arith.addf %23, %24 : vector<2x128xf32>
    %26 = math.tanh %25 : vector<2x128xf32>
    %27 = vector.extract_strided_slice %26 {offsets = [0, 0], sizes = [2, 32], strides = [1, 1]} : vector<2x128xf32> to vector<2x32xf32>
    %cst_11 = arith.constant 1.000000e+00 : f32
    %28 = vector.broadcast %cst_11 : f32 to vector<2x32xf32>
    %29 = arith.addf %27, %28 : vector<2x32xf32>
    %cst_12 = arith.constant 5.000000e-01 : f32
    %30 = vector.broadcast %cst_12 : f32 to vector<2x32xf32>
    %31 = arith.mulf %30, %29 : vector<2x32xf32>
    %32 = vector.extract_strided_slice %26 {offsets = [0, 64], sizes = [2, 32], strides = [1, 1]} : vector<2x128xf32> to vector<2x32xf32>
    %33 = vector.extract_strided_slice %26 {offsets = [0, 96], sizes = [2, 32], strides = [1, 1]} : vector<2x128xf32> to vector<2x32xf32>
    %cst_13 = arith.constant 1.000000e+00 : f32
    %34 = vector.broadcast %cst_13 : f32 to vector<2x32xf32>
    %35 = arith.addf %33, %34 : vector<2x32xf32>
    %cst_14 = arith.constant 5.000000e-01 : f32
    %36 = vector.broadcast %cst_14 : f32 to vector<2x32xf32>
    %37 = arith.mulf %36, %35 : vector<2x32xf32>
    %38 = vector.extract_strided_slice %26 {offsets = [0, 32], sizes = [2, 32], strides = [1, 1]} : vector<2x128xf32> to vector<2x32xf32>
    %cst_15 = arith.constant 1.000000e+00 : f32
    %39 = vector.broadcast %cst_15 : f32 to vector<2x32xf32>
    %40 = arith.addf %38, %39 : vector<2x32xf32>
    %cst_16 = arith.constant 5.000000e-01 : f32
    %41 = vector.broadcast %cst_16 : f32 to vector<2x32xf32>
    %42 = arith.mulf %41, %40 : vector<2x32xf32>
    %43 = arith.mulf %42, %20 : vector<2x32xf32>
    %44 = arith.mulf %31, %32 : vector<2x32xf32>
    %45 = arith.addf %43, %44 : vector<2x32xf32>
    %46 = math.tanh %45 : vector<2x32xf32>
    %47 = arith.mulf %37, %46 : vector<2x32xf32>
    %48 = vector.extract_strided_slice %5 {offsets = [4, 0], sizes = [2, 128], strides = [1, 1]} : vector<16x256xf32> to vector<2x128xf32>
    %cst_17 = arith.constant dense<0.000000e+00> : vector<2x128xf32>
    %49 = tpu.matmul %47, %6, %cst_17 {dimension_numbers = #tpu.dot_dimension_numbers<[1], [0], [0], [1], [0, 0, 1, 1], [], []>, precision = #tpu.contract_precision<fp32>} : vector<2x32xf32>, vector<32x128xf32>, vector<2x128xf32> -> vector<2x128xf32>
    %50 = arith.addf %48, %49 : vector<2x128xf32>
    %51 = math.tanh %50 : vector<2x128xf32>
    %52 = vector.extract_strided_slice %51 {offsets = [0, 0], sizes = [2, 32], strides = [1, 1]} : vector<2x128xf32> to vector<2x32xf32>
    %cst_18 = arith.constant 1.000000e+00 : f32
    %53 = vector.broadcast %cst_18 : f32 to vector<2x32xf32>
    %54 = arith.addf %52, %53 : vector<2x32xf32>
    %cst_19 = arith.constant 5.000000e-01 : f32
    %55 = vector.broadcast %cst_19 : f32 to vector<2x32xf32>
    %56 = arith.mulf %55, %54 : vector<2x32xf32>
    %57 = vector.extract_strided_slice %51 {offsets = [0, 64], sizes = [2, 32], strides = [1, 1]} : vector<2x128xf32> to vector<2x32xf32>
    %58 = vector.extract_strided_slice %51 {offsets = [0, 96], sizes = [2, 32], strides = [1, 1]} : vector<2x128xf32> to vector<2x32xf32>
    %cst_20 = arith.constant 1.000000e+00 : f32
    %59 = vector.broadcast %cst_20 : f32 to vector<2x32xf32>
    %60 = arith.addf %58, %59 : vector<2x32xf32>
    %cst_21 = arith.constant 5.000000e-01 : f32
    %61 = vector.broadcast %cst_21 : f32 to vector<2x32xf32>
    %62 = arith.mulf %61, %60 : vector<2x32xf32>
    %63 = vector.extract_strided_slice %51 {offsets = [0, 32], sizes = [2, 32], strides = [1, 1]} : vector<2x128xf32> to vector<2x32xf32>
    %cst_22 = arith.constant 1.000000e+00 : f32
    %64 = vector.broadcast %cst_22 : f32 to vector<2x32xf32>
    %65 = arith.addf %63, %64 : vector<2x32xf32>
    %cst_23 = arith.constant 5.000000e-01 : f32
    %66 = vector.broadcast %cst_23 : f32 to vector<2x32xf32>
    %67 = arith.mulf %66, %65 : vector<2x32xf32>
    %68 = arith.mulf %67, %45 : vector<2x32xf32>
    %69 = arith.mulf %56, %57 : vector<2x32xf32>
    %70 = arith.addf %68, %69 : vector<2x32xf32>
    %71 = math.tanh %70 : vector<2x32xf32>
    %72 = arith.mulf %62, %71 : vector<2x32xf32>
    %73 = vector.extract_strided_slice %5 {offsets = [6, 0], sizes = [2, 128], strides = [1, 1]} : vector<16x256xf32> to vector<2x128xf32>
    %cst_24 = arith.constant dense<0.000000e+00> : vector<2x128xf32>
    %74 = tpu.matmul %72, %6, %cst_24 {dimension_numbers = #tpu.dot_dimension_numbers<[1], [0], [0], [1], [0, 0, 1, 1], [], []>, precision = #tpu.contract_precision<fp32>} : vector<2x32xf32>, vector<32x128xf32>, vector<2x128xf32> -> vector<2x128xf32>
    %75 = arith.addf %73, %74 : vector<2x128xf32>
    %76 = math.tanh %75 : vector<2x128xf32>
    %77 = vector.extract_strided_slice %76 {offsets = [0, 0], sizes = [2, 32], strides = [1, 1]} : vector<2x128xf32> to vector<2x32xf32>
    %cst_25 = arith.constant 1.000000e+00 : f32
    %78 = vector.broadcast %cst_25 : f32 to vector<2x32xf32>
    %79 = arith.addf %77, %78 : vector<2x32xf32>
    %cst_26 = arith.constant 5.000000e-01 : f32
    %80 = vector.broadcast %cst_26 : f32 to vector<2x32xf32>
    %81 = arith.mulf %80, %79 : vector<2x32xf32>
    %82 = vector.extract_strided_slice %76 {offsets = [0, 64], sizes = [2, 32], strides = [1, 1]} : vector<2x128xf32> to vector<2x32xf32>
    %83 = vector.extract_strided_slice %76 {offsets = [0, 96], sizes = [2, 32], strides = [1, 1]} : vector<2x128xf32> to vector<2x32xf32>
    %cst_27 = arith.constant 1.000000e+00 : f32
    %84 = vector.broadcast %cst_27 : f32 to vector<2x32xf32>
    %85 = arith.addf %83, %84 : vector<2x32xf32>
    %cst_28 = arith.constant 5.000000e-01 : f32
    %86 = vector.broadcast %cst_28 : f32 to vector<2x32xf32>
    %87 = arith.mulf %86, %85 : vector<2x32xf32>
    %88 = vector.extract_strided_slice %76 {offsets = [0, 32], sizes = [2, 32], strides = [1, 1]} : vector<2x128xf32> to vector<2x32xf32>
    %cst_29 = arith.constant 1.000000e+00 : f32
    %89 = vector.broadcast %cst_29 : f32 to vector<2x32xf32>
    %90 = arith.addf %88, %89 : vector<2x32xf32>
    %cst_30 = arith.constant 5.000000e-01 : f32
    %91 = vector.broadcast %cst_30 : f32 to vector<2x32xf32>
    %92 = arith.mulf %91, %90 : vector<2x32xf32>
    %93 = arith.mulf %92, %70 : vector<2x32xf32>
    %94 = arith.mulf %81, %82 : vector<2x32xf32>
    %95 = arith.addf %93, %94 : vector<2x32xf32>
    %96 = math.tanh %95 : vector<2x32xf32>
    %97 = arith.mulf %87, %96 : vector<2x32xf32>
    %98 = vector.extract_strided_slice %5 {offsets = [8, 0], sizes = [2, 128], strides = [1, 1]} : vector<16x256xf32> to vector<2x128xf32>
    %cst_31 = arith.constant dense<0.000000e+00> : vector<2x128xf32>
    %99 = tpu.matmul %97, %6, %cst_31 {dimension_numbers = #tpu.dot_dimension_numbers<[1], [0], [0], [1], [0, 0, 1, 1], [], []>, precision = #tpu.contract_precision<fp32>} : vector<2x32xf32>, vector<32x128xf32>, vector<2x128xf32> -> vector<2x128xf32>
    %100 = arith.addf %98, %99 : vector<2x128xf32>
    %101 = math.tanh %100 : vector<2x128xf32>
    %102 = vector.extract_strided_slice %101 {offsets = [0, 0], sizes = [2, 32], strides = [1, 1]} : vector<2x128xf32> to vector<2x32xf32>
    %cst_32 = arith.constant 1.000000e+00 : f32
    %103 = vector.broadcast %cst_32 : f32 to vector<2x32xf32>
    %104 = arith.addf %102, %103 : vector<2x32xf32>
    %cst_33 = arith.constant 5.000000e-01 : f32
    %105 = vector.broadcast %cst_33 : f32 to vector<2x32xf32>
    %106 = arith.mulf %105, %104 : vector<2x32xf32>
    %107 = vector.extract_strided_slice %101 {offsets = [0, 64], sizes = [2, 32], strides = [1, 1]} : vector<2x128xf32> to vector<2x32xf32>
    %108 = vector.extract_strided_slice %101 {offsets = [0, 96], sizes = [2, 32], strides = [1, 1]} : vector<2x128xf32> to vector<2x32xf32>
    %cst_34 = arith.constant 1.000000e+00 : f32
    %109 = vector.broadcast %cst_34 : f32 to vector<2x32xf32>
    %110 = arith.addf %108, %109 : vector<2x32xf32>
    %cst_35 = arith.constant 5.000000e-01 : f32
    %111 = vector.broadcast %cst_35 : f32 to vector<2x32xf32>
    %112 = arith.mulf %111, %110 : vector<2x32xf32>
    %113 = vector.extract_strided_slice %101 {offsets = [0, 32], sizes = [2, 32], strides = [1, 1]} : vector<2x128xf32> to vector<2x32xf32>
    %cst_36 = arith.constant 1.000000e+00 : f32
    %114 = vector.broadcast %cst_36 : f32 to vector<2x32xf32>
    %115 = arith.addf %113, %114 : vector<2x32xf32>
    %cst_37 = arith.constant 5.000000e-01 : f32
    %116 = vector.broadcast %cst_37 : f32 to vector<2x32xf32>
    %117 = arith.mulf %116, %115 : vector<2x32xf32>
    %118 = arith.mulf %117, %95 : vector<2x32xf32>
    %119 = arith.mulf %106, %107 : vector<2x32xf32>
    %120 = arith.addf %118, %119 : vector<2x32xf32>
    %121 = math.tanh %120 : vector<2x32xf32>
    %122 = arith.mulf %112, %121 : vector<2x32xf32>
    %123 = vector.extract_strided_slice %5 {offsets = [10, 0], sizes = [2, 128], strides = [1, 1]} : vector<16x256xf32> to vector<2x128xf32>
    %cst_38 = arith.constant dense<0.000000e+00> : vector<2x128xf32>
    %124 = tpu.matmul %122, %6, %cst_38 {dimension_numbers = #tpu.dot_dimension_numbers<[1], [0], [0], [1], [0, 0, 1, 1], [], []>, precision = #tpu.contract_precision<fp32>} : vector<2x32xf32>, vector<32x128xf32>, vector<2x128xf32> -> vector<2x128xf32>
    %125 = arith.addf %123, %124 : vector<2x128xf32>
    %126 = math.tanh %125 : vector<2x128xf32>
    %127 = vector.extract_strided_slice %126 {offsets = [0, 0], sizes = [2, 32], strides = [1, 1]} : vector<2x128xf32> to vector<2x32xf32>
    %cst_39 = arith.constant 1.000000e+00 : f32
    %128 = vector.broadcast %cst_39 : f32 to vector<2x32xf32>
    %129 = arith.addf %127, %128 : vector<2x32xf32>
    %cst_40 = arith.constant 5.000000e-01 : f32
    %130 = vector.broadcast %cst_40 : f32 to vector<2x32xf32>
    %131 = arith.mulf %130, %129 : vector<2x32xf32>
    %132 = vector.extract_strided_slice %126 {offsets = [0, 64], sizes = [2, 32], strides = [1, 1]} : vector<2x128xf32> to vector<2x32xf32>
    %133 = vector.extract_strided_slice %126 {offsets = [0, 96], sizes = [2, 32], strides = [1, 1]} : vector<2x128xf32> to vector<2x32xf32>
    %cst_41 = arith.constant 1.000000e+00 : f32
    %134 = vector.broadcast %cst_41 : f32 to vector<2x32xf32>
    %135 = arith.addf %133, %134 : vector<2x32xf32>
    %cst_42 = arith.constant 5.000000e-01 : f32
    %136 = vector.broadcast %cst_42 : f32 to vector<2x32xf32>
    %137 = arith.mulf %136, %135 : vector<2x32xf32>
    %138 = vector.extract_strided_slice %126 {offsets = [0, 32], sizes = [2, 32], strides = [1, 1]} : vector<2x128xf32> to vector<2x32xf32>
    %cst_43 = arith.constant 1.000000e+00 : f32
    %139 = vector.broadcast %cst_43 : f32 to vector<2x32xf32>
    %140 = arith.addf %138, %139 : vector<2x32xf32>
    %cst_44 = arith.constant 5.000000e-01 : f32
    %141 = vector.broadcast %cst_44 : f32 to vector<2x32xf32>
    %142 = arith.mulf %141, %140 : vector<2x32xf32>
    %143 = arith.mulf %142, %120 : vector<2x32xf32>
    %144 = arith.mulf %131, %132 : vector<2x32xf32>
    %145 = arith.addf %143, %144 : vector<2x32xf32>
    %146 = math.tanh %145 : vector<2x32xf32>
    %147 = arith.mulf %137, %146 : vector<2x32xf32>
    %148 = vector.extract_strided_slice %5 {offsets = [12, 0], sizes = [2, 128], strides = [1, 1]} : vector<16x256xf32> to vector<2x128xf32>
    %cst_45 = arith.constant dense<0.000000e+00> : vector<2x128xf32>
    %149 = tpu.matmul %147, %6, %cst_45 {dimension_numbers = #tpu.dot_dimension_numbers<[1], [0], [0], [1], [0, 0, 1, 1], [], []>, precision = #tpu.contract_precision<fp32>} : vector<2x32xf32>, vector<32x128xf32>, vector<2x128xf32> -> vector<2x128xf32>
    %150 = arith.addf %148, %149 : vector<2x128xf32>
    %151 = math.tanh %150 : vector<2x128xf32>
    %152 = vector.extract_strided_slice %151 {offsets = [0, 0], sizes = [2, 32], strides = [1, 1]} : vector<2x128xf32> to vector<2x32xf32>
    %cst_46 = arith.constant 1.000000e+00 : f32
    %153 = vector.broadcast %cst_46 : f32 to vector<2x32xf32>
    %154 = arith.addf %152, %153 : vector<2x32xf32>
    %cst_47 = arith.constant 5.000000e-01 : f32
    %155 = vector.broadcast %cst_47 : f32 to vector<2x32xf32>
    %156 = arith.mulf %155, %154 : vector<2x32xf32>
    %157 = vector.extract_strided_slice %151 {offsets = [0, 64], sizes = [2, 32], strides = [1, 1]} : vector<2x128xf32> to vector<2x32xf32>
    %158 = vector.extract_strided_slice %151 {offsets = [0, 96], sizes = [2, 32], strides = [1, 1]} : vector<2x128xf32> to vector<2x32xf32>
    %cst_48 = arith.constant 1.000000e+00 : f32
    %159 = vector.broadcast %cst_48 : f32 to vector<2x32xf32>
    %160 = arith.addf %158, %159 : vector<2x32xf32>
    %cst_49 = arith.constant 5.000000e-01 : f32
    %161 = vector.broadcast %cst_49 : f32 to vector<2x32xf32>
    %162 = arith.mulf %161, %160 : vector<2x32xf32>
    %163 = vector.extract_strided_slice %151 {offsets = [0, 32], sizes = [2, 32], strides = [1, 1]} : vector<2x128xf32> to vector<2x32xf32>
    %cst_50 = arith.constant 1.000000e+00 : f32
    %164 = vector.broadcast %cst_50 : f32 to vector<2x32xf32>
    %165 = arith.addf %163, %164 : vector<2x32xf32>
    %cst_51 = arith.constant 5.000000e-01 : f32
    %166 = vector.broadcast %cst_51 : f32 to vector<2x32xf32>
    %167 = arith.mulf %166, %165 : vector<2x32xf32>
    %168 = arith.mulf %167, %145 : vector<2x32xf32>
    %169 = arith.mulf %156, %157 : vector<2x32xf32>
    %170 = arith.addf %168, %169 : vector<2x32xf32>
    %171 = math.tanh %170 : vector<2x32xf32>
    %172 = arith.mulf %162, %171 : vector<2x32xf32>
    %173 = vector.extract_strided_slice %5 {offsets = [14, 0], sizes = [2, 128], strides = [1, 1]} : vector<16x256xf32> to vector<2x128xf32>
    %cst_52 = arith.constant dense<0.000000e+00> : vector<2x128xf32>
    %174 = tpu.matmul %172, %6, %cst_52 {dimension_numbers = #tpu.dot_dimension_numbers<[1], [0], [0], [1], [0, 0, 1, 1], [], []>, precision = #tpu.contract_precision<fp32>} : vector<2x32xf32>, vector<32x128xf32>, vector<2x128xf32> -> vector<2x128xf32>
    %175 = arith.addf %173, %174 : vector<2x128xf32>
    %176 = math.tanh %175 : vector<2x128xf32>
    %177 = vector.extract_strided_slice %176 {offsets = [0, 0], sizes = [2, 32], strides = [1, 1]} : vector<2x128xf32> to vector<2x32xf32>
    %cst_53 = arith.constant 1.000000e+00 : f32
    %178 = vector.broadcast %cst_53 : f32 to vector<2x32xf32>
    %179 = arith.addf %177, %178 : vector<2x32xf32>
    %cst_54 = arith.constant 5.000000e-01 : f32
    %180 = vector.broadcast %cst_54 : f32 to vector<2x32xf32>
    %181 = arith.mulf %180, %179 : vector<2x32xf32>
    %182 = vector.extract_strided_slice %176 {offsets = [0, 64], sizes = [2, 32], strides = [1, 1]} : vector<2x128xf32> to vector<2x32xf32>
    %183 = vector.extract_strided_slice %176 {offsets = [0, 96], sizes = [2, 32], strides = [1, 1]} : vector<2x128xf32> to vector<2x32xf32>
    %cst_55 = arith.constant 1.000000e+00 : f32
    %184 = vector.broadcast %cst_55 : f32 to vector<2x32xf32>
    %185 = arith.addf %183, %184 : vector<2x32xf32>
    %cst_56 = arith.constant 5.000000e-01 : f32
    %186 = vector.broadcast %cst_56 : f32 to vector<2x32xf32>
    %187 = arith.mulf %186, %185 : vector<2x32xf32>
    %188 = vector.extract_strided_slice %176 {offsets = [0, 32], sizes = [2, 32], strides = [1, 1]} : vector<2x128xf32> to vector<2x32xf32>
    %cst_57 = arith.constant 1.000000e+00 : f32
    %189 = vector.broadcast %cst_57 : f32 to vector<2x32xf32>
    %190 = arith.addf %188, %189 : vector<2x32xf32>
    %cst_58 = arith.constant 5.000000e-01 : f32
    %191 = vector.broadcast %cst_58 : f32 to vector<2x32xf32>
    %192 = arith.mulf %191, %190 : vector<2x32xf32>
    %193 = arith.mulf %192, %170 : vector<2x32xf32>
    %194 = arith.mulf %181, %182 : vector<2x32xf32>
    %195 = arith.addf %193, %194 : vector<2x32xf32>
    %196 = math.tanh %195 : vector<2x32xf32>
    %197 = arith.mulf %187, %196 : vector<2x32xf32>
    %198 = vector.extract_strided_slice %5 {offsets = [14, 128], sizes = [2, 128], strides = [1, 1]} : vector<16x256xf32> to vector<2x128xf32>
    %199 = math.tanh %198 : vector<2x128xf32>
    %200 = vector.extract_strided_slice %199 {offsets = [0, 0], sizes = [2, 32], strides = [1, 1]} : vector<2x128xf32> to vector<2x32xf32>
    %cst_59 = arith.constant 1.000000e+00 : f32
    %201 = vector.broadcast %cst_59 : f32 to vector<2x32xf32>
    %202 = arith.addf %200, %201 : vector<2x32xf32>
    %cst_60 = arith.constant 5.000000e-01 : f32
    %203 = vector.broadcast %cst_60 : f32 to vector<2x32xf32>
    %204 = arith.mulf %203, %202 : vector<2x32xf32>
    %205 = vector.extract_strided_slice %199 {offsets = [0, 64], sizes = [2, 32], strides = [1, 1]} : vector<2x128xf32> to vector<2x32xf32>
    %206 = vector.extract_strided_slice %199 {offsets = [0, 96], sizes = [2, 32], strides = [1, 1]} : vector<2x128xf32> to vector<2x32xf32>
    %cst_61 = arith.constant 1.000000e+00 : f32
    %207 = vector.broadcast %cst_61 : f32 to vector<2x32xf32>
    %208 = arith.addf %206, %207 : vector<2x32xf32>
    %cst_62 = arith.constant 5.000000e-01 : f32
    %209 = vector.broadcast %cst_62 : f32 to vector<2x32xf32>
    %210 = arith.mulf %209, %208 : vector<2x32xf32>
    %211 = arith.mulf %204, %205 : vector<2x32xf32>
    %212 = math.tanh %211 : vector<2x32xf32>
    %213 = arith.mulf %210, %212 : vector<2x32xf32>
    %214 = tpu.concatenate %197, %213 in 1 : vector<2x32xf32>, vector<2x32xf32> -> vector<2x64xf32>
    %cst_63 = arith.constant dense<0.000000e+00> : vector<2xf32>
    %215 = vector.multi_reduction <add>, %214, %cst_63 [1] : vector<2x64xf32> to vector<2xf32>
    %216 = vector.shape_cast %215 : vector<2xf32> to vector<2x1xf32>
    %cst_64 = arith.constant 6.400000e+01 : f32
    %217 = vector.broadcast %cst_64 : f32 to vector<2x1xf32>
    %218 = arith.divf %216, %217 : vector<2x1xf32>
    %219 = vector.broadcast %218 : vector<2x1xf32> to vector<2x64xf32>
    %220 = arith.subf %214, %219 : vector<2x64xf32>
    %221 = arith.mulf %220, %220 : vector<2x64xf32>
    %cst_65 = arith.constant dense<0.000000e+00> : vector<2xf32>
    %222 = vector.multi_reduction <add>, %221, %cst_65 [1] : vector<2x64xf32> to vector<2xf32>
    %223 = vector.shape_cast %222 : vector<2xf32> to vector<2x1xf32>
    %cst_66 = arith.constant 6.400000e+01 : f32
    %224 = vector.broadcast %cst_66 : f32 to vector<2x1xf32>
    %225 = arith.divf %223, %224 : vector<2x1xf32>
    %226 = vector.broadcast %218 : vector<2x1xf32> to vector<2x64xf32>
    %227 = arith.subf %214, %226 : vector<2x64xf32>
    %cst_67 = arith.constant 9.99999974E-6 : f32
    %228 = vector.broadcast %cst_67 : f32 to vector<2x1xf32>
    %229 = arith.addf %225, %228 : vector<2x1xf32>
    %230 = math.rsqrt %229 : vector<2x1xf32>
    %231 = vector.broadcast %230 : vector<2x1xf32> to vector<2x64xf32>
    %232 = arith.mulf %227, %231 : vector<2x64xf32>
    %c65 = arith.constant 65 : index
    %c0_68 = arith.constant 0 : index
    %233 = vector.load %arg3[%c65, %c0_68] : memref<68x256xf32, #tpu.memory_space<vmem>>, vector<1x64xf32>
    %234 = vector.broadcast %233 : vector<1x64xf32> to vector<2x64xf32>
    %235 = arith.mulf %232, %234 : vector<2x64xf32>
    %c66 = arith.constant 66 : index
    %c0_69 = arith.constant 0 : index
    %236 = vector.load %arg3[%c66, %c0_69] : memref<68x256xf32, #tpu.memory_space<vmem>>, vector<1x64xf32>
    %237 = vector.broadcast %236 : vector<1x64xf32> to vector<2x64xf32>
    %238 = arith.addf %235, %237 : vector<2x64xf32>
    %c0_70 = arith.constant 0 : index
    %c0_71 = arith.constant 0 : index
    %239 = vector.load %arg3[%c0_70, %c0_71] : memref<68x256xf32, #tpu.memory_space<vmem>>, vector<64x8xf32>
    %cst_72 = arith.constant dense<0.000000e+00> : vector<2x8xf32>
    %240 = tpu.matmul %238, %239, %cst_72 {dimension_numbers = #tpu.dot_dimension_numbers<[1], [0], [0], [1], [0, 0, 1, 1], [], []>, precision = #tpu.contract_precision<fp32>} : vector<2x64xf32>, vector<64x8xf32>, vector<2x8xf32> -> vector<2x8xf32>
    %c64 = arith.constant 64 : index
    %c0_73 = arith.constant 0 : index
    %241 = vector.load %arg3[%c64, %c0_73] : memref<68x256xf32, #tpu.memory_space<vmem>>, vector<1x8xf32>
    %242 = vector.broadcast %241 : vector<1x8xf32> to vector<2x8xf32>
    %243 = arith.addf %240, %242 : vector<2x8xf32>
    %244 = arith.negf %243 : vector<2x8xf32>
    %245 = math.exp %244 : vector<2x8xf32>
    %cst_74 = arith.constant 1.000000e+00 : f32
    %246 = vector.broadcast %cst_74 : f32 to vector<2x8xf32>
    %247 = arith.addf %246, %245 : vector<2x8xf32>
    %248 = arith.divf %246, %247 : vector<2x8xf32>
    %c0_75 = arith.constant 0 : index
    %c0_76 = arith.constant 0 : index
    %249 = vector.load %arg4[%c0_75, %c0_76] : memref<2x8xf32, #tpu.memory_space<vmem>>, vector<2x8xf32>
    tpu.vector_store %arg4[%c0_75, %c0_76], %248 {strides = array<i32>} : memref<2x8xf32, #tpu.memory_space<vmem>>, vector<2x8xf32>,
    return
  }
}

</mosaic_0001>

<llo_original>
// kernel: bilstm_forward.1
$region0: #{bilstm_forward.1}
  #allocation0 [shape = 'u32[]', space=smem, size = 0x4, offset = 0x4, fixed_abs, tag = 'smem constant byte address 0x4 - core index']
  #allocation1 [shape = 'u32[144,128]{1,0:T(1,128)}', space=vmem, size = 0x12000, scoped, tag = 'internal scratch']
  %s0 = inlined_call_operand.vmem [shape: f32[16,16], index: 0, kind: input, shape index: {}]
  %s1 = inlined_call_operand.vmem [shape: f32[16,256], index: 1, kind: input, shape index: {}]
  %s2 = inlined_call_operand.hbm [shape: f32[32,128], index: 2, kind: input, shape index: {}]
  %s3 = inlined_call_operand.hbm [shape: f32[68,256], index: 3, kind: input, shape index: {}]
  %s4 = inlined_call_operand.hbm [shape: f32[2,8], index: 4, kind: output, shape index: {}]
  %s5 = sld [smem:[#allocation0]]
  $region34: #{bilstm_forward.1} parent=0
    _
  %s7 = ssub.s32 1, %s5
  %s8 = scalar_select 0, %s7, %s5
  $region1: #{bilstm_forward.1} parent=0
    #allocation2 [shape = 'u8[16384]{0}', space=vmem, size = 0x4000, scoped, tag = 'input window, operand 2, single buffered']
    #allocation3 [shape = 's32[1]{0}', space=sflag, size = 0x4, scoped, tag = 'scoped memory for bilstm_forward.1']
    #allocation4 [shape = 's32[1]{0}', space=sflag, size = 0x4, scoped, tag = 'scoped memory for bilstm_forward.1']
    #allocation5 [shape = 'u8[73728]{0}', space=vmem, size = 0x12000, scoped, tag = 'input window, operand 3, single buffered']
    #allocation6 [shape = 's32[1]{0}', space=sflag, size = 0x4, scoped, tag = 'scoped memory for bilstm_forward.1']
    #allocation7 [shape = 'u8[1024]{0}', space=vmem, size = 0x400, scoped, tag = 'output window, operand 0, single buffered']
    %9 = vsyncpa [#allocation3], 0
    %10 = vsyncpa [#allocation6], 0
    %11 = vsyncpa [#allocation4], 0
    // Predicated region
    $region2: #{bilstm_forward.1} parent=1 // pred_check
      _
    $region3: #{bilstm_forward.1} parent=1 // pred_check_branch
      %13 = sbr.rel (0) target = $region5
    $region4: #{bilstm_forward.1} parent=1 // pred_region
      _
    $region5: #{bilstm_forward.1} parent=1 // pred_fallthru
      _
    // Predicated region
    $region6: #{bilstm_forward.1} parent=1 // pred_check
      _
    $region7: #{bilstm_forward.1} parent=1 // pred_check_branch
      %15 = sbr.rel (0) target = $region9
    $region8: #{bilstm_forward.1} parent=1 // pred_region
      _
    $region9: #{bilstm_forward.1} parent=1 // pred_fallthru
      _
    // Predicated region
    $region10: #{bilstm_forward.1} parent=1 // pred_check
      _
    $region11: #{bilstm_forward.1} parent=1 // pred_check_branch
      %17 = sbr.rel (0) target = $region13
    $region12: #{bilstm_forward.1} parent=1 // pred_region
      %s19 = ssub.s32 512, 512
      %20 = vsyncadd [#allocation3], %s19
      %s21 = sshll.u32 [#allocation2], 4
      %s22 = int_to_ptr.vmem [resolvable:$true] %s21
      %27 = dma.hbm_to_vmem [thread:$0]  %s2, 512, %s22, [#allocation3], 128, 128, 8
    $region13: #{bilstm_forward.1} parent=1 // pred_fallthru
      _
    // Predicated region
    $region14: #{bilstm_forward.1} parent=1 // pred_check
      _
    $region15: #{bilstm_forward.1} parent=1 // pred_check_branch
      %29 = sbr.rel (0) target = $region17
    $region16: #{bilstm_forward.1} parent=1 // pred_region
      %s31 = ssub.s32 2304, 2304
      %32 = vsyncadd [#allocation6], %s31
      %s33 = sshll.u32 [#allocation5], 4
      %s34 = int_to_ptr.vmem [resolvable:$true] %s33
      %39 = dma.hbm_to_vmem [thread:$0]  %s3, 2304, %s34, [#allocation6], 256, 256, 16
    $region17: #{bilstm_forward.1} parent=1 // pred_fallthru
      _
    // Predicated region
    $region18: #{bilstm_forward.1} parent=1 // pred_check
      _
    $region19: #{bilstm_forward.1} parent=1 // pred_check_branch
      %41 = sbr.rel (0) target = $region21
    $region20: #{bilstm_forward.1} parent=1 // pred_region
      %42 = dma.done [#allocation3], 512
    $region21: #{bilstm_forward.1} parent=1 // pred_fallthru
      _
    // Predicated region
    $region22: #{bilstm_forward.1} parent=1 // pred_check
      _
    $region23: #{bilstm_forward.1} parent=1 // pred_check_branch
      %44 = sbr.rel (0) target = $region25
    $region24: #{bilstm_forward.1} parent=1 // pred_region
      %45 = dma.done [#allocation6], 2304
    $region25: #{bilstm_forward.1} parent=1 // pred_fallthru
      _
    %s46 = scalar_lea.vmem [#allocation5], 131
    %v47 = vld [vmem:[%s46] ss:$8 sm:$0x3]
    %v48 = vld [vmem:[%s0] sm:$0xff]
    %v49 = vld [vmem:[%s0 + $0x8] sm:$0xff]
    %v50 = vld [vmem:[%s1] sm:$0xff]
    %v51 = vld [vmem:[%s1 + $0x8] sm:$0xff]
    %v52 = vld [vmem:[%s1 + $0x10] sm:$0xff]
    %v53 = vld [vmem:[%s1 + $0x18] sm:$0xff]
    %v55 = vlaneseq
    %v56 = vshrl.u32 %v55, 7
    %v57 = vsub.s32 0, %v56
    %v58 = vrot.slane %v47, %v57
    %v59 = vlaneseq
    %v60 = vshrl.u32 %v59, 7
    %v61 = vsub.s32 1, %v60
    %v62 = vrot.slane %v47, %v61
    %vm65 = vcmask 130048
    %v67 = vsel %vm65, %v48, 0
    %v70 = vsel %vm65, %v49, 0
    %72 = vmatprep.subr.mxu0 0.0
    %73 = vmatpush1.msra.mxu0 0.0
    %74 = vmatprep.subr.mxu0 0.0
    %75 = vmatpush1.msra.mxu0 0.0
    %76 = vmatprep.subr.mxu0 0.0
    %77 = vmatpush1.msra.mxu0 0.0
    %78 = vmatprep.subr.mxu0 0.0
    %79 = vmatpush1.msra.mxu0 0.0
    %80 = vmatprep.subr.mxu0 0.0
    %81 = vmatpush1.msra.mxu0 0.0
    %82 = vmatprep.subr.mxu0 0.0
    %83 = vmatpush1.msra.mxu0 0.0
    %84 = vmatprep.subr.mxu0 0.0
    %85 = vmatpush1.msra.mxu0 0.0
    %86 = vmatprep.subr.mxu0 0.0
    %87 = vmatpush1.msra.mxu0 0.0
    %88 = vmatprep.subr.mxu0 0.0
    %89 = vmatpush1.msra.mxu0 0.0
    %90 = vmatprep.subr.mxu0 0.0
    %91 = vmatpush1.msra.mxu0 0.0
    %92 = vmatprep.subr.mxu0 0.0
    %93 = vmatpush1.msra.mxu0 0.0
    %94 = vmatprep.subr.mxu0 0.0
    %95 = vmatpush1.msra.mxu0 0.0
    %96 = vmatprep.subr.mxu0 0.0
    %97 = vmatpush1.msra.mxu0 0.0
    %98 = vmatprep.subr.mxu0 0.0
    %99 = vmatpush1.msra.mxu0 0.0
    %v100 = vand.u32 %v53, 4294901760
    %101 = vmatprep.subr.mxu0 %v100
    %v102 = vand.u32 %v52, 4294901760
    %103 = vmatpush1.msra.mxu0 %v102
    %v104 = vand.u32 %v51, 4294901760
    %105 = vmatprep.subr.mxu0 %v104
    %v106 = vand.u32 %v50, 4294901760
    %107 = vmatpush1.msra.mxu0 %v106
    %108 = vmatprep.subr.mxu0 0.0
    %109 = vmatpush2.msra.mxu0 0.0
    %110 = vmatprep.subr.mxu0 0.0
    %111 = vmatpush2.msra.mxu0 0.0
    %112 = vmatprep.subr.mxu0 0.0
    %113 = vmatpush2.msra.mxu0 0.0
    %114 = vmatprep.subr.mxu0 0.0
    %115 = vmatpush2.msra.mxu0 0.0
    %116 = vmatprep.subr.mxu0 0.0
    %117 = vmatpush2.msra.mxu0 0.0
    %118 = vmatprep.subr.mxu0 0.0
    %119 = vmatpush2.msra.mxu0 0.0
    %120 = vmatprep.subr.mxu0 0.0
    %121 = vmatpush2.msra.mxu0 0.0
    %122 = vmatprep.subr.mxu0 0.0
    %123 = vmatpush2.msra.mxu0 0.0
    %124 = vmatprep.subr.mxu0 0.0
    %125 = vmatpush2.msra.mxu0 0.0
    %126 = vmatprep.subr.mxu0 0.0
    %127 = vmatpush2.msra.mxu0 0.0
    %128 = vmatprep.subr.mxu0 0.0
    %129 = vmatpush2.msra.mxu0 0.0
    %130 = vmatprep.subr.mxu0 0.0
    %131 = vmatpush2.msra.mxu0 0.0
    %132 = vmatprep.subr.mxu0 0.0
    %133 = vmatpush2.msra.mxu0 0.0
    %134 = vmatprep.subr.mxu0 0.0
    %135 = vmatpush2.msra.mxu0 0.0
    %136 = vmatprep.subr.mxu0 0.0
    %137 = vmatpush2.msra.mxu0 0.0
    %138 = vmatprep.subr.mxu0 0.0
    %139 = vmatpush2.msra.mxu0 0.0
    %140 = vmatprep.mubr.f32.mxu0 0.0
    %v141 = vand.u32 %v67, 4294901760
    %v142 = vsub.f32 %v67, %v141
    %v143 = vand.u32 %v142, 4294901760
    %v144 = vsub.f32 %v142, %v143
    %v145 = vand.u32 %v144, 4294901760
    %146 = vmatmul.mubr.f32.gmra.mxu0 %v145
    %v147 = vpop.f32.mrf.mxu0
    %v148 = vadd.f32 %v58, %v147
    %v149 = vpop.f32.mrf.mxu0
    %150 = vmatprep.mubr.f32.mxu0 0.0
    %v151 = vand.u32 %v70, 4294901760
    %v152 = vsub.f32 %v70, %v151
    %v153 = vand.u32 %v152, 4294901760
    %v154 = vsub.f32 %v152, %v153
    %v155 = vand.u32 %v154, 4294901760
    %156 = vmatmul.mubr.f32.gmra.mxu0 %v155
    %v157 = vpop.f32.mrf.mxu0
    %v158 = vadd.f32 %v58, %v157
    %v159 = vpop.f32.mrf.mxu0
    %v160 = vadd.f32 %v62, %v159
    %161 = vdwg.mxu0
    %162 = vmatprep.subr.mxu0 0.0
    %163 = vmatpush1.msra.mxu0 0.0
    %164 = vmatprep.subr.mxu0 0.0
    %165 = vmatpush1.msra.mxu0 0.0
    %166 = vmatprep.subr.mxu0 0.0
    %167 = vmatpush1.msra.mxu0 0.0
    %168 = vmatprep.subr.mxu0 0.0
    %169 = vmatpush1.msra.mxu0 0.0
    %170 = vmatprep.subr.mxu0 0.0
    %171 = vmatpush1.msra.mxu0 0.0
    %172 = vmatprep.subr.mxu0 0.0
    %173 = vmatpush1.msra.mxu0 0.0
    %174 = vmatprep.subr.mxu0 0.0
    %175 = vmatpush1.msra.mxu0 0.0
    %176 = vmatprep.subr.mxu0 0.0
    %177 = vmatpush1.msra.mxu0 0.0
    %178 = vmatprep.subr.mxu0 0.0
    %179 = vmatpush1.msra.mxu0 0.0
    %180 = vmatprep.subr.mxu0 0.0
    %181 = vmatpush1.msra.mxu0 0.0
    %182 = vmatprep.subr.mxu0 0.0
    %183 = vmatpush1.msra.mxu0 0.0
    %184 = vmatprep.subr.mxu0 0.0
    %185 = vmatpush1.msra.mxu0 0.0
    %186 = vmatprep.subr.mxu0 0.0
    %187 = vmatpush1.msra.mxu0 0.0
    %188 = vmatprep.subr.mxu0 0.0
    %189 = vmatpush1.msra.mxu0 0.0
    %v190 = vand.u32 %v53, 4294901760
    %v191 = vsub.f32 %v53, %v190
    %v192 = vand.u32 %v191, 4294901760
    %v193 = vsub.f32 %v191, %v192
    %v194 = vand.u32 %v193, 4294901760
    %195 = vmatprep.subr.mxu0 %v194
    %v196 = vand.u32 %v52, 4294901760
    %v197 = vsub.f32 %v52, %v196
    %v198 = vand.u32 %v197, 4294901760
    %v199 = vsub.f32 %v197, %v198
    %v200 = vand.u32 %v199, 4294901760
    %201 = vmatpush1.msra.mxu0 %v200
    %v202 = vand.u32 %v51, 4294901760
    %v203 = vsub.f32 %v51, %v202
    %v204 = vand.u32 %v203, 4294901760
    %v205 = vsub.f32 %v203, %v204
    %v206 = vand.u32 %v205, 4294901760
    %207 = vmatprep.subr.mxu0 %v206
    %v208 = vand.u32 %v50, 4294901760
    %v209 = vsub.f32 %v50, %v208
    %v210 = vand.u32 %v209, 4294901760
    %v211 = vsub.f32 %v209, %v210
    %v212 = vand.u32 %v211, 4294901760
    %213 = vmatpush1.msra.mxu0 %v212
    %214 = vmatprep.subr.mxu0 0.0
    %215 = vmatpush2.msra.mxu0 0.0
    %216 = vmatprep.subr.mxu0 0.0
    %217 = vmatpush2.msra.mxu0 0.0
    %218 = vmatprep.subr.mxu0 0.0
    %219 = vmatpush2.msra.mxu0 0.0
    %220 = vmatprep.subr.mxu0 0.0
    %221 = vmatpush2.msra.mxu0 0.0
    %222 = vmatprep.subr.mxu0 0.0
    %223 = vmatpush2.msra.mxu0 0.0
    %224 = vmatprep.subr.mxu0 0.0
    %225 = vmatpush2.msra.mxu0 0.0
    %226 = vmatprep.subr.mxu0 0.0
    %227 = vmatpush2.msra.mxu0 0.0
    %228 = vmatprep.subr.mxu0 0.0
    %229 = vmatpush2.msra.mxu0 0.0
    %230 = vmatprep.subr.mxu0 0.0
    %231 = vmatpush2.msra.mxu0 0.0
    %232 = vmatprep.subr.mxu0 0.0
    %233 = vmatpush2.msra.mxu0 0.0
    %234 = vmatprep.subr.mxu0 0.0
    %235 = vmatpush2.msra.mxu0 0.0
    %236 = vmatprep.subr.mxu0 0.0
    %237 = vmatpush2.msra.mxu0 0.0
    %238 = vmatprep.subr.mxu0 0.0
    %239 = vmatpush2.msra.mxu0 0.0
    %240 = vmatprep.subr.mxu0 0.0
    %241 = vmatpush2.msra.mxu0 0.0
    %242 = vmatprep.subr.mxu0 0.0
    %243 = vmatpush2.msra.mxu0 0.0
    %244 = vmatprep.subr.mxu0 0.0
    %245 = vmatpush2.msra.mxu0 0.0
    %246 = vmatprep.mubr.f32.mxu0 0.0
    %v247 = vand.u32 %v67, 4294901760
    %248 = vmatmul.mubr.f32.gmra.mxu0 %v247
    %v249 = vpop.f32.mrf.mxu0
    %v250 = vadd.f32 %v148, %v249
    %v251 = vpop.f32.mrf.mxu0
    %252 = vmatprep.mubr.f32.mxu0 0.0
    %v253 = vand.u32 %v70, 4294901760
    %254 = vmatmul.mubr.f32.gmra.mxu0 %v253
    %v255 = vpop.f32.mrf.mxu0
    %v256 = vadd.f32 %v158, %v255
    %v257 = vpop.f32.mrf.mxu0
    %v258 = vadd.f32 %v160, %v257
    %259 = vdwg.mxu0
    %260 = vmatprep.subr.mxu0 0.0
    %261 = vmatpush1.msra.mxu0 0.0
    %262 = vmatprep.subr.mxu0 0.0
    %263 = vmatpush1.msra.mxu0 0.0
    %264 = vmatprep.subr.mxu0 0.0
    %265 = vmatpush1.msra.mxu0 0.0
    %266 = vmatprep.subr.mxu0 0.0
    %267 = vmatpush1.msra.mxu0 0.0
    %268 = vmatprep.subr.mxu0 0.0
    %269 = vmatpush1.msra.mxu0 0.0
    %270 = vmatprep.subr.mxu0 0.0
    %271 = vmatpush1.msra.mxu0 0.0
    %272 = vmatprep.subr.mxu0 0.0
    %273 = vmatpush1.msra.mxu0 0.0
    %274 = vmatprep.subr.mxu0 0.0
    %275 = vmatpush1.msra.mxu0 0.0
    %276 = vmatprep.subr.mxu0 0.0
    %277 = vmatpush1.msra.mxu0 0.0
    %278 = vmatprep.subr.mxu0 0.0
    %279 = vmatpush1.msra.mxu0 0.0
    %280 = vmatprep.subr.mxu0 0.0
    %281 = vmatpush1.msra.mxu0 0.0
    %282 = vmatprep.subr.mxu0 0.0
    %283 = vmatpush1.msra.mxu0 0.0
    %284 = vmatprep.subr.mxu0 0.0
    %285 = vmatpush1.msra.mxu0 0.0
    %286 = vmatprep.subr.mxu0 0.0
    %287 = vmatpush1.msra.mxu0 0.0
    %v288 = vand.u32 %v53, 4294901760
    %v289 = vsub.f32 %v53, %v288
    %290 = vmatprep.subr.mxu0 %v289
    %v291 = vand.u32 %v52, 4294901760
    %v292 = vsub.f32 %v52, %v291
    %293 = vmatpush1.msra.mxu0 %v292
    %v294 = vand.u32 %v51, 4294901760
    %v295 = vsub.f32 %v51, %v294
    %296 = vmatprep.subr.mxu0 %v295
    %v297 = vand.u32 %v50, 4294901760
    %v298 = vsub.f32 %v50, %v297
    %299 = vmatpush1.msra.mxu0 %v298
    %300 = vmatprep.subr.mxu0 0.0
    %301 = vmatpush2.msra.mxu0 0.0
    %302 = vmatprep.subr.mxu0 0.0
    %303 = vmatpush2.msra.mxu0 0.0
    %304 = vmatprep.subr.mxu0 0.0
    %305 = vmatpush2.msra.mxu0 0.0
    %306 = vmatprep.subr.mxu0 0.0
    %307 = vmatpush2.msra.mxu0 0.0
    %308 = vmatprep.subr.mxu0 0.0
    %309 = vmatpush2.msra.mxu0 0.0
    %310 = vmatprep.subr.mxu0 0.0
    %311 = vmatpush2.msra.mxu0 0.0
    %312 = vmatprep.subr.mxu0 0.0
    %313 = vmatpush2.msra.mxu0 0.0
    %314 = vmatprep.subr.mxu0 0.0
    %315 = vmatpush2.msra.mxu0 0.0
    %316 = vmatprep.subr.mxu0 0.0
    %317 = vmatpush2.msra.mxu0 0.0
    %318 = vmatprep.subr.mxu0 0.0
    %319 = vmatpush2.msra.mxu0 0.0
    %320 = vmatprep.subr.mxu0 0.0
    %321 = vmatpush2.msra.mxu0 0.0
    %322 = vmatprep.subr.mxu0 0.0
    %323 = vmatpush2.msra.mxu0 0.0
    %324 = vmatprep.subr.mxu0 0.0
    %325 = vmatpush2.msra.mxu0 0.0
    %326 = vmatprep.subr.mxu0 0.0
    %327 = vmatpush2.msra.mxu0 0.0
    %328 = vmatprep.subr.mxu0 0.0
    %329 = vmatpush2.msra.mxu0 0.0
    %330 = vmatprep.subr.mxu0 0.0
    %331 = vmatpush2.msra.mxu0 0.0
    %332 = vmatprep.mubr.f32.mxu0 0.0
    %v333 = vand.u32 %v67, 4294901760
    %v334 = vsub.f32 %v67, %v333
    %335 = vmatmul.mubr.f32.gmra.mxu0 %v334
    %v336 = vpop.f32.mrf.mxu0
    %v337 = vadd.f32 %v250, %v336
    %v338 = vpop.f32.mrf.mxu0
    %339 = vmatprep.mubr.f32.mxu0 0.0
    %v340 = vand.u32 %v70, 4294901760
    %v341 = vsub.f32 %v70, %v340
    %342 = vmatmul.mubr.f32.gmra.mxu0 %v341
    %v343 = vpop.f32.mrf.mxu0
    %v344 = vadd.f32 %v256, %v343
    %v345 = vpop.f32.mrf.mxu0
    %v346 = vadd.f32 %v258, %v345
    %347 = vdwg.mxu0
    %348 = vmatprep.subr.mxu0 0.0
    %349 = vmatpush1.msra.mxu0 0.0
    %350 = vmatprep.subr.mxu0 0.0
    %351 = vmatpush1.msra.mxu0 0.0
    %352 = vmatprep.subr.mxu0 0.0
    %353 = vmatpush1.msra.mxu0 0.0
    %354 = vmatprep.subr.mxu0 0.0
    %355 = vmatpush1.msra.mxu0 0.0
    %356 = vmatprep.subr.mxu0 0.0
    %357 = vmatpush1.msra.mxu0 0.0
    %358 = vmatprep.subr.mxu0 0.0
    %359 = vmatpush1.msra.mxu0 0.0
    %360 = vmatprep.subr.mxu0 0.0
    %361 = vmatpush1.msra.mxu0 0.0
    %362 = vmatprep.subr.mxu0 0.0
    %363 = vmatpush1.msra.mxu0 0.0
    %364 = vmatprep.subr.mxu0 0.0
    %365 = vmatpush1.msra.mxu0 0.0
    %366 = vmatprep.subr.mxu0 0.0
    %367 = vmatpush1.msra.mxu0 0.0
    %368 = vmatprep.subr.mxu0 0.0
    %369 = vmatpush1.msra.mxu0 0.0
    %370 = vmatprep.subr.mxu0 0.0
    %371 = vmatpush1.msra.mxu0 0.0
    %372 = vmatprep.subr.mxu0 0.0
    %373 = vmatpush1.msra.mxu0 0.0
    %374 = vmatprep.subr.mxu0 0.0
    %375 = vmatpush1.msra.mxu0 0.0
    %v376 = vand.u32 %v53, 4294901760
    %377 = vmatprep.subr.mxu0 %v376
    %v378 = vand.u32 %v52, 4294901760
    %379 = vmatpush1.msra.mxu0 %v378
    %v380 = vand.u32 %v51, 4294901760
    %381 = vmatprep.subr.mxu0 %v380
    %v382 = vand.u32 %v50, 4294901760
    %383 = vmatpush1.msra.mxu0 %v382
    %384 = vmatprep.subr.mxu0 0.0
    %385 = vmatpush2.msra.mxu0 0.0
    %386 = vmatprep.subr.mxu0 0.0
    %387 = vmatpush2.msra.mxu0 0.0
    %388 = vmatprep.subr.mxu0 0.0
    %389 = vmatpush2.msra.mxu0 0.0
    %390 = vmatprep.subr.mxu0 0.0
    %391 = vmatpush2.msra.mxu0 0.0
    %392 = vmatprep.subr.mxu0 0.0
    %393 = vmatpush2.msra.mxu0 0.0
    %394 = vmatprep.subr.mxu0 0.0
    %395 = vmatpush2.msra.mxu0 0.0
    %396 = vmatprep.subr.mxu0 0.0
    %397 = vmatpush2.msra.mxu0 0.0
    %398 = vmatprep.subr.mxu0 0.0
    %399 = vmatpush2.msra.mxu0 0.0
    %400 = vmatprep.subr.mxu0 0.0
    %401 = vmatpush2.msra.mxu0 0.0
    %402 = vmatprep.subr.mxu0 0.0
    %403 = vmatpush2.msra.mxu0 0.0
    %404 = vmatprep.subr.mxu0 0.0
    %405 = vmatpush2.msra.mxu0 0.0
    %406 = vmatprep.subr.mxu0 0.0
    %407 = vmatpush2.msra.mxu0 0.0
    %408 = vmatprep.subr.mxu0 0.0
    %409 = vmatpush2.msra.mxu0 0.0
    %410 = vmatprep.subr.mxu0 0.0
    %411 = vmatpush2.msra.mxu0 0.0
    %412 = vmatprep.subr.mxu0 0.0
    %413 = vmatpush2.msra.mxu0 0.0
    %414 = vmatprep.subr.mxu0 0.0
    %415 = vmatpush2.msra.mxu0 0.0
    %416 = vmatprep.mubr.f32.mxu0 0.0
    %v417 = vand.u32 %v67, 4294901760
    %v418 = vsub.f32 %v67, %v417
    %v419 = vand.u32 %v418, 4294901760
    %420 = vmatmul.mubr.f32.gmra.mxu0 %v419
    %v421 = vpop.f32.mrf.mxu0
    %v422 = vadd.f32 %v337, %v421
    %v423 = vpop.f32.mrf.mxu0
    %424 = vmatprep.mubr.f32.mxu0 0.0
    %v425 = vand.u32 %v70, 4294901760
    %v426 = vsub.f32 %v70, %v425
    %v427 = vand.u32 %v426, 4294901760
    %428 = vmatmul.mubr.f32.gmra.mxu0 %v427
    %v429 = vpop.f32.mrf.mxu0
    %v430 = vadd.f32 %v344, %v429
    %v431 = vpop.f32.mrf.mxu0
    %v432 = vadd.f32 %v346, %v431
    %433 = vdwg.mxu0
    %434 = vmatprep.subr.mxu0 0.0
    %435 = vmatpush1.msra.mxu0 0.0
    %436 = vmatprep.subr.mxu0 0.0
    %437 = vmatpush1.msra.mxu0 0.0
    %438 = vmatprep.subr.mxu0 0.0
    %439 = vmatpush1.msra.mxu0 0.0
    %440 = vmatprep.subr.mxu0 0.0
    %441 = vmatpush1.msra.mxu0 0.0
    %442 = vmatprep.subr.mxu0 0.0
    %443 = vmatpush1.msra.mxu0 0.0
    %444 = vmatprep.subr.mxu0 0.0
    %445 = vmatpush1.msra.mxu0 0.0
    %446 = vmatprep.subr.mxu0 0.0
    %447 = vmatpush1.msra.mxu0 0.0
    %448 = vmatprep.subr.mxu0 0.0
    %449 = vmatpush1.msra.mxu0 0.0
    %450 = vmatprep.subr.mxu0 0.0
    %451 = vmatpush1.msra.mxu0 0.0
    %452 = vmatprep.subr.mxu0 0.0
    %453 = vmatpush1.msra.mxu0 0.0
    %454 = vmatprep.subr.mxu0 0.0
    %455 = vmatpush1.msra.mxu0 0.0
    %456 = vmatprep.subr.mxu0 0.0
    %457 = vmatpush1.msra.mxu0 0.0
    %458 = vmatprep.subr.mxu0 0.0
    %459 = vmatpush1.msra.mxu0 0.0
    %460 = vmatprep.subr.mxu0 0.0
    %461 = vmatpush1.msra.mxu0 0.0
    %v462 = vand.u32 %v53, 4294901760
    %v463 = vsub.f32 %v53, %v462
    %v464 = vand.u32 %v463, 4294901760
    %465 = vmatprep.subr.mxu0 %v464
    %v466 = vand.u32 %v52, 4294901760
    %v467 = vsub.f32 %v52, %v466
    %v468 = vand.u32 %v467, 4294901760
    %469 = vmatpush1.msra.mxu0 %v468
    %v470 = vand.u32 %v51, 4294901760
    %v471 = vsub.f32 %v51, %v470
    %v472 = vand.u32 %v471, 4294901760
    %473 = vmatprep.subr.mxu0 %v472
    %v474 = vand.u32 %v50, 4294901760
    %v475 = vsub.f32 %v50, %v474
    %v476 = vand.u32 %v475, 4294901760
    %477 = vmatpush1.msra.mxu0 %v476
    %478 = vmatprep.subr.mxu0 0.0
    %479 = vmatpush2.msra.mxu0 0.0
    %480 = vmatprep.subr.mxu0 0.0
    %481 = vmatpush2.msra.mxu0 0.0
    %482 = vmatprep.subr.mxu0 0.0
    %483 = vmatpush2.msra.mxu0 0.0
    %484 = vmatprep.subr.mxu0 0.0
    %485 = vmatpush2.msra.mxu0 0.0
    %486 = vmatprep.subr.mxu0 0.0
    %487 = vmatpush2.msra.mxu0 0.0
    %488 = vmatprep.subr.mxu0 0.0
    %489 = vmatpush2.msra.mxu0 0.0
    %490 = vmatprep.subr.mxu0 0.0
    %491 = vmatpush2.msra.mxu0 0.0
    %492 = vmatprep.subr.mxu0 0.0
    %493 = vmatpush2.msra.mxu0 0.0
    %494 = vmatprep.subr.mxu0 0.0
    %495 = vmatpush2.msra.mxu0 0.0
    %496 = vmatprep.subr.mxu0 0.0
    %497 = vmatpush2.msra.mxu0 0.0
    %498 = vmatprep.subr.mxu0 0.0
    %499 = vmatpush2.msra.mxu0 0.0
    %500 = vmatprep.subr.mxu0 0.0
    %501 = vmatpush2.msra.mxu0 0.0
    %502 = vmatprep.subr.mxu0 0.0
    %503 = vmatpush2.msra.mxu0 0.0
    %504 = vmatprep.subr.mxu0 0.0
    %505 = vmatpush2.msra.mxu0 0.0
    %506 = vmatprep.subr.mxu0 0.0
    %507 = vmatpush2.msra.mxu0 0.0
    %508 = vmatprep.subr.mxu0 0.0
    %509 = vmatpush2.msra.mxu0 0.0
    %510 = vmatprep.mubr.f32.mxu0 0.0
    %v511 = vand.u32 %v67, 4294901760
    %512 = vmatmul.mubr.f32.gmra.mxu0 %v511
    %v513 = vpop.f32.mrf.mxu0
    %v514 = vadd.f32 %v422, %v513
    %v515 = vpop.f32.mrf.mxu0
    %516 = vmatprep.mubr.f32.mxu0 0.0
    %v517 = vand.u32 %v70, 4294901760
    %518 = vmatmul.mubr.f32.gmra.mxu0 %v517
    %v519 = vpop.f32.mrf.mxu0
    %v520 = vadd.f32 %v430, %v519
    %v521 = vpop.f32.mrf.mxu0
    %v522 = vadd.f32 %v432, %v521
    %523 = vdwg.mxu0
    %524 = vmatprep.subr.mxu0 0.0
    %525 = vmatpush1.msra.mxu0 0.0
    %526 = vmatprep.subr.mxu0 0.0
    %527 = vmatpush1.msra.mxu0 0.0
    %528 = vmatprep.subr.mxu0 0.0
    %529 = vmatpush1.msra.mxu0 0.0
    %530 = vmatprep.subr.mxu0 0.0
    %531 = vmatpush1.msra.mxu0 0.0
    %532 = vmatprep.subr.mxu0 0.0
    %533 = vmatpush1.msra.mxu0 0.0
    %534 = vmatprep.subr.mxu0 0.0
    %535 = vmatpush1.msra.mxu0 0.0
    %536 = vmatprep.subr.mxu0 0.0
    %537 = vmatpush1.msra.mxu0 0.0
    %538 = vmatprep.subr.mxu0 0.0
    %539 = vmatpush1.msra.mxu0 0.0
    %540 = vmatprep.subr.mxu0 0.0
    %541 = vmatpush1.msra.mxu0 0.0
    %542 = vmatprep.subr.mxu0 0.0
    %543 = vmatpush1.msra.mxu0 0.0
    %544 = vmatprep.subr.mxu0 0.0
    %545 = vmatpush1.msra.mxu0 0.0
    %546 = vmatprep.subr.mxu0 0.0
    %547 = vmatpush1.msra.mxu0 0.0
    %548 = vmatprep.subr.mxu0 0.0
    %549 = vmatpush1.msra.mxu0 0.0
    %550 = vmatprep.subr.mxu0 0.0
    %551 = vmatpush1.msra.mxu0 0.0
    %v552 = vand.u32 %v53, 4294901760
    %553 = vmatprep.subr.mxu0 %v552
    %v554 = vand.u32 %v52, 4294901760
    %555 = vmatpush1.msra.mxu0 %v554
    %v556 = vand.u32 %v51, 4294901760
    %557 = vmatprep.subr.mxu0 %v556
    %v558 = vand.u32 %v50, 4294901760
    %559 = vmatpush1.msra.mxu0 %v558
    %560 = vmatprep.subr.mxu0 0.0
    %561 = vmatpush2.msra.mxu0 0.0
    %562 = vmatprep.subr.mxu0 0.0
    %563 = vmatpush2.msra.mxu0 0.0
    %564 = vmatprep.subr.mxu0 0.0
    %565 = vmatpush2.msra.mxu0 0.0
    %566 = vmatprep.subr.mxu0 0.0
    %567 = vmatpush2.msra.mxu0 0.0
    %568 = vmatprep.subr.mxu0 0.0
    %569 = vmatpush2.msra.mxu0 0.0
    %570 = vmatprep.subr.mxu0 0.0
    %571 = vmatpush2.msra.mxu0 0.0
    %572 = vmatprep.subr.mxu0 0.0
    %573 = vmatpush2.msra.mxu0 0.0
    %574 = vmatprep.subr.mxu0 0.0
    %575 = vmatpush2.msra.mxu0 0.0
    %576 = vmatprep.subr.mxu0 0.0
    %577 = vmatpush2.msra.mxu0 0.0
    %578 = vmatprep.subr.mxu0 0.0
    %579 = vmatpush2.msra.mxu0 0.0
    %580 = vmatprep.subr.mxu0 0.0
    %581 = vmatpush2.msra.mxu0 0.0
    %582 = vmatprep.subr.mxu0 0.0
    %583 = vmatpush2.msra.mxu0 0.0
    %584 = vmatprep.subr.mxu0 0.0
    %585 = vmatpush2.msra.mxu0 0.0
    %586 = vmatprep.subr.mxu0 0.0
    %587 = vmatpush2.msra.mxu0 0.0
    %588 = vmatprep.subr.mxu0 0.0
    %589 = vmatpush2.msra.mxu0 0.0
    %590 = vmatprep.subr.mxu0 0.0
    %591 = vmatpush2.msra.mxu0 0.0
    %592 = vmatprep.mubr.f32.mxu0 0.0
    %v593 = vand.u32 %v67, 4294901760
    %594 = vmatmul.mubr.f32.gmra.mxu0 %v593
    %v595 = vpop.f32.mrf.mxu0
    %v596 = vadd.f32 %v514, %v595
    %v597 = vpop.f32.mrf.mxu0
    %598 = vmatprep.mubr.f32.mxu0 0.0
    %v599 = vand.u32 %v70, 4294901760
    %600 = vmatmul.mubr.f32.gmra.mxu0 %v599
    %v601 = vpop.f32.mrf.mxu0
    %v602 = vadd.f32 %v520, %v601
    %v603 = vpop.f32.mrf.mxu0
    %v604 = vadd.f32 %v522, %v603
    %605 = vdwg.mxu0
    %v606 = vld [vmem:[#allocation2] sm:$0xff]
    %v607 = vld [vmem:[#allocation2 + $0x8] sm:$0xff]
    %v608 = vld [vmem:[#allocation2 + $0x10] sm:$0xff]
    %v609 = vld [vmem:[#allocation2 + $0x18] sm:$0xff]
    %v610 = vtanh.pop %v596
    %v611 = vadd.f32 %v610, 1.0
    %v612 = vmul.f32 %v611, 0.5
    %614 = vrot.lane.b32.xlu0 %v610, 64
    %v615 = vpop.permute.xlu0 %614
    %v617 = vmul.f32 %v612, %v615
    %v618 = vtanh.pop %v617
    %620 = vrot.lane.b32.xlu0 %v618, 96
    %v621 = vpop.permute.xlu0 %620
    %v623 = vmul.f32 %v612, %v621
    %625 = vrot.lane.b32.xlu0 %v623, 32
    %v626 = vpop.permute.xlu0 %625
    %vm627 = vcmask 261120
    %v628 = vsel %vm627, %v626, 0
    %630 = vmatprep.subr.mxu0 0.0
    %631 = vmatpush1.msra.mxu0 0.0
    %632 = vmatprep.subr.mxu0 0.0
    %633 = vmatpush1.msra.mxu0 0.0
    %634 = vmatprep.subr.mxu0 0.0
    %635 = vmatpush1.msra.mxu0 0.0
    %636 = vmatprep.subr.mxu0 0.0
    %637 = vmatpush1.msra.mxu0 0.0
    %638 = vmatprep.subr.mxu0 0.0
    %639 = vmatpush1.msra.mxu0 0.0
    %640 = vmatprep.subr.mxu0 0.0
    %641 = vmatpush1.msra.mxu0 0.0
    %642 = vmatprep.subr.mxu0 0.0
    %643 = vmatpush1.msra.mxu0 0.0
    %644 = vmatprep.subr.mxu0 0.0
    %645 = vmatpush1.msra.mxu0 0.0
    %646 = vmatprep.subr.mxu0 0.0
    %647 = vmatpush1.msra.mxu0 0.0
    %648 = vmatprep.subr.mxu0 0.0
    %649 = vmatpush1.msra.mxu0 0.0
    %650 = vmatprep.subr.mxu0 0.0
    %651 = vmatpush1.msra.mxu0 0.0
    %652 = vmatprep.subr.mxu0 0.0
    %653 = vmatpush1.msra.mxu0 0.0
    %654 = vmatprep.subr.mxu0 0.0
    %v655 = vand.u32 %v609, 4294901760
    %656 = vmatpush1.msra.mxu0 %v655
    %657 = vmatprep.subr.mxu0 0.0
    %v658 = vand.u32 %v608, 4294901760
    %659 = vmatpush1.msra.mxu0 %v658
    %660 = vmatprep.subr.mxu0 0.0
    %v661 = vand.u32 %v607, 4294901760
    %662 = vmatpush1.msra.mxu0 %v661
    %663 = vmatprep.subr.mxu0 0.0
    %v664 = vand.u32 %v606, 4294901760
    %665 = vmatpush1.msra.mxu0 %v664
    %666 = vmatprep.subr.mxu0 0.0
    %667 = vmatpush2.msra.mxu0 0.0
    %668 = vmatprep.subr.mxu0 0.0
    %669 = vmatpush2.msra.mxu0 0.0
    %670 = vmatprep.subr.mxu0 0.0
    %671 = vmatpush2.msra.mxu0 0.0
    %672 = vmatprep.subr.mxu0 0.0
    %673 = vmatpush2.msra.mxu0 0.0
    %674 = vmatprep.subr.mxu0 0.0
    %675 = vmatpush2.msra.mxu0 0.0
    %676 = vmatprep.subr.mxu0 0.0
    %677 = vmatpush2.msra.mxu0 0.0
    %678 = vmatprep.subr.mxu0 0.0
    %679 = vmatpush2.msra.mxu0 0.0
    %680 = vmatprep.subr.mxu0 0.0
    %681 = vmatpush2.msra.mxu0 0.0
    %682 = vmatprep.subr.mxu0 0.0
    %683 = vmatpush2.msra.mxu0 0.0
    %684 = vmatprep.subr.mxu0 0.0
    %685 = vmatpush2.msra.mxu0 0.0
    %686 = vmatprep.subr.mxu0 0.0
    %687 = vmatpush2.msra.mxu0 0.0
    %688 = vmatprep.subr.mxu0 0.0
    %689 = vmatpush2.msra.mxu0 0.0
    %690 = vmatprep.subr.mxu0 0.0
    %691 = vmatpush2.msra.mxu0 0.0
    %692 = vmatprep.subr.mxu0 0.0
    %693 = vmatpush2.msra.mxu0 0.0
    %694 = vmatprep.subr.mxu0 0.0
    %695 = vmatpush2.msra.mxu0 0.0
    %696 = vmatprep.subr.mxu0 0.0
    %697 = vmatpush2.msra.mxu0 0.0
    %698 = vmatprep.mubr.f32.mxu0 0.0
    %v699 = vand.u32 %v628, 4294901760
    %v700 = vsub.f32 %v628, %v699
    %v701 = vand.u32 %v700, 4294901760
    %v702 = vsub.f32 %v700, %v701
    %v703 = vand.u32 %v702, 4294901760
    %704 = vmatmul.mubr.f32.gmra.mxu0 %v703
    %v705 = vpop.f32.mrf.mxu0
    %v706 = vadd.f32 0.0, %v705
    %v707 = vpop.f32.mrf.mxu0
    %708 = vdwg.mxu0
    %709 = vmatprep.subr.mxu0 0.0
    %710 = vmatpush1.msra.mxu0 0.0
    %711 = vmatprep.subr.mxu0 0.0
    %712 = vmatpush1.msra.mxu0 0.0
    %713 = vmatprep.subr.mxu0 0.0
    %714 = vmatpush1.msra.mxu0 0.0
    %715 = vmatprep.subr.mxu0 0.0
    %716 = vmatpush1.msra.mxu0 0.0
    %717 = vmatprep.subr.mxu0 0.0
    %718 = vmatpush1.msra.mxu0 0.0
    %719 = vmatprep.subr.mxu0 0.0
    %720 = vmatpush1.msra.mxu0 0.0
    %721 = vmatprep.subr.mxu0 0.0
    %722 = vmatpush1.msra.mxu0 0.0
    %723 = vmatprep.subr.mxu0 0.0
    %724 = vmatpush1.msra.mxu0 0.0
    %725 = vmatprep.subr.mxu0 0.0
    %726 = vmatpush1.msra.mxu0 0.0
    %727 = vmatprep.subr.mxu0 0.0
    %728 = vmatpush1.msra.mxu0 0.0
    %729 = vmatprep.subr.mxu0 0.0
    %730 = vmatpush1.msra.mxu0 0.0
    %731 = vmatprep.subr.mxu0 0.0
    %732 = vmatpush1.msra.mxu0 0.0
    %733 = vmatprep.subr.mxu0 0.0
    %v734 = vand.u32 %v609, 4294901760
    %v735 = vsub.f32 %v609, %v734
    %v736 = vand.u32 %v735, 4294901760
    %v737 = vsub.f32 %v735, %v736
    %v738 = vand.u32 %v737, 4294901760
    %739 = vmatpush1.msra.mxu0 %v738
    %740 = vmatprep.subr.mxu0 0.0
    %v741 = vand.u32 %v608, 4294901760
    %v742 = vsub.f32 %v608, %v741
    %v743 = vand.u32 %v742, 4294901760
    %v744 = vsub.f32 %v742, %v743
    %v745 = vand.u32 %v744, 4294901760
    %746 = vmatpush1.msra.mxu0 %v745
    %747 = vmatprep.subr.mxu0 0.0
    %v748 = vand.u32 %v607, 4294901760
    %v749 = vsub.f32 %v607, %v748
    %v750 = vand.u32 %v749, 4294901760
    %v751 = vsub.f32 %v749, %v750
    %v752 = vand.u32 %v751, 4294901760
    %753 = vmatpush1.msra.mxu0 %v752
    %754 = vmatprep.subr.mxu0 0.0
    %v755 = vand.u32 %v606, 4294901760
    %v756 = vsub.f32 %v606, %v755
    %v757 = vand.u32 %v756, 4294901760
    %v758 = vsub.f32 %v756, %v757
    %v759 = vand.u32 %v758, 4294901760
    %760 = vmatpush1.msra.mxu0 %v759
    %761 = vmatprep.subr.mxu0 0.0
    %762 = vmatpush2.msra.mxu0 0.0
    %763 = vmatprep.subr.mxu0 0.0
    %764 = vmatpush2.msra.mxu0 0.0
    %765 = vmatprep.subr.mxu0 0.0
    %766 = vmatpush2.msra.mxu0 0.0
    %767 = vmatprep.subr.mxu0 0.0
    %768 = vmatpush2.msra.mxu0 0.0
    %769 = vmatprep.subr.mxu0 0.0
    %770 = vmatpush2.msra.mxu0 0.0
    %771 = vmatprep.subr.mxu0 0.0
    %772 = vmatpush2.msra.mxu0 0.0
    %773 = vmatprep.subr.mxu0 0.0
    %774 = vmatpush2.msra.mxu0 0.0
    %775 = vmatprep.subr.mxu0 0.0
    %776 = vmatpush2.msra.mxu0 0.0
    %777 = vmatprep.subr.mxu0 0.0
    %778 = vmatpush2.msra.mxu0 0.0
    %779 = vmatprep.subr.mxu0 0.0
    %780 = vmatpush2.msra.mxu0 0.0
    %781 = vmatprep.subr.mxu0 0.0
    %782 = vmatpush2.msra.mxu0 0.0
    %783 = vmatprep.subr.mxu0 0.0
    %784 = vmatpush2.msra.mxu0 0.0
    %785 = vmatprep.subr.mxu0 0.0
    %786 = vmatpush2.msra.mxu0 0.0
    %787 = vmatprep.subr.mxu0 0.0
    %788 = vmatpush2.msra.mxu0 0.0
    %789 = vmatprep.subr.mxu0 0.0
    %790 = vmatpush2.msra.mxu0 0.0
    %791 = vmatprep.subr.mxu0 0.0
    %792 = vmatpush2.msra.mxu0 0.0
    %793 = vmatprep.mubr.f32.mxu0 0.0
    %v794 = vand.u32 %v628, 4294901760
    %795 = vmatmul.mubr.f32.gmra.mxu0 %v794
    %v796 = vpop.f32.mrf.mxu0
    %v797 = vadd.f32 %v706, %v796
    %v798 = vpop.f32.mrf.mxu0
    %799 = vdwg.mxu0
    %800 = vmatprep.subr.mxu0 0.0
    %801 = vmatpush1.msra.mxu0 0.0
    %802 = vmatprep.subr.mxu0 0.0
    %803 = vmatpush1.msra.mxu0 0.0
    %804 = vmatprep.subr.mxu0 0.0
    %805 = vmatpush1.msra.mxu0 0.0
    %806 = vmatprep.subr.mxu0 0.0
    %807 = vmatpush1.msra.mxu0 0.0
    %808 = vmatprep.subr.mxu0 0.0
    %809 = vmatpush1.msra.mxu0 0.0
    %810 = vmatprep.subr.mxu0 0.0
    %811 = vmatpush1.msra.mxu0 0.0
    %812 = vmatprep.subr.mxu0 0.0
    %813 = vmatpush1.msra.mxu0 0.0
    %814 = vmatprep.subr.mxu0 0.0
    %815 = vmatpush1.msra.mxu0 0.0
    %816 = vmatprep.subr.mxu0 0.0
    %817 = vmatpush1.msra.mxu0 0.0
    %818 = vmatprep.subr.mxu0 0.0
    %819 = vmatpush1.msra.mxu0 0.0
    %820 = vmatprep.subr.mxu0 0.0
    %821 = vmatpush1.msra.mxu0 0.0
    %822 = vmatprep.subr.mxu0 0.0
    %823 = vmatpush1.msra.mxu0 0.0
    %824 = vmatprep.subr.mxu0 0.0
    %v825 = vand.u32 %v609, 4294901760
    %v826 = vsub.f32 %v609, %v825
    %827 = vmatpush1.msra.mxu0 %v826
    %828 = vmatprep.subr.mxu0 0.0
    %v829 = vand.u32 %v608, 4294901760
    %v830 = vsub.f32 %v608, %v829
    %831 = vmatpush1.msra.mxu0 %v830
    %832 = vmatprep.subr.mxu0 0.0
    %v833 = vand.u32 %v607, 4294901760
    %v834 = vsub.f32 %v607, %v833
    %835 = vmatpush1.msra.mxu0 %v834
    %836 = vmatprep.subr.mxu0 0.0
    %v837 = vand.u32 %v606, 4294901760
    %v838 = vsub.f32 %v606, %v837
    %839 = vmatpush1.msra.mxu0 %v838
    %840 = vmatprep.subr.mxu0 0.0
    %841 = vmatpush2.msra.mxu0 0.0
    %842 = vmatprep.subr.mxu0 0.0
    %843 = vmatpush2.msra.mxu0 0.0
    %844 = vmatprep.subr.mxu0 0.0
    %845 = vmatpush2.msra.mxu0 0.0
    %846 = vmatprep.subr.mxu0 0.0
    %847 = vmatpush2.msra.mxu0 0.0
    %848 = vmatprep.subr.mxu0 0.0
    %849 = vmatpush2.msra.mxu0 0.0
    %850 = vmatprep.subr.mxu0 0.0
    %851 = vmatpush2.msra.mxu0 0.0
    %852 = vmatprep.subr.mxu0 0.0
    %853 = vmatpush2.msra.mxu0 0.0
    %854 = vmatprep.subr.mxu0 0.0
    %855 = vmatpush2.msra.mxu0 0.0
    %856 = vmatprep.subr.mxu0 0.0
    %857 = vmatpush2.msra.mxu0 0.0
    %858 = vmatprep.subr.mxu0 0.0
    %859 = vmatpush2.msra.mxu0 0.0
    %860 = vmatprep.subr.mxu0 0.0
    %861 = vmatpush2.msra.mxu0 0.0
    %862 = vmatprep.subr.mxu0 0.0
    %863 = vmatpush2.msra.mxu0 0.0
    %864 = vmatprep.subr.mxu0 0.0
    %865 = vmatpush2.msra.mxu0 0.0
    %866 = vmatprep.subr.mxu0 0.0
    %867 = vmatpush2.msra.mxu0 0.0
    %868 = vmatprep.subr.mxu0 0.0
    %869 = vmatpush2.msra.mxu0 0.0
    %870 = vmatprep.subr.mxu0 0.0
    %871 = vmatpush2.msra.mxu0 0.0
    %872 = vmatprep.mubr.f32.mxu0 0.0
    %v873 = vand.u32 %v628, 4294901760
    %v874 = vsub.f32 %v628, %v873
    %875 = vmatmul.mubr.f32.gmra.mxu0 %v874
    %v876 = vpop.f32.mrf.mxu0
    %v877 = vadd.f32 %v797, %v876
    %v878 = vpop.f32.mrf.mxu0
    %879 = vdwg.mxu0
    %880 = vmatprep.subr.mxu0 0.0
    %881 = vmatpush1.msra.mxu0 0.0
    %882 = vmatprep.subr.mxu0 0.0
    %883 = vmatpush1.msra.mxu0 0.0
    %884 = vmatprep.subr.mxu0 0.0
    %885 = vmatpush1.msra.mxu0 0.0
    %886 = vmatprep.subr.mxu0 0.0
    %887 = vmatpush1.msra.mxu0 0.0
    %888 = vmatprep.subr.mxu0 0.0
    %889 = vmatpush1.msra.mxu0 0.0
    %890 = vmatprep.subr.mxu0 0.0
    %891 = vmatpush1.msra.mxu0 0.0
    %892 = vmatprep.subr.mxu0 0.0
    %893 = vmatpush1.msra.mxu0 0.0
    %894 = vmatprep.subr.mxu0 0.0
    %895 = vmatpush1.msra.mxu0 0.0
    %896 = vmatprep.subr.mxu0 0.0
    %897 = vmatpush1.msra.mxu0 0.0
    %898 = vmatprep.subr.mxu0 0.0
    %899 = vmatpush1.msra.mxu0 0.0
    %900 = vmatprep.subr.mxu0 0.0
    %901 = vmatpush1.msra.mxu0 0.0
    %902 = vmatprep.subr.mxu0 0.0
    %903 = vmatpush1.msra.mxu0 0.0
    %904 = vmatprep.subr.mxu0 0.0
    %v905 = vand.u32 %v609, 4294901760
    %906 = vmatpush1.msra.mxu0 %v905
    %907 = vmatprep.subr.mxu0 0.0
    %v908 = vand.u32 %v608, 4294901760
    %909 = vmatpush1.msra.mxu0 %v908
    %910 = vmatprep.subr.mxu0 0.0
    %v911 = vand.u32 %v607, 4294901760
    %912 = vmatpush1.msra.mxu0 %v911
    %913 = vmatprep.subr.mxu0 0.0
    %v914 = vand.u32 %v606, 4294901760
    %915 = vmatpush1.msra.mxu0 %v914
    %916 = vmatprep.subr.mxu0 0.0
    %917 = vmatpush2.msra.mxu0 0.0
    %918 = vmatprep.subr.mxu0 0.0
    %919 = vmatpush2.msra.mxu0 0.0
    %920 = vmatprep.subr.mxu0 0.0
    %921 = vmatpush2.msra.mxu0 0.0
    %922 = vmatprep.subr.mxu0 0.0
    %923 = vmatpush2.msra.mxu0 0.0
    %924 = vmatprep.subr.mxu0 0.0
    %925 = vmatpush2.msra.mxu0 0.0
    %926 = vmatprep.subr.mxu0 0.0
    %927 = vmatpush2.msra.mxu0 0.0
    %928 = vmatprep.subr.mxu0 0.0
    %929 = vmatpush2.msra.mxu0 0.0
    %930 = vmatprep.subr.mxu0 0.0
    %931 = vmatpush2.msra.mxu0 0.0
    %932 = vmatprep.subr.mxu0 0.0
    %933 = vmatpush2.msra.mxu0 0.0
    %934 = vmatprep.subr.mxu0 0.0
    %935 = vmatpush2.msra.mxu0 0.0
    %936 = vmatprep.subr.mxu0 0.0
    %937 = vmatpush2.msra.mxu0 0.0
    %938 = vmatprep.subr.mxu0 0.0
    %939 = vmatpush2.msra.mxu0 0.0
    %940 = vmatprep.subr.mxu0 0.0
    %941 = vmatpush2.msra.mxu0 0.0
    %942 = vmatprep.subr.mxu0 0.0
    %943 = vmatpush2.msra.mxu0 0.0
    %944 = vmatprep.subr.mxu0 0.0
    %945 = vmatpush2.msra.mxu0 0.0
    %946 = vmatprep.subr.mxu0 0.0
    %947 = vmatpush2.msra.mxu0 0.0
    %948 = vmatprep.mubr.f32.mxu0 0.0
    %v949 = vand.u32 %v628, 4294901760
    %v950 = vsub.f32 %v628, %v949
    %v951 = vand.u32 %v950, 4294901760
    %952 = vmatmul.mubr.f32.gmra.mxu0 %v951
    %v953 = vpop.f32.mrf.mxu0
    %v954 = vadd.f32 %v877, %v953
    %v955 = vpop.f32.mrf.mxu0
    %956 = vdwg.mxu0
    %957 = vmatprep.subr.mxu0 0.0
    %958 = vmatpush1.msra.mxu0 0.0
    %959 = vmatprep.subr.mxu0 0.0
    %960 = vmatpush1.msra.mxu0 0.0
    %961 = vmatprep.subr.mxu0 0.0
    %962 = vmatpush1.msra.mxu0 0.0
    %963 = vmatprep.subr.mxu0 0.0
    %964 = vmatpush1.msra.mxu0 0.0
    %965 = vmatprep.subr.mxu0 0.0
    %966 = vmatpush1.msra.mxu0 0.0
    %967 = vmatprep.subr.mxu0 0.0
    %968 = vmatpush1.msra.mxu0 0.0
    %969 = vmatprep.subr.mxu0 0.0
    %970 = vmatpush1.msra.mxu0 0.0
    %971 = vmatprep.subr.mxu0 0.0
    %972 = vmatpush1.msra.mxu0 0.0
    %973 = vmatprep.subr.mxu0 0.0
    %974 = vmatpush1.msra.mxu0 0.0
    %975 = vmatprep.subr.mxu0 0.0
    %976 = vmatpush1.msra.mxu0 0.0
    %977 = vmatprep.subr.mxu0 0.0
    %978 = vmatpush1.msra.mxu0 0.0
    %979 = vmatprep.subr.mxu0 0.0
    %980 = vmatpush1.msra.mxu0 0.0
    %981 = vmatprep.subr.mxu0 0.0
    %v982 = vand.u32 %v609, 4294901760
    %v983 = vsub.f32 %v609, %v982
    %v984 = vand.u32 %v983, 4294901760
    %985 = vmatpush1.msra.mxu0 %v984
    %986 = vmatprep.subr.mxu0 0.0
    %v987 = vand.u32 %v608, 4294901760
    %v988 = vsub.f32 %v608, %v987
    %v989 = vand.u32 %v988, 4294901760
    %990 = vmatpush1.msra.mxu0 %v989
    %991 = vmatprep.subr.mxu0 0.0
    %v992 = vand.u32 %v607, 4294901760
    %v993 = vsub.f32 %v607, %v992
    %v994 = vand.u32 %v993, 4294901760
    %995 = vmatpush1.msra.mxu0 %v994
    %996 = vmatprep.subr.mxu0 0.0
    %v997 = vand.u32 %v606, 4294901760
    %v998 = vsub.f32 %v606, %v997
    %v999 = vand.u32 %v998, 4294901760
    %1000 = vmatpush1.msra.mxu0 %v999
    %1001 = vmatprep.subr.mxu0 0.0
    %1002 = vmatpush2.msra.mxu0 0.0
    %1003 = vmatprep.subr.mxu0 0.0
    %1004 = vmatpush2.msra.mxu0 0.0
    %1005 = vmatprep.subr.mxu0 0.0
    %1006 = vmatpush2.msra.mxu0 0.0
    %1007 = vmatprep.subr.mxu0 0.0
    %1008 = vmatpush2.msra.mxu0 0.0
    %1009 = vmatprep.subr.mxu0 0.0
    %1010 = vmatpush2.msra.mxu0 0.0
    %1011 = vmatprep.subr.mxu0 0.0
    %1012 = vmatpush2.msra.mxu0 0.0
    %1013 = vmatprep.subr.mxu0 0.0
    %1014 = vmatpush2.msra.mxu0 0.0
    %1015 = vmatprep.subr.mxu0 0.0
    %1016 = vmatpush2.msra.mxu0 0.0
    %1017 = vmatprep.subr.mxu0 0.0
    %1018 = vmatpush2.msra.mxu0 0.0
    %1019 = vmatprep.subr.mxu0 0.0
    %1020 = vmatpush2.msra.mxu0 0.0
    %1021 = vmatprep.subr.mxu0 0.0
    %1022 = vmatpush2.msra.mxu0 0.0
    %1023 = vmatprep.subr.mxu0 0.0
    %1024 = vmatpush2.msra.mxu0 0.0
    %1025 = vmatprep.subr.mxu0 0.0
    %1026 = vmatpush2.msra.mxu0 0.0
    %1027 = vmatprep.subr.mxu0 0.0
    %1028 = vmatpush2.msra.mxu0 0.0
    %1029 = vmatprep.subr.mxu0 0.0
    %1030 = vmatpush2.msra.mxu0 0.0
    %1031 = vmatprep.subr.mxu0 0.0
    %1032 = vmatpush2.msra.mxu0 0.0
    %1033 = vmatprep.mubr.f32.mxu0 0.0
    %v1034 = vand.u32 %v628, 4294901760
    %1035 = vmatmul.mubr.f32.gmra.mxu0 %v1034
    %v1036 = vpop.f32.mrf.mxu0
    %v1037 = vadd.f32 %v954, %v1036
    %v1038 = vpop.f32.mrf.mxu0
    %1039 = vdwg.mxu0
    %1040 = vmatprep.subr.mxu0 0.0
    %1041 = vmatpush1.msra.mxu0 0.0
    %1042 = vmatprep.subr.mxu0 0.0
    %1043 = vmatpush1.msra.mxu0 0.0
    %1044 = vmatprep.subr.mxu0 0.0
    %1045 = vmatpush1.msra.mxu0 0.0
    %1046 = vmatprep.subr.mxu0 0.0
    %1047 = vmatpush1.msra.mxu0 0.0
    %1048 = vmatprep.subr.mxu0 0.0
    %1049 = vmatpush1.msra.mxu0 0.0
    %1050 = vmatprep.subr.mxu0 0.0
    %1051 = vmatpush1.msra.mxu0 0.0
    %1052 = vmatprep.subr.mxu0 0.0
    %1053 = vmatpush1.msra.mxu0 0.0
    %1054 = vmatprep.subr.mxu0 0.0
    %1055 = vmatpush1.msra.mxu0 0.0
    %1056 = vmatprep.subr.mxu0 0.0
    %1057 = vmatpush1.msra.mxu0 0.0
    %1058 = vmatprep.subr.mxu0 0.0
    %1059 = vmatpush1.msra.mxu0 0.0
    %1060 = vmatprep.subr.mxu0 0.0
    %1061 = vmatpush1.msra.mxu0 0.0
    %1062 = vmatprep.subr.mxu0 0.0
    %1063 = vmatpush1.msra.mxu0 0.0
    %1064 = vmatprep.subr.mxu0 0.0
    %v1065 = vand.u32 %v609, 4294901760
    %1066 = vmatpush1.msra.mxu0 %v1065
    %1067 = vmatprep.subr.mxu0 0.0
    %v1068 = vand.u32 %v608, 4294901760
    %1069 = vmatpush1.msra.mxu0 %v1068
    %1070 = vmatprep.subr.mxu0 0.0
    %v1071 = vand.u32 %v607, 4294901760
    %1072 = vmatpush1.msra.mxu0 %v1071
    %1073 = vmatprep.subr.mxu0 0.0
    %v1074 = vand.u32 %v606, 4294901760
    %1075 = vmatpush1.msra.mxu0 %v1074
    %1076 = vmatprep.subr.mxu0 0.0
    %1077 = vmatpush2.msra.mxu0 0.0
    %1078 = vmatprep.subr.mxu0 0.0
    %1079 = vmatpush2.msra.mxu0 0.0
    %1080 = vmatprep.subr.mxu0 0.0
    %1081 = vmatpush2.msra.mxu0 0.0
    %1082 = vmatprep.subr.mxu0 0.0
    %1083 = vmatpush2.msra.mxu0 0.0
    %1084 = vmatprep.subr.mxu0 0.0
    %1085 = vmatpush2.msra.mxu0 0.0
    %1086 = vmatprep.subr.mxu0 0.0
    %1087 = vmatpush2.msra.mxu0 0.0
    %1088 = vmatprep.subr.mxu0 0.0
    %1089 = vmatpush2.msra.mxu0 0.0
    %1090 = vmatprep.subr.mxu0 0.0
    %1091 = vmatpush2.msra.mxu0 0.0
    %1092 = vmatprep.subr.mxu0 0.0
    %1093 = vmatpush2.msra.mxu0 0.0
    %1094 = vmatprep.subr.mxu0 0.0
    %1095 = vmatpush2.msra.mxu0 0.0
    %1096 = vmatprep.subr.mxu0 0.0
    %1097 = vmatpush2.msra.mxu0 0.0
    %1098 = vmatprep.subr.mxu0 0.0
    %1099 = vmatpush2.msra.mxu0 0.0
    %1100 = vmatprep.subr.mxu0 0.0
    %1101 = vmatpush2.msra.mxu0 0.0
    %1102 = vmatprep.subr.mxu0 0.0
    %1103 = vmatpush2.msra.mxu0 0.0
    %1104 = vmatprep.subr.mxu0 0.0
    %1105 = vmatpush2.msra.mxu0 0.0
    %1106 = vmatprep.subr.mxu0 0.0
    %1107 = vmatpush2.msra.mxu0 0.0
    %1108 = vmatprep.mubr.f32.mxu0 0.0
    %v1109 = vand.u32 %v628, 4294901760
    %1110 = vmatmul.mubr.f32.gmra.mxu0 %v1109
    %v1111 = vpop.f32.mrf.mxu0
    %v1112 = vadd.f32 %v1037, %v1111
    %v1113 = vpop.f32.mrf.mxu0
    %1114 = vdwg.mxu0
    %v1116 = vrot.slane %v1112, 6
    %v1118 = vadd.f32 %v596, %v1116
    %v1119 = vtanh.pop %v1118
    %v1120 = vadd.f32 %v1119, 1.0
    %v1121 = vmul.f32 %v1120, 0.5
    %v1123 = vrot.slane %v617, 6
    %1124 = vrot.lane.b32.xlu0 %v1123, 32
    %v1125 = vpop.permute.xlu0 %1124
    %v1127 = vmul.f32 %v1121, %v1125
    %1129 = vrot.lane.b32.xlu0 %v1119, 64
    %v1130 = vpop.permute.xlu0 %1129
    %v1132 = vmul.f32 %v1121, %v1130
    %1134 = vrot.lane.b32.xlu0 %v1132, 32
    %v1135 = vpop.permute.xlu0 %1134
    %v1137 = vadd.f32 %v1127, %v1135
    %v1138 = vtanh.pop %v1137
    %1140 = vrot.lane.b32.xlu0 %v1138, 64
    %v1141 = vpop.permute.xlu0 %1140
    %v1143 = vmul.f32 %v1121, %v1141
    %v1145 = vrot.slane %v1143, 2
    %1146 = vrot.lane.b32.xlu0 %v1145, 32
    %v1147 = vpop.permute.xlu0 %1146
    %v1148 = vsel %vm627, %v1147, 0
    %1150 = vmatprep.subr.mxu0 0.0
    %1151 = vmatpush1.msra.mxu0 0.0
    %1152 = vmatprep.subr.mxu0 0.0
    %1153 = vmatpush1.msra.mxu0 0.0
    %1154 = vmatprep.subr.mxu0 0.0
    %1155 = vmatpush1.msra.mxu0 0.0
    %1156 = vmatprep.subr.mxu0 0.0
    %1157 = vmatpush1.msra.mxu0 0.0
    %1158 = vmatprep.subr.mxu0 0.0
    %1159 = vmatpush1.msra.mxu0 0.0
    %1160 = vmatprep.subr.mxu0 0.0
    %1161 = vmatpush1.msra.mxu0 0.0
    %1162 = vmatprep.subr.mxu0 0.0
    %1163 = vmatpush1.msra.mxu0 0.0
    %1164 = vmatprep.subr.mxu0 0.0
    %1165 = vmatpush1.msra.mxu0 0.0
    %1166 = vmatprep.subr.mxu0 0.0
    %1167 = vmatpush1.msra.mxu0 0.0
    %1168 = vmatprep.subr.mxu0 0.0
    %1169 = vmatpush1.msra.mxu0 0.0
    %1170 = vmatprep.subr.mxu0 0.0
    %1171 = vmatpush1.msra.mxu0 0.0
    %1172 = vmatprep.subr.mxu0 0.0
    %1173 = vmatpush1.msra.mxu0 0.0
    %1174 = vmatprep.subr.mxu0 0.0
    %v1175 = vand.u32 %v609, 4294901760
    %1176 = vmatpush1.msra.mxu0 %v1175
    %1177 = vmatprep.subr.mxu0 0.0
    %v1178 = vand.u32 %v608, 4294901760
    %1179 = vmatpush1.msra.mxu0 %v1178
    %1180 = vmatprep.subr.mxu0 0.0
    %v1181 = vand.u32 %v607, 4294901760
    %1182 = vmatpush1.msra.mxu0 %v1181
    %1183 = vmatprep.subr.mxu0 0.0
    %v1184 = vand.u32 %v606, 4294901760
    %1185 = vmatpush1.msra.mxu0 %v1184
    %1186 = vmatprep.subr.mxu0 0.0
    %1187 = vmatpush2.msra.mxu0 0.0
    %1188 = vmatprep.subr.mxu0 0.0
    %1189 = vmatpush2.msra.mxu0 0.0
    %1190 = vmatprep.subr.mxu0 0.0
    %1191 = vmatpush2.msra.mxu0 0.0
    %1192 = vmatprep.subr.mxu0 0.0
    %1193 = vmatpush2.msra.mxu0 0.0
    %1194 = vmatprep.subr.mxu0 0.0
    %1195 = vmatpush2.msra.mxu0 0.0
    %1196 = vmatprep.subr.mxu0 0.0
    %1197 = vmatpush2.msra.mxu0 0.0
    %1198 = vmatprep.subr.mxu0 0.0
    %1199 = vmatpush2.msra.mxu0 0.0
    %1200 = vmatprep.subr.mxu0 0.0
    %1201 = vmatpush2.msra.mxu0 0.0
    %1202 = vmatprep.subr.mxu0 0.0
    %1203 = vmatpush2.msra.mxu0 0.0
    %1204 = vmatprep.subr.mxu0 0.0
    %1205 = vmatpush2.msra.mxu0 0.0
    %1206 = vmatprep.subr.mxu0 0.0
    %1207 = vmatpush2.msra.mxu0 0.0
    %1208 = vmatprep.subr.mxu0 0.0
    %1209 = vmatpush2.msra.mxu0 0.0
    %1210 = vmatprep.subr.mxu0 0.0
    %1211 = vmatpush2.msra.mxu0 0.0
    %1212 = vmatprep.subr.mxu0 0.0
    %1213 = vmatpush2.msra.mxu0 0.0
    %1214 = vmatprep.subr.mxu0 0.0
    %1215 = vmatpush2.msra.mxu0 0.0
    %1216 = vmatprep.subr.mxu0 0.0
    %1217 = vmatpush2.msra.mxu0 0.0
    %1218 = vmatprep.mubr.f32.mxu0 0.0
    %v1219 = vand.u32 %v1148, 4294901760
    %v1220 = vsub.f32 %v1148, %v1219
    %v1221 = vand.u32 %v1220, 4294901760
    %v1222 = vsub.f32 %v1220, %v1221
    %v1223 = vand.u32 %v1222, 4294901760
    %1224 = vmatmul.mubr.f32.gmra.mxu0 %v1223
    %v1225 = vpop.f32.mrf.mxu0
    %v1226 = vadd.f32 0.0, %v1225
    %v1227 = vpop.f32.mrf.mxu0
    %1228 = vdwg.mxu0
    %1229 = vmatprep.subr.mxu0 0.0
    %1230 = vmatpush1.msra.mxu0 0.0
    %1231 = vmatprep.subr.mxu0 0.0
    %1232 = vmatpush1.msra.mxu0 0.0
    %1233 = vmatprep.subr.mxu0 0.0
    %1234 = vmatpush1.msra.mxu0 0.0
    %1235 = vmatprep.subr.mxu0 0.0
    %1236 = vmatpush1.msra.mxu0 0.0
    %1237 = vmatprep.subr.mxu0 0.0
    %1238 = vmatpush1.msra.mxu0 0.0
    %1239 = vmatprep.subr.mxu0 0.0
    %1240 = vmatpush1.msra.mxu0 0.0
    %1241 = vmatprep.subr.mxu0 0.0
    %1242 = vmatpush1.msra.mxu0 0.0
    %1243 = vmatprep.subr.mxu0 0.0
    %1244 = vmatpush1.msra.mxu0 0.0
    %1245 = vmatprep.subr.mxu0 0.0
    %1246 = vmatpush1.msra.mxu0 0.0
    %1247 = vmatprep.subr.mxu0 0.0
    %1248 = vmatpush1.msra.mxu0 0.0
    %1249 = vmatprep.subr.mxu0 0.0
    %1250 = vmatpush1.msra.mxu0 0.0
    %1251 = vmatprep.subr.mxu0 0.0
    %1252 = vmatpush1.msra.mxu0 0.0
    %1253 = vmatprep.subr.mxu0 0.0
    %v1254 = vand.u32 %v609, 4294901760
    %v1255 = vsub.f32 %v609, %v1254
    %v1256 = vand.u32 %v1255, 4294901760
    %v1257 = vsub.f32 %v1255, %v1256
    %v1258 = vand.u32 %v1257, 4294901760
    %1259 = vmatpush1.msra.mxu0 %v1258
    %1260 = vmatprep.subr.mxu0 0.0
    %v1261 = vand.u32 %v608, 4294901760
    %v1262 = vsub.f32 %v608, %v1261
    %v1263 = vand.u32 %v1262, 4294901760
    %v1264 = vsub.f32 %v1262, %v1263
    %v1265 = vand.u32 %v1264, 4294901760
    %1266 = vmatpush1.msra.mxu0 %v1265
    %1267 = vmatprep.subr.mxu0 0.0
    %v1268 = vand.u32 %v607, 4294901760
    %v1269 = vsub.f32 %v607, %v1268
    %v1270 = vand.u32 %v1269, 4294901760
    %v1271 = vsub.f32 %v1269, %v1270
    %v1272 = vand.u32 %v1271, 4294901760
    %1273 = vmatpush1.msra.mxu0 %v1272
    %1274 = vmatprep.subr.mxu0 0.0
    %v1275 = vand.u32 %v606, 4294901760
    %v1276 = vsub.f32 %v606, %v1275
    %v1277 = vand.u32 %v1276, 4294901760
    %v1278 = vsub.f32 %v1276, %v1277
    %v1279 = vand.u32 %v1278, 4294901760
    %1280 = vmatpush1.msra.mxu0 %v1279
    %1281 = vmatprep.subr.mxu0 0.0
    %1282 = vmatpush2.msra.mxu0 0.0
    %1283 = vmatprep.subr.mxu0 0.0
    %1284 = vmatpush2.msra.mxu0 0.0
    %1285 = vmatprep.subr.mxu0 0.0
    %1286 = vmatpush2.msra.mxu0 0.0
    %1287 = vmatprep.subr.mxu0 0.0
    %1288 = vmatpush2.msra.mxu0 0.0
    %1289 = vmatprep.subr.mxu0 0.0
    %1290 = vmatpush2.msra.mxu0 0.0
    %1291 = vmatprep.subr.mxu0 0.0
    %1292 = vmatpush2.msra.mxu0 0.0
    %1293 = vmatprep.subr.mxu0 0.0
    %1294 = vmatpush2.msra.mxu0 0.0
    %1295 = vmatprep.subr.mxu0 0.0
    %1296 = vmatpush2.msra.mxu0 0.0
    %1297 = vmatprep.subr.mxu0 0.0
    %1298 = vmatpush2.msra.mxu0 0.0
    %1299 = vmatprep.subr.mxu0 0.0
    %1300 = vmatpush2.msra.mxu0 0.0
    %1301 = vmatprep.subr.mxu0 0.0
    %1302 = vmatpush2.msra.mxu0 0.0
    %1303 = vmatprep.subr.mxu0 0.0
    %1304 = vmatpush2.msra.mxu0 0.0
    %1305 = vmatprep.subr.mxu0 0.0
    %1306 = vmatpush2.msra.mxu0 0.0
    %1307 = vmatprep.subr.mxu0 0.0
    %1308 = vmatpush2.msra.mxu0 0.0
    %1309 = vmatprep.subr.mxu0 0.0
    %1310 = vmatpush2.msra.mxu0 0.0
    %1311 = vmatprep.subr.mxu0 0.0
    %1312 = vmatpush2.msra.mxu0 0.0
    %1313 = vmatprep.mubr.f32.mxu0 0.0
    %v1314 = vand.u32 %v1148, 4294901760
    %1315 = vmatmul.mubr.f32.gmra.mxu0 %v1314
    %v1316 = vpop.f32.mrf.mxu0
    %v1317 = vadd.f32 %v1226, %v1316
    %v1318 = vpop.f32.mrf.mxu0
    %1319 = vdwg.mxu0
    %1320 = vmatprep.subr.mxu0 0.0
    %1321 = vmatpush1.msra.mxu0 0.0
    %1322 = vmatprep.subr.mxu0 0.0
    %1323 = vmatpush1.msra.mxu0 0.0
    %1324 = vmatprep.subr.mxu0 0.0
    %1325 = vmatpush1.msra.mxu0 0.0
    %1326 = vmatprep.subr.mxu0 0.0
    %1327 = vmatpush1.msra.mxu0 0.0
    %1328 = vmatprep.subr.mxu0 0.0
    %1329 = vmatpush1.msra.mxu0 0.0
    %1330 = vmatprep.subr.mxu0 0.0
    %1331 = vmatpush1.msra.mxu0 0.0
    %1332 = vmatprep.subr.mxu0 0.0
    %1333 = vmatpush1.msra.mxu0 0.0
    %1334 = vmatprep.subr.mxu0 0.0
    %1335 = vmatpush1.msra.mxu0 0.0
    %1336 = vmatprep.subr.mxu0 0.0
    %1337 = vmatpush1.msra.mxu0 0.0
    %1338 = vmatprep.subr.mxu0 0.0
    %1339 = vmatpush1.msra.mxu0 0.0
    %1340 = vmatprep.subr.mxu0 0.0
    %1341 = vmatpush1.msra.mxu0 0.0
    %1342 = vmatprep.subr.mxu0 0.0
    %1343 = vmatpush1.msra.mxu0 0.0
    %1344 = vmatprep.subr.mxu0 0.0
    %v1345 = vand.u32 %v609, 4294901760
    %v1346 = vsub.f32 %v609, %v1345
    %1347 = vmatpush1.msra.mxu0 %v1346
    %1348 = vmatprep.subr.mxu0 0.0
    %v1349 = vand.u32 %v608, 4294901760
    %v1350 = vsub.f32 %v608, %v1349
    %1351 = vmatpush1.msra.mxu0 %v1350
    %1352 = vmatprep.subr.mxu0 0.0
    %v1353 = vand.u32 %v607, 4294901760
    %v1354 = vsub.f32 %v607, %v1353
    %1355 = vmatpush1.msra.mxu0 %v1354
    %1356 = vmatprep.subr.mxu0 0.0
    %v1357 = vand.u32 %v606, 4294901760
    %v1358 = vsub.f32 %v606, %v1357
    %1359 = vmatpush1.msra.mxu0 %v1358
    %1360 = vmatprep.subr.mxu0 0.0
    %1361 = vmatpush2.msra.mxu0 0.0
    %1362 = vmatprep.subr.mxu0 0.0
    %1363 = vmatpush2.msra.mxu0 0.0
    %1364 = vmatprep.subr.mxu0 0.0
    %1365 = vmatpush2.msra.mxu0 0.0
    %1366 = vmatprep.subr.mxu0 0.0
    %1367 = vmatpush2.msra.mxu0 0.0
    %1368 = vmatprep.subr.mxu0 0.0
    %1369 = vmatpush2.msra.mxu0 0.0
    %1370 = vmatprep.subr.mxu0 0.0
    %1371 = vmatpush2.msra.mxu0 0.0
    %1372 = vmatprep.subr.mxu0 0.0
    %1373 = vmatpush2.msra.mxu0 0.0
    %1374 = vmatprep.subr.mxu0 0.0
    %1375 = vmatpush2.msra.mxu0 0.0
    %1376 = vmatprep.subr.mxu0 0.0
    %1377 = vmatpush2.msra.mxu0 0.0
    %1378 = vmatprep.subr.mxu0 0.0
    %1379 = vmatpush2.msra.mxu0 0.0
    %1380 = vmatprep.subr.mxu0 0.0
    %1381 = vmatpush2.msra.mxu0 0.0
    %1382 = vmatprep.subr.mxu0 0.0
    %1383 = vmatpush2.msra.mxu0 0.0
    %1384 = vmatprep.subr.mxu0 0.0
    %1385 = vmatpush2.msra.mxu0 0.0
    %1386 = vmatprep.subr.mxu0 0.0
    %1387 = vmatpush2.msra.mxu0 0.0
    %1388 = vmatprep.subr.mxu0 0.0
    %1389 = vmatpush2.msra.mxu0 0.0
    %1390 = vmatprep.subr.mxu0 0.0
    %1391 = vmatpush2.msra.mxu0 0.0
    %1392 = vmatprep.mubr.f32.mxu0 0.0
    %v1393 = vand.u32 %v1148, 4294901760
    %v1394 = vsub.f32 %v1148, %v1393
    %1395 = vmatmul.mubr.f32.gmra.mxu0 %v1394
    %v1396 = vpop.f32.mrf.mxu0
    %v1397 = vadd.f32 %v1317, %v1396
    %v1398 = vpop.f32.mrf.mxu0
    %1399 = vdwg.mxu0
    %1400 = vmatprep.subr.mxu0 0.0
    %1401 = vmatpush1.msra.mxu0 0.0
    %1402 = vmatprep.subr.mxu0 0.0
    %1403 = vmatpush1.msra.mxu0 0.0
    %1404 = vmatprep.subr.mxu0 0.0
    %1405 = vmatpush1.msra.mxu0 0.0
    %1406 = vmatprep.subr.mxu0 0.0
    %1407 = vmatpush1.msra.mxu0 0.0
    %1408 = vmatprep.subr.mxu0 0.0
    %1409 = vmatpush1.msra.mxu0 0.0
    %1410 = vmatprep.subr.mxu0 0.0
    %1411 = vmatpush1.msra.mxu0 0.0
    %1412 = vmatprep.subr.mxu0 0.0
    %1413 = vmatpush1.msra.mxu0 0.0
    %1414 = vmatprep.subr.mxu0 0.0
    %1415 = vmatpush1.msra.mxu0 0.0
    %1416 = vmatprep.subr.mxu0 0.0
    %1417 = vmatpush1.msra.mxu0 0.0
    %1418 = vmatprep.subr.mxu0 0.0
    %1419 = vmatpush1.msra.mxu0 0.0
    %1420 = vmatprep.subr.mxu0 0.0
    %1421 = vmatpush1.msra.mxu0 0.0
    %1422 = vmatprep.subr.mxu0 0.0
    %1423 = vmatpush1.msra.mxu0 0.0
    %1424 = vmatprep.subr.mxu0 0.0
    %v1425 = vand.u32 %v609, 4294901760
    %1426 = vmatpush1.msra.mxu0 %v1425
    %1427 = vmatprep.subr.mxu0 0.0
    %v1428 = vand.u32 %v608, 4294901760
    %1429 = vmatpush1.msra.mxu0 %v1428
    %1430 = vmatprep.subr.mxu0 0.0
    %v1431 = vand.u32 %v607, 4294901760
    %1432 = vmatpush1.msra.mxu0 %v1431
    %1433 = vmatprep.subr.mxu0 0.0
    %v1434 = vand.u32 %v606, 4294901760
    %1435 = vmatpush1.msra.mxu0 %v1434
    %1436 = vmatprep.subr.mxu0 0.0
    %1437 = vmatpush2.msra.mxu0 0.0
    %1438 = vmatprep.subr.mxu0 0.0
    %1439 = vmatpush2.msra.mxu0 0.0
    %1440 = vmatprep.subr.mxu0 0.0
    %1441 = vmatpush2.msra.mxu0 0.0
    %1442 = vmatprep.subr.mxu0 0.0
    %1443 = vmatpush2.msra.mxu0 0.0
    %1444 = vmatprep.subr.mxu0 0.0
    %1445 = vmatpush2.msra.mxu0 0.0
    %1446 = vmatprep.subr.mxu0 0.0
    %1447 = vmatpush2.msra.mxu0 0.0
    %1448 = vmatprep.subr.mxu0 0.0
    %1449 = vmatpush2.msra.mxu0 0.0
    %1450 = vmatprep.subr.mxu0 0.0
    %1451 = vmatpush2.msra.mxu0 0.0
    %1452 = vmatprep.subr.mxu0 0.0
    %1453 = vmatpush2.msra.mxu0 0.0
    %1454 = vmatprep.subr.mxu0 0.0
    %1455 = vmatpush2.msra.mxu0 0.0
    %1456 = vmatprep.subr.mxu0 0.0
    %1457 = vmatpush2.msra.mxu0 0.0
    %1458 = vmatprep.subr.mxu0 0.0
    %1459 = vmatpush2.msra.mxu0 0.0
    %1460 = vmatprep.subr.mxu0 0.0
    %1461 = vmatpush2.msra.mxu0 0.0
    %1462 = vmatprep.subr.mxu0 0.0
    %1463 = vmatpush2.msra.mxu0 0.0
    %1464 = vmatprep.subr.mxu0 0.0
    %1465 = vmatpush2.msra.mxu0 0.0
    %1466 = vmatprep.subr.mxu0 0.0
    %1467 = vmatpush2.msra.mxu0 0.0
    %1468 = vmatprep.mubr.f32.mxu0 0.0
    %v1469 = vand.u32 %v1148, 4294901760
    %v1470 = vsub.f32 %v1148, %v1469
    %v1471 = vand.u32 %v1470, 4294901760
    %1472 = vmatmul.mubr.f32.gmra.mxu0 %v1471
    %v1473 = vpop.f32.mrf.mxu0
    %v1474 = vadd.f32 %v1397, %v1473
    %v1475 = vpop.f32.mrf.mxu0
    %1476 = vdwg.mxu0
    %1477 = vmatprep.subr.mxu0 0.0
    %1478 = vmatpush1.msra.mxu0 0.0
    %1479 = vmatprep.subr.mxu0 0.0
    %1480 = vmatpush1.msra.mxu0 0.0
    %1481 = vmatprep.subr.mxu0 0.0
    %1482 = vmatpush1.msra.mxu0 0.0
    %1483 = vmatprep.subr.mxu0 0.0
    %1484 = vmatpush1.msra.mxu0 0.0
    %1485 = vmatprep.subr.mxu0 0.0
    %1486 = vmatpush1.msra.mxu0 0.0
    %1487 = vmatprep.subr.mxu0 0.0
    %1488 = vmatpush1.msra.mxu0 0.0
    %1489 = vmatprep.subr.mxu0 0.0
    %1490 = vmatpush1.msra.mxu0 0.0
    %1491 = vmatprep.subr.mxu0 0.0
    %1492 = vmatpush1.msra.mxu0 0.0
    %1493 = vmatprep.subr.mxu0 0.0
    %1494 = vmatpush1.msra.mxu0 0.0
    %1495 = vmatprep.subr.mxu0 0.0
    %1496 = vmatpush1.msra.mxu0 0.0
    %1497 = vmatprep.subr.mxu0 0.0
    %1498 = vmatpush1.msra.mxu0 0.0
    %1499 = vmatprep.subr.mxu0 0.0
    %1500 = vmatpush1.msra.mxu0 0.0
    %1501 = vmatprep.subr.mxu0 0.0
    %v1502 = vand.u32 %v609, 4294901760
    %v1503 = vsub.f32 %v609, %v1502
    %v1504 = vand.u32 %v1503, 4294901760
    %1505 = vmatpush1.msra.mxu0 %v1504
    %1506 = vmatprep.subr.mxu0 0.0
    %v1507 = vand.u32 %v608, 4294901760
    %v1508 = vsub.f32 %v608, %v1507
    %v1509 = vand.u32 %v1508, 4294901760
    %1510 = vmatpush1.msra.mxu0 %v1509
    %1511 = vmatprep.subr.mxu0 0.0
    %v1512 = vand.u32 %v607, 4294901760
    %v1513 = vsub.f32 %v607, %v1512
    %v1514 = vand.u32 %v1513, 4294901760
    %1515 = vmatpush1.msra.mxu0 %v1514
    %1516 = vmatprep.subr.mxu0 0.0
    %v1517 = vand.u32 %v606, 4294901760
    %v1518 = vsub.f32 %v606, %v1517
    %v1519 = vand.u32 %v1518, 4294901760
    %1520 = vmatpush1.msra.mxu0 %v1519
    %1521 = vmatprep.subr.mxu0 0.0
    %1522 = vmatpush2.msra.mxu0 0.0
    %1523 = vmatprep.subr.mxu0 0.0
    %1524 = vmatpush2.msra.mxu0 0.0
    %1525 = vmatprep.subr.mxu0 0.0
    %1526 = vmatpush2.msra.mxu0 0.0
    %1527 = vmatprep.subr.mxu0 0.0
    %1528 = vmatpush2.msra.mxu0 0.0
    %1529 = vmatprep.subr.mxu0 0.0
    %1530 = vmatpush2.msra.mxu0 0.0
    %1531 = vmatprep.subr.mxu0 0.0
    %1532 = vmatpush2.msra.mxu0 0.0
    %1533 = vmatprep.subr.mxu0 0.0
    %1534 = vmatpush2.msra.mxu0 0.0
    %1535 = vmatprep.subr.mxu0 0.0
    %1536 = vmatpush2.msra.mxu0 0.0
    %1537 = vmatprep.subr.mxu0 0.0
    %1538 = vmatpush2.msra.mxu0 0.0
    %1539 = vmatprep.subr.mxu0 0.0
    %1540 = vmatpush2.msra.mxu0 0.0
    %1541 = vmatprep.subr.mxu0 0.0
    %1542 = vmatpush2.msra.mxu0 0.0
    %1543 = vmatprep.subr.mxu0 0.0
    %1544 = vmatpush2.msra.mxu0 0.0
    %1545 = vmatprep.subr.mxu0 0.0
    %1546 = vmatpush2.msra.mxu0 0.0
    %1547 = vmatprep.subr.mxu0 0.0
    %1548 = vmatpush2.msra.mxu0 0.0
    %1549 = vmatprep.subr.mxu0 0.0
    %1550 = vmatpush2.msra.mxu0 0.0
    %1551 = vmatprep.subr.mxu0 0.0
    %1552 = vmatpush2.msra.mxu0 0.0
    %1553 = vmatprep.mubr.f32.mxu0 0.0
    %v1554 = vand.u32 %v1148, 4294901760
    %1555 = vmatmul.mubr.f32.gmra.mxu0 %v1554
    %v1556 = vpop.f32.mrf.mxu0
    %v1557 = vadd.f32 %v1474, %v1556
    %v1558 = vpop.f32.mrf.mxu0
    %1559 = vdwg.mxu0
    %1560 = vmatprep.subr.mxu0 0.0
    %1561 = vmatpush1.msra.mxu0 0.0
    %1562 = vmatprep.subr.mxu0 0.0
    %1563 = vmatpush1.msra.mxu0 0.0
    %1564 = vmatprep.subr.mxu0 0.0
    %1565 = vmatpush1.msra.mxu0 0.0
    %1566 = vmatprep.subr.mxu0 0.0
    %1567 = vmatpush1.msra.mxu0 0.0
    %1568 = vmatprep.subr.mxu0 0.0
    %1569 = vmatpush1.msra.mxu0 0.0
    %1570 = vmatprep.subr.mxu0 0.0
    %1571 = vmatpush1.msra.mxu0 0.0
    %1572 = vmatprep.subr.mxu0 0.0
    %1573 = vmatpush1.msra.mxu0 0.0
    %1574 = vmatprep.subr.mxu0 0.0
    %1575 = vmatpush1.msra.mxu0 0.0
    %1576 = vmatprep.subr.mxu0 0.0
    %1577 = vmatpush1.msra.mxu0 0.0
    %1578 = vmatprep.subr.mxu0 0.0
    %1579 = vmatpush1.msra.mxu0 0.0
    %1580 = vmatprep.subr.mxu0 0.0
    %1581 = vmatpush1.msra.mxu0 0.0
    %1582 = vmatprep.subr.mxu0 0.0
    %1583 = vmatpush1.msra.mxu0 0.0
    %1584 = vmatprep.subr.mxu0 0.0
    %v1585 = vand.u32 %v609, 4294901760
    %1586 = vmatpush1.msra.mxu0 %v1585
    %1587 = vmatprep.subr.mxu0 0.0
    %v1588 = vand.u32 %v608, 4294901760
    %1589 = vmatpush1.msra.mxu0 %v1588
    %1590 = vmatprep.subr.mxu0 0.0
    %v1591 = vand.u32 %v607, 4294901760
    %1592 = vmatpush1.msra.mxu0 %v1591
    %1593 = vmatprep.subr.mxu0 0.0
    %v1594 = vand.u32 %v606, 4294901760
    %1595 = vmatpush1.msra.mxu0 %v1594
    %1596 = vmatprep.subr.mxu0 0.0
    %1597 = vmatpush2.msra.mxu0 0.0
    %1598 = vmatprep.subr.mxu0 0.0
    %1599 = vmatpush2.msra.mxu0 0.0
    %1600 = vmatprep.subr.mxu0 0.0
    %1601 = vmatpush2.msra.mxu0 0.0
    %1602 = vmatprep.subr.mxu0 0.0
    %1603 = vmatpush2.msra.mxu0 0.0
    %1604 = vmatprep.subr.mxu0 0.0
    %1605 = vmatpush2.msra.mxu0 0.0
    %1606 = vmatprep.subr.mxu0 0.0
    %1607 = vmatpush2.msra.mxu0 0.0
    %1608 = vmatprep.subr.mxu0 0.0
    %1609 = vmatpush2.msra.mxu0 0.0
    %1610 = vmatprep.subr.mxu0 0.0
    %1611 = vmatpush2.msra.mxu0 0.0
    %1612 = vmatprep.subr.mxu0 0.0
    %1613 = vmatpush2.msra.mxu0 0.0
    %1614 = vmatprep.subr.mxu0 0.0
    %1615 = vmatpush2.msra.mxu0 0.0
    %1616 = vmatprep.subr.mxu0 0.0
    %1617 = vmatpush2.msra.mxu0 0.0
    %1618 = vmatprep.subr.mxu0 0.0
    %1619 = vmatpush2.msra.mxu0 0.0
    %1620 = vmatprep.subr.mxu0 0.0
    %1621 = vmatpush2.msra.mxu0 0.0
    %1622 = vmatprep.subr.mxu0 0.0
    %1623 = vmatpush2.msra.mxu0 0.0
    %1624 = vmatprep.subr.mxu0 0.0
    %1625 = vmatpush2.msra.mxu0 0.0
    %1626 = vmatprep.subr.mxu0 0.0
    %1627 = vmatpush2.msra.mxu0 0.0
    %1628 = vmatprep.mubr.f32.mxu0 0.0
    %v1629 = vand.u32 %v1148, 4294901760
    %1630 = vmatmul.mubr.f32.gmra.mxu0 %v1629
    %v1631 = vpop.f32.mrf.mxu0
    %v1632 = vadd.f32 %v1557, %v1631
    %v1633 = vpop.f32.mrf.mxu0
    %1634 = vdwg.mxu0
    %v1636 = vrot.slane %v1632, 4
    %v1638 = vadd.f32 %v596, %v1636
    %v1639 = vtanh.pop %v1638
    %v1640 = vadd.f32 %v1639, 1.0
    %v1641 = vmul.f32 %v1640, 0.5
    %v1643 = vrot.slane %v1137, 6
    %v1645 = vmul.f32 %v1641, %v1643
    %1647 = vrot.lane.b32.xlu0 %v1639, 64
    %v1648 = vpop.permute.xlu0 %1647
    %v1650 = vmul.f32 %v1641, %v1648
    %1652 = vrot.lane.b32.xlu0 %v1650, 32
    %v1653 = vpop.permute.xlu0 %1652
    %v1655 = vadd.f32 %v1645, %v1653
    %v1656 = vtanh.pop %v1655
    %1658 = vrot.lane.b32.xlu0 %v1656, 64
    %v1659 = vpop.permute.xlu0 %1658
    %v1661 = vmul.f32 %v1641, %v1659
    %v1663 = vrot.slane %v1661, 4
    %1664 = vrot.lane.b32.xlu0 %v1663, 32
    %v1665 = vpop.permute.xlu0 %1664
    %v1666 = vsel %vm627, %v1665, 0
    %1668 = vmatprep.subr.mxu0 0.0
    %1669 = vmatpush1.msra.mxu0 0.0
    %1670 = vmatprep.subr.mxu0 0.0
    %1671 = vmatpush1.msra.mxu0 0.0
    %1672 = vmatprep.subr.mxu0 0.0
    %1673 = vmatpush1.msra.mxu0 0.0
    %1674 = vmatprep.subr.mxu0 0.0
    %1675 = vmatpush1.msra.mxu0 0.0
    %1676 = vmatprep.subr.mxu0 0.0
    %1677 = vmatpush1.msra.mxu0 0.0
    %1678 = vmatprep.subr.mxu0 0.0
    %1679 = vmatpush1.msra.mxu0 0.0
    %1680 = vmatprep.subr.mxu0 0.0
    %1681 = vmatpush1.msra.mxu0 0.0
    %1682 = vmatprep.subr.mxu0 0.0
    %1683 = vmatpush1.msra.mxu0 0.0
    %1684 = vmatprep.subr.mxu0 0.0
    %1685 = vmatpush1.msra.mxu0 0.0
    %1686 = vmatprep.subr.mxu0 0.0
    %1687 = vmatpush1.msra.mxu0 0.0
    %1688 = vmatprep.subr.mxu0 0.0
    %1689 = vmatpush1.msra.mxu0 0.0
    %1690 = vmatprep.subr.mxu0 0.0
    %1691 = vmatpush1.msra.mxu0 0.0
    %1692 = vmatprep.subr.mxu0 0.0
    %v1693 = vand.u32 %v609, 4294901760
    %1694 = vmatpush1.msra.mxu0 %v1693
    %1695 = vmatprep.subr.mxu0 0.0
    %v1696 = vand.u32 %v608, 4294901760
    %1697 = vmatpush1.msra.mxu0 %v1696
    %1698 = vmatprep.subr.mxu0 0.0
    %v1699 = vand.u32 %v607, 4294901760
    %1700 = vmatpush1.msra.mxu0 %v1699
    %1701 = vmatprep.subr.mxu0 0.0
    %v1702 = vand.u32 %v606, 4294901760
    %1703 = vmatpush1.msra.mxu0 %v1702
    %1704 = vmatprep.subr.mxu0 0.0
    %1705 = vmatpush2.msra.mxu0 0.0
    %1706 = vmatprep.subr.mxu0 0.0
    %1707 = vmatpush2.msra.mxu0 0.0
    %1708 = vmatprep.subr.mxu0 0.0
    %1709 = vmatpush2.msra.mxu0 0.0
    %1710 = vmatprep.subr.mxu0 0.0
    %1711 = vmatpush2.msra.mxu0 0.0
    %1712 = vmatprep.subr.mxu0 0.0
    %1713 = vmatpush2.msra.mxu0 0.0
    %1714 = vmatprep.subr.mxu0 0.0
    %1715 = vmatpush2.msra.mxu0 0.0
    %1716 = vmatprep.subr.mxu0 0.0
    %1717 = vmatpush2.msra.mxu0 0.0
    %1718 = vmatprep.subr.mxu0 0.0
    %1719 = vmatpush2.msra.mxu0 0.0
    %1720 = vmatprep.subr.mxu0 0.0
    %1721 = vmatpush2.msra.mxu0 0.0
    %1722 = vmatprep.subr.mxu0 0.0
    %1723 = vmatpush2.msra.mxu0 0.0
    %1724 = vmatprep.subr.mxu0 0.0
    %1725 = vmatpush2.msra.mxu0 0.0
    %1726 = vmatprep.subr.mxu0 0.0
    %1727 = vmatpush2.msra.mxu0 0.0
    %1728 = vmatprep.subr.mxu0 0.0
    %1729 = vmatpush2.msra.mxu0 0.0
    %1730 = vmatprep.subr.mxu0 0.0
    %1731 = vmatpush2.msra.mxu0 0.0
    %1732 = vmatprep.subr.mxu0 0.0
    %1733 = vmatpush2.msra.mxu0 0.0
    %1734 = vmatprep.subr.mxu0 0.0
    %1735 = vmatpush2.msra.mxu0 0.0
    %1736 = vmatprep.mubr.f32.mxu0 0.0
    %v1737 = vand.u32 %v1666, 4294901760
    %v1738 = vsub.f32 %v1666, %v1737
    %v1739 = vand.u32 %v1738, 4294901760
    %v1740 = vsub.f32 %v1738, %v1739
    %v1741 = vand.u32 %v1740, 4294901760
    %1742 = vmatmul.mubr.f32.gmra.mxu0 %v1741
    %v1743 = vpop.f32.mrf.mxu0
    %v1744 = vadd.f32 0.0, %v1743
    %v1745 = vpop.f32.mrf.mxu0
    %1746 = vdwg.mxu0
    %1747 = vmatprep.subr.mxu0 0.0
    %1748 = vmatpush1.msra.mxu0 0.0
    %1749 = vmatprep.subr.mxu0 0.0
    %1750 = vmatpush1.msra.mxu0 0.0
    %1751 = vmatprep.subr.mxu0 0.0
    %1752 = vmatpush1.msra.mxu0 0.0
    %1753 = vmatprep.subr.mxu0 0.0
    %1754 = vmatpush1.msra.mxu0 0.0
    %1755 = vmatprep.subr.mxu0 0.0
    %1756 = vmatpush1.msra.mxu0 0.0
    %1757 = vmatprep.subr.mxu0 0.0
    %1758 = vmatpush1.msra.mxu0 0.0
    %1759 = vmatprep.subr.mxu0 0.0
    %1760 = vmatpush1.msra.mxu0 0.0
    %1761 = vmatprep.subr.mxu0 0.0
    %1762 = vmatpush1.msra.mxu0 0.0
    %1763 = vmatprep.subr.mxu0 0.0
    %1764 = vmatpush1.msra.mxu0 0.0
    %1765 = vmatprep.subr.mxu0 0.0
    %1766 = vmatpush1.msra.mxu0 0.0
    %1767 = vmatprep.subr.mxu0 0.0
    %1768 = vmatpush1.msra.mxu0 0.0
    %1769 = vmatprep.subr.mxu0 0.0
    %1770 = vmatpush1.msra.mxu0 0.0
    %1771 = vmatprep.subr.mxu0 0.0
    %v1772 = vand.u32 %v609, 4294901760
    %v1773 = vsub.f32 %v609, %v1772
    %v1774 = vand.u32 %v1773, 4294901760
    %v1775 = vsub.f32 %v1773, %v1774
    %v1776 = vand.u32 %v1775, 4294901760
    %1777 = vmatpush1.msra.mxu0 %v1776
    %1778 = vmatprep.subr.mxu0 0.0
    %v1779 = vand.u32 %v608, 4294901760
    %v1780 = vsub.f32 %v608, %v1779
    %v1781 = vand.u32 %v1780, 4294901760
    %v1782 = vsub.f32 %v1780, %v1781
    %v1783 = vand.u32 %v1782, 4294901760
    %1784 = vmatpush1.msra.mxu0 %v1783
    %1785 = vmatprep.subr.mxu0 0.0
    %v1786 = vand.u32 %v607, 4294901760
    %v1787 = vsub.f32 %v607, %v1786
    %v1788 = vand.u32 %v1787, 4294901760
    %v1789 = vsub.f32 %v1787, %v1788
    %v1790 = vand.u32 %v1789, 4294901760
    %1791 = vmatpush1.msra.mxu0 %v1790
    %1792 = vmatprep.subr.mxu0 0.0
    %v1793 = vand.u32 %v606, 4294901760
    %v1794 = vsub.f32 %v606, %v1793
    %v1795 = vand.u32 %v1794, 4294901760
    %v1796 = vsub.f32 %v1794, %v1795
    %v1797 = vand.u32 %v1796, 4294901760
    %1798 = vmatpush1.msra.mxu0 %v1797
    %1799 = vmatprep.subr.mxu0 0.0
    %1800 = vmatpush2.msra.mxu0 0.0
    %1801 = vmatprep.subr.mxu0 0.0
    %1802 = vmatpush2.msra.mxu0 0.0
    %1803 = vmatprep.subr.mxu0 0.0
    %1804 = vmatpush2.msra.mxu0 0.0
    %1805 = vmatprep.subr.mxu0 0.0
    %1806 = vmatpush2.msra.mxu0 0.0
    %1807 = vmatprep.subr.mxu0 0.0
    %1808 = vmatpush2.msra.mxu0 0.0
    %1809 = vmatprep.subr.mxu0 0.0
    %1810 = vmatpush2.msra.mxu0 0.0
    %1811 = vmatprep.subr.mxu0 0.0
    %1812 = vmatpush2.msra.mxu0 0.0
    %1813 = vmatprep.subr.mxu0 0.0
    %1814 = vmatpush2.msra.mxu0 0.0
    %1815 = vmatprep.subr.mxu0 0.0
    %1816 = vmatpush2.msra.mxu0 0.0
    %1817 = vmatprep.subr.mxu0 0.0
    %1818 = vmatpush2.msra.mxu0 0.0
    %1819 = vmatprep.subr.mxu0 0.0
    %1820 = vmatpush2.msra.mxu0 0.0
    %1821 = vmatprep.subr.mxu0 0.0
    %1822 = vmatpush2.msra.mxu0 0.0
    %1823 = vmatprep.subr.mxu0 0.0
    %1824 = vmatpush2.msra.mxu0 0.0
    %1825 = vmatprep.subr.mxu0 0.0
    %1826 = vmatpush2.msra.mxu0 0.0
    %1827 = vmatprep.subr.mxu0 0.0
    %1828 = vmatpush2.msra.mxu0 0.0
    %1829 = vmatprep.subr.mxu0 0.0
    %1830 = vmatpush2.msra.mxu0 0.0
    %1831 = vmatprep.mubr.f32.mxu0 0.0
    %v1832 = vand.u32 %v1666, 4294901760
    %1833 = vmatmul.mubr.f32.gmra.mxu0 %v1832
    %v1834 = vpop.f32.mrf.mxu0
    %v1835 = vadd.f32 %v1744, %v1834
    %v1836 = vpop.f32.mrf.mxu0
    %1837 = vdwg.mxu0
    %1838 = vmatprep.subr.mxu0 0.0
    %1839 = vmatpush1.msra.mxu0 0.0
    %1840 = vmatprep.subr.mxu0 0.0
    %1841 = vmatpush1.msra.mxu0 0.0
    %1842 = vmatprep.subr.mxu0 0.0
    %1843 = vmatpush1.msra.mxu0 0.0
    %1844 = vmatprep.subr.mxu0 0.0
    %1845 = vmatpush1.msra.mxu0 0.0
    %1846 = vmatprep.subr.mxu0 0.0
    %1847 = vmatpush1.msra.mxu0 0.0
    %1848 = vmatprep.subr.mxu0 0.0
    %1849 = vmatpush1.msra.mxu0 0.0
    %1850 = vmatprep.subr.mxu0 0.0
    %1851 = vmatpush1.msra.mxu0 0.0
    %1852 = vmatprep.subr.mxu0 0.0
    %1853 = vmatpush1.msra.mxu0 0.0
    %1854 = vmatprep.subr.mxu0 0.0
    %1855 = vmatpush1.msra.mxu0 0.0
    %1856 = vmatprep.subr.mxu0 0.0
    %1857 = vmatpush1.msra.mxu0 0.0
    %1858 = vmatprep.subr.mxu0 0.0
    %1859 = vmatpush1.msra.mxu0 0.0
    %1860 = vmatprep.subr.mxu0 0.0
    %1861 = vmatpush1.msra.mxu0 0.0
    %1862 = vmatprep.subr.mxu0 0.0
    %v1863 = vand.u32 %v609, 4294901760
    %v1864 = vsub.f32 %v609, %v1863
    %1865 = vmatpush1.msra.mxu0 %v1864
    %1866 = vmatprep.subr.mxu0 0.0
    %v1867 = vand.u32 %v608, 4294901760
    %v1868 = vsub.f32 %v608, %v1867
    %1869 = vmatpush1.msra.mxu0 %v1868
    %1870 = vmatprep.subr.mxu0 0.0
    %v1871 = vand.u32 %v607, 4294901760
    %v1872 = vsub.f32 %v607, %v1871
    %1873 = vmatpush1.msra.mxu0 %v1872
    %1874 = vmatprep.subr.mxu0 0.0
    %v1875 = vand.u32 %v606, 4294901760
    %v1876 = vsub.f32 %v606, %v1875
    %1877 = vmatpush1.msra.mxu0 %v1876
    %1878 = vmatprep.subr.mxu0 0.0
    %1879 = vmatpush2.msra.mxu0 0.0
    %1880 = vmatprep.subr.mxu0 0.0
    %1881 = vmatpush2.msra.mxu0 0.0
    %1882 = vmatprep.subr.mxu0 0.0
    %1883 = vmatpush2.msra.mxu0 0.0
    %1884 = vmatprep.subr.mxu0 0.0
    %1885 = vmatpush2.msra.mxu0 0.0
    %1886 = vmatprep.subr.mxu0 0.0
    %1887 = vmatpush2.msra.mxu0 0.0
    %1888 = vmatprep.subr.mxu0 0.0
    %1889 = vmatpush2.msra.mxu0 0.0
    %1890 = vmatprep.subr.mxu0 0.0
    %1891 = vmatpush2.msra.mxu0 0.0
    %1892 = vmatprep.subr.mxu0 0.0
    %1893 = vmatpush2.msra.mxu0 0.0
    %1894 = vmatprep.subr.mxu0 0.0
    %1895 = vmatpush2.msra.mxu0 0.0
    %1896 = vmatprep.subr.mxu0 0.0
    %1897 = vmatpush2.msra.mxu0 0.0
    %1898 = vmatprep.subr.mxu0 0.0
    %1899 = vmatpush2.msra.mxu0 0.0
    %1900 = vmatprep.subr.mxu0 0.0
    %1901 = vmatpush2.msra.mxu0 0.0
    %1902 = vmatprep.subr.mxu0 0.0
    %1903 = vmatpush2.msra.mxu0 0.0
    %1904 = vmatprep.subr.mxu0 0.0
    %1905 = vmatpush2.msra.mxu0 0.0
    %1906 = vmatprep.subr.mxu0 0.0
    %1907 = vmatpush2.msra.mxu0 0.0
    %1908 = vmatprep.subr.mxu0 0.0
    %1909 = vmatpush2.msra.mxu0 0.0
    %1910 = vmatprep.mubr.f32.mxu0 0.0
    %v1911 = vand.u32 %v1666, 4294901760
    %v1912 = vsub.f32 %v1666, %v1911
    %1913 = vmatmul.mubr.f32.gmra.mxu0 %v1912
    %v1914 = vpop.f32.mrf.mxu0
    %v1915 = vadd.f32 %v1835, %v1914
    %v1916 = vpop.f32.mrf.mxu0
    %1917 = vdwg.mxu0
    %1918 = vmatprep.subr.mxu0 0.0
    %1919 = vmatpush1.msra.mxu0 0.0
    %1920 = vmatprep.subr.mxu0 0.0
    %1921 = vmatpush1.msra.mxu0 0.0
    %1922 = vmatprep.subr.mxu0 0.0
    %1923 = vmatpush1.msra.mxu0 0.0
    %1924 = vmatprep.subr.mxu0 0.0
    %1925 = vmatpush1.msra.mxu0 0.0
    %1926 = vmatprep.subr.mxu0 0.0
    %1927 = vmatpush1.msra.mxu0 0.0
    %1928 = vmatprep.subr.mxu0 0.0
    %1929 = vmatpush1.msra.mxu0 0.0
    %1930 = vmatprep.subr.mxu0 0.0
    %1931 = vmatpush1.msra.mxu0 0.0
    %1932 = vmatprep.subr.mxu0 0.0
    %1933 = vmatpush1.msra.mxu0 0.0
    %1934 = vmatprep.subr.mxu0 0.0
    %1935 = vmatpush1.msra.mxu0 0.0
    %1936 = vmatprep.subr.mxu0 0.0
    %1937 = vmatpush1.msra.mxu0 0.0
    %1938 = vmatprep.subr.mxu0 0.0
    %1939 = vmatpush1.msra.mxu0 0.0
    %1940 = vmatprep.subr.mxu0 0.0
    %1941 = vmatpush1.msra.mxu0 0.0
    %1942 = vmatprep.subr.mxu0 0.0
    %v1943 = vand.u32 %v609, 4294901760
    %1944 = vmatpush1.msra.mxu0 %v1943
    %1945 = vmatprep.subr.mxu0 0.0
    %v1946 = vand.u32 %v608, 4294901760
    %1947 = vmatpush1.msra.mxu0 %v1946
    %1948 = vmatprep.subr.mxu0 0.0
    %v1949 = vand.u32 %v607, 4294901760
    %1950 = vmatpush1.msra.mxu0 %v1949
    %1951 = vmatprep.subr.mxu0 0.0
    %v1952 = vand.u32 %v606, 4294901760
    %1953 = vmatpush1.msra.mxu0 %v1952
    %1954 = vmatprep.subr.mxu0 0.0
    %1955 = vmatpush2.msra.mxu0 0.0
    %1956 = vmatprep.subr.mxu0 0.0
    %1957 = vmatpush2.msra.mxu0 0.0
    %1958 = vmatprep.subr.mxu0 0.0
    %1959 = vmatpush2.msra.mxu0 0.0
    %1960 = vmatprep.subr.mxu0 0.0
    %1961 = vmatpush2.msra.mxu0 0.0
    %1962 = vmatprep.subr.mxu0 0.0
    %1963 = vmatpush2.msra.mxu0 0.0
    %1964 = vmatprep.subr.mxu0 0.0
    %1965 = vmatpush2.msra.mxu0 0.0
    %1966 = vmatprep.subr.mxu0 0.0
    %1967 = vmatpush2.msra.mxu0 0.0
    %1968 = vmatprep.subr.mxu0 0.0
    %1969 = vmatpush2.msra.mxu0 0.0
    %1970 = vmatprep.subr.mxu0 0.0
    %1971 = vmatpush2.msra.mxu0 0.0
    %1972 = vmatprep.subr.mxu0 0.0
    %1973 = vmatpush2.msra.mxu0 0.0
    %1974 = vmatprep.subr.mxu0 0.0
    %1975 = vmatpush2.msra.mxu0 0.0
    %1976 = vmatprep.subr.mxu0 0.0
    %1977 = vmatpush2.msra.mxu0 0.0
    %1978 = vmatprep.subr.mxu0 0.0
    %1979 = vmatpush2.msra.mxu0 0.0
    %1980 = vmatprep.subr.mxu0 0.0
    %1981 = vmatpush2.msra.mxu0 0.0
    %1982 = vmatprep.subr.mxu0 0.0
    %1983 = vmatpush2.msra.mxu0 0.0
    %1984 = vmatprep.subr.mxu0 0.0
    %1985 = vmatpush2.msra.mxu0 0.0
    %1986 = vmatprep.mubr.f32.mxu0 0.0
    %v1987 = vand.u32 %v1666, 4294901760
    %v1988 = vsub.f32 %v1666, %v1987
    %v1989 = vand.u32 %v1988, 4294901760
    %1990 = vmatmul.mubr.f32.gmra.mxu0 %v1989
    %v1991 = vpop.f32.mrf.mxu0
    %v1992 = vadd.f32 %v1915, %v1991
    %v1993 = vpop.f32.mrf.mxu0
    %1994 = vdwg.mxu0
    %1995 = vmatprep.subr.mxu0 0.0
    %1996 = vmatpush1.msra.mxu0 0.0
    %1997 = vmatprep.subr.mxu0 0.0
    %1998 = vmatpush1.msra.mxu0 0.0
    %1999 = vmatprep.subr.mxu0 0.0
    %2000 = vmatpush1.msra.mxu0 0.0
    %2001 = vmatprep.subr.mxu0 0.0
    %2002 = vmatpush1.msra.mxu0 0.0
    %2003 = vmatprep.subr.mxu0 0.0
    %2004 = vmatpush1.msra.mxu0 0.0
    %2005 = vmatprep.subr.mxu0 0.0
    %2006 = vmatpush1.msra.mxu0 0.0
    %2007 = vmatprep.subr.mxu0 0.0
    %2008 = vmatpush1.msra.mxu0 0.0
    %2009 = vmatprep.subr.mxu0 0.0
    %2010 = vmatpush1.msra.mxu0 0.0
    %2011 = vmatprep.subr.mxu0 0.0
    %2012 = vmatpush1.msra.mxu0 0.0
    %2013 = vmatprep.subr.mxu0 0.0
    %2014 = vmatpush1.msra.mxu0 0.0
    %2015 = vmatprep.subr.mxu0 0.0
    %2016 = vmatpush1.msra.mxu0 0.0
    %2017 = vmatprep.subr.mxu0 0.0
    %2018 = vmatpush1.msra.mxu0 0.0
    %2019 = vmatprep.subr.mxu0 0.0
    %v2020 = vand.u32 %v609, 4294901760
    %v2021 = vsub.f32 %v609, %v2020
    %v2022 = vand.u32 %v2021, 4294901760
    %2023 = vmatpush1.msra.mxu0 %v2022
    %2024 = vmatprep.subr.mxu0 0.0
    %v2025 = vand.u32 %v608, 4294901760
    %v2026 = vsub.f32 %v608, %v2025
    %v2027 = vand.u32 %v2026, 4294901760
    %2028 = vmatpush1.msra.mxu0 %v2027
    %2029 = vmatprep.subr.mxu0 0.0
    %v2030 = vand.u32 %v607, 4294901760
    %v2031 = vsub.f32 %v607, %v2030
    %v2032 = vand.u32 %v2031, 4294901760
    %2033 = vmatpush1.msra.mxu0 %v2032
    %2034 = vmatprep.subr.mxu0 0.0
    %v2035 = vand.u32 %v606, 4294901760
    %v2036 = vsub.f32 %v606, %v2035
    %v2037 = vand.u32 %v2036, 4294901760
    %2038 = vmatpush1.msra.mxu0 %v2037
    %2039 = vmatprep.subr.mxu0 0.0
    %2040 = vmatpush2.msra.mxu0 0.0
    %2041 = vmatprep.subr.mxu0 0.0
    %2042 = vmatpush2.msra.mxu0 0.0
    %2043 = vmatprep.subr.mxu0 0.0
    %2044 = vmatpush2.msra.mxu0 0.0
    %2045 = vmatprep.subr.mxu0 0.0
    %2046 = vmatpush2.msra.mxu0 0.0
    %2047 = vmatprep.subr.mxu0 0.0
    %2048 = vmatpush2.msra.mxu0 0.0
    %2049 = vmatprep.subr.mxu0 0.0
    %2050 = vmatpush2.msra.mxu0 0.0
    %2051 = vmatprep.subr.mxu0 0.0
    %2052 = vmatpush2.msra.mxu0 0.0
    %2053 = vmatprep.subr.mxu0 0.0
    %2054 = vmatpush2.msra.mxu0 0.0
    %2055 = vmatprep.subr.mxu0 0.0
    %2056 = vmatpush2.msra.mxu0 0.0
    %2057 = vmatprep.subr.mxu0 0.0
    %2058 = vmatpush2.msra.mxu0 0.0
    %2059 = vmatprep.subr.mxu0 0.0
    %2060 = vmatpush2.msra.mxu0 0.0
    %2061 = vmatprep.subr.mxu0 0.0
    %2062 = vmatpush2.msra.mxu0 0.0
    %2063 = vmatprep.subr.mxu0 0.0
    %2064 = vmatpush2.msra.mxu0 0.0
    %2065 = vmatprep.subr.mxu0 0.0
    %2066 = vmatpush2.msra.mxu0 0.0
    %2067 = vmatprep.subr.mxu0 0.0
    %2068 = vmatpush2.msra.mxu0 0.0
    %2069 = vmatprep.subr.mxu0 0.0
    %2070 = vmatpush2.msra.mxu0 0.0
    %2071 = vmatprep.mubr.f32.mxu0 0.0
    %v2072 = vand.u32 %v1666, 4294901760
    %2073 = vmatmul.mubr.f32.gmra.mxu0 %v2072
    %v2074 = vpop.f32.mrf.mxu0
    %v2075 = vadd.f32 %v1992, %v2074
    %v2076 = vpop.f32.mrf.mxu0
    %2077 = vdwg.mxu0
    %2078 = vmatprep.subr.mxu0 0.0
    %2079 = vmatpush1.msra.mxu0 0.0
    %2080 = vmatprep.subr.mxu0 0.0
    %2081 = vmatpush1.msra.mxu0 0.0
    %2082 = vmatprep.subr.mxu0 0.0
    %2083 = vmatpush1.msra.mxu0 0.0
    %2084 = vmatprep.subr.mxu0 0.0
    %2085 = vmatpush1.msra.mxu0 0.0
    %2086 = vmatprep.subr.mxu0 0.0
    %2087 = vmatpush1.msra.mxu0 0.0
    %2088 = vmatprep.subr.mxu0 0.0
    %2089 = vmatpush1.msra.mxu0 0.0
    %2090 = vmatprep.subr.mxu0 0.0
    %2091 = vmatpush1.msra.mxu0 0.0
    %2092 = vmatprep.subr.mxu0 0.0
    %2093 = vmatpush1.msra.mxu0 0.0
    %2094 = vmatprep.subr.mxu0 0.0
    %2095 = vmatpush1.msra.mxu0 0.0
    %2096 = vmatprep.subr.mxu0 0.0
    %2097 = vmatpush1.msra.mxu0 0.0
    %2098 = vmatprep.subr.mxu0 0.0
    %2099 = vmatpush1.msra.mxu0 0.0
    %2100 = vmatprep.subr.mxu0 0.0
    %2101 = vmatpush1.msra.mxu0 0.0
    %2102 = vmatprep.subr.mxu0 0.0
    %v2103 = vand.u32 %v609, 4294901760
    %2104 = vmatpush1.msra.mxu0 %v2103
    %2105 = vmatprep.subr.mxu0 0.0
    %v2106 = vand.u32 %v608, 4294901760
    %2107 = vmatpush1.msra.mxu0 %v2106
    %2108 = vmatprep.subr.mxu0 0.0
    %v2109 = vand.u32 %v607, 4294901760
    %2110 = vmatpush1.msra.mxu0 %v2109
    %2111 = vmatprep.subr.mxu0 0.0
    %v2112 = vand.u32 %v606, 4294901760
    %2113 = vmatpush1.msra.mxu0 %v2112
    %2114 = vmatprep.subr.mxu0 0.0
    %2115 = vmatpush2.msra.mxu0 0.0
    %2116 = vmatprep.subr.mxu0 0.0
    %2117 = vmatpush2.msra.mxu0 0.0
    %2118 = vmatprep.subr.mxu0 0.0
    %2119 = vmatpush2.msra.mxu0 0.0
    %2120 = vmatprep.subr.mxu0 0.0
    %2121 = vmatpush2.msra.mxu0 0.0
    %2122 = vmatprep.subr.mxu0 0.0
    %2123 = vmatpush2.msra.mxu0 0.0
    %2124 = vmatprep.subr.mxu0 0.0
    %2125 = vmatpush2.msra.mxu0 0.0
    %2126 = vmatprep.subr.mxu0 0.0
    %2127 = vmatpush2.msra.mxu0 0.0
    %2128 = vmatprep.subr.mxu0 0.0
    %2129 = vmatpush2.msra.mxu0 0.0
    %2130 = vmatprep.subr.mxu0 0.0
    %2131 = vmatpush2.msra.mxu0 0.0
    %2132 = vmatprep.subr.mxu0 0.0
    %2133 = vmatpush2.msra.mxu0 0.0
    %2134 = vmatprep.subr.mxu0 0.0
    %2135 = vmatpush2.msra.mxu0 0.0
    %2136 = vmatprep.subr.mxu0 0.0
    %2137 = vmatpush2.msra.mxu0 0.0
    %2138 = vmatprep.subr.mxu0 0.0
    %2139 = vmatpush2.msra.mxu0 0.0
    %2140 = vmatprep.subr.mxu0 0.0
    %2141 = vmatpush2.msra.mxu0 0.0
    %2142 = vmatprep.subr.mxu0 0.0
    %2143 = vmatpush2.msra.mxu0 0.0
    %2144 = vmatprep.subr.mxu0 0.0
    %2145 = vmatpush2.msra.mxu0 0.0
    %2146 = vmatprep.mubr.f32.mxu0 0.0
    %v2147 = vand.u32 %v1666, 4294901760
    %2148 = vmatmul.mubr.f32.gmra.mxu0 %v2147
    %v2149 = vpop.f32.mrf.mxu0
    %v2150 = vadd.f32 %v2075, %v2149
    %v2151 = vpop.f32.mrf.mxu0
    %2152 = vdwg.mxu0
    %v2154 = vrot.slane %v2150, 2
    %v2156 = vadd.f32 %v596, %v2154
    %v2157 = vtanh.pop %v2156
    %v2158 = vadd.f32 %v2157, 1.0
    %v2159 = vmul.f32 %v2158, 0.5
    %v2161 = vrot.slane %v1655, 6
    %v2163 = vmul.f32 %v2159, %v2161
    %2165 = vrot.lane.b32.xlu0 %v2157, 64
    %v2166 = vpop.permute.xlu0 %2165
    %v2168 = vmul.f32 %v2159, %v2166
    %2170 = vrot.lane.b32.xlu0 %v2168, 32
    %v2171 = vpop.permute.xlu0 %2170
    %v2173 = vadd.f32 %v2163, %v2171
    %v2174 = vtanh.pop %v2173
    %2176 = vrot.lane.b32.xlu0 %v2174, 64
    %v2177 = vpop.permute.xlu0 %2176
    %v2179 = vmul.f32 %v2159, %v2177
    %v2181 = vrot.slane %v2179, 6
    %2182 = vrot.lane.b32.xlu0 %v2181, 32
    %v2183 = vpop.permute.xlu0 %2182
    %v2184 = vsel %vm627, %v2183, 0
    %2186 = vmatprep.subr.mxu0 0.0
    %2187 = vmatpush1.msra.mxu0 0.0
    %2188 = vmatprep.subr.mxu0 0.0
    %2189 = vmatpush1.msra.mxu0 0.0
    %2190 = vmatprep.subr.mxu0 0.0
    %2191 = vmatpush1.msra.mxu0 0.0
    %2192 = vmatprep.subr.mxu0 0.0
    %2193 = vmatpush1.msra.mxu0 0.0
    %2194 = vmatprep.subr.mxu0 0.0
    %2195 = vmatpush1.msra.mxu0 0.0
    %2196 = vmatprep.subr.mxu0 0.0
    %2197 = vmatpush1.msra.mxu0 0.0
    %2198 = vmatprep.subr.mxu0 0.0
    %2199 = vmatpush1.msra.mxu0 0.0
    %2200 = vmatprep.subr.mxu0 0.0
    %2201 = vmatpush1.msra.mxu0 0.0
    %2202 = vmatprep.subr.mxu0 0.0
    %2203 = vmatpush1.msra.mxu0 0.0
    %2204 = vmatprep.subr.mxu0 0.0
    %2205 = vmatpush1.msra.mxu0 0.0
    %2206 = vmatprep.subr.mxu0 0.0
    %2207 = vmatpush1.msra.mxu0 0.0
    %2208 = vmatprep.subr.mxu0 0.0
    %2209 = vmatpush1.msra.mxu0 0.0
    %2210 = vmatprep.subr.mxu0 0.0
    %v2211 = vand.u32 %v609, 4294901760
    %2212 = vmatpush1.msra.mxu0 %v2211
    %2213 = vmatprep.subr.mxu0 0.0
    %v2214 = vand.u32 %v608, 4294901760
    %2215 = vmatpush1.msra.mxu0 %v2214
    %2216 = vmatprep.subr.mxu0 0.0
    %v2217 = vand.u32 %v607, 4294901760
    %2218 = vmatpush1.msra.mxu0 %v2217
    %2219 = vmatprep.subr.mxu0 0.0
    %v2220 = vand.u32 %v606, 4294901760
    %2221 = vmatpush1.msra.mxu0 %v2220
    %2222 = vmatprep.subr.mxu0 0.0
    %2223 = vmatpush2.msra.mxu0 0.0
    %2224 = vmatprep.subr.mxu0 0.0
    %2225 = vmatpush2.msra.mxu0 0.0
    %2226 = vmatprep.subr.mxu0 0.0
    %2227 = vmatpush2.msra.mxu0 0.0
    %2228 = vmatprep.subr.mxu0 0.0
    %2229 = vmatpush2.msra.mxu0 0.0
    %2230 = vmatprep.subr.mxu0 0.0
    %2231 = vmatpush2.msra.mxu0 0.0
    %2232 = vmatprep.subr.mxu0 0.0
    %2233 = vmatpush2.msra.mxu0 0.0
    %2234 = vmatprep.subr.mxu0 0.0
    %2235 = vmatpush2.msra.mxu0 0.0
    %2236 = vmatprep.subr.mxu0 0.0
    %2237 = vmatpush2.msra.mxu0 0.0
    %2238 = vmatprep.subr.mxu0 0.0
    %2239 = vmatpush2.msra.mxu0 0.0
    %2240 = vmatprep.subr.mxu0 0.0
    %2241 = vmatpush2.msra.mxu0 0.0
    %2242 = vmatprep.subr.mxu0 0.0
    %2243 = vmatpush2.msra.mxu0 0.0
    %2244 = vmatprep.subr.mxu0 0.0
    %2245 = vmatpush2.msra.mxu0 0.0
    %2246 = vmatprep.subr.mxu0 0.0
    %2247 = vmatpush2.msra.mxu0 0.0
    %2248 = vmatprep.subr.mxu0 0.0
    %2249 = vmatpush2.msra.mxu0 0.0
    %2250 = vmatprep.subr.mxu0 0.0
    %2251 = vmatpush2.msra.mxu0 0.0
    %2252 = vmatprep.subr.mxu0 0.0
    %2253 = vmatpush2.msra.mxu0 0.0
    %2254 = vmatprep.mubr.f32.mxu0 0.0
    %v2255 = vand.u32 %v2184, 4294901760
    %v2256 = vsub.f32 %v2184, %v2255
    %v2257 = vand.u32 %v2256, 4294901760
    %v2258 = vsub.f32 %v2256, %v2257
    %v2259 = vand.u32 %v2258, 4294901760
    %2260 = vmatmul.mubr.f32.gmra.mxu0 %v2259
    %v2261 = vpop.f32.mrf.mxu0
    %v2262 = vadd.f32 0.0, %v2261
    %v2263 = vpop.f32.mrf.mxu0
    %2264 = vdwg.mxu0
    %2265 = vmatprep.subr.mxu0 0.0
    %2266 = vmatpush1.msra.mxu0 0.0
    %2267 = vmatprep.subr.mxu0 0.0
    %2268 = vmatpush1.msra.mxu0 0.0
    %2269 = vmatprep.subr.mxu0 0.0
    %2270 = vmatpush1.msra.mxu0 0.0
    %2271 = vmatprep.subr.mxu0 0.0
    %2272 = vmatpush1.msra.mxu0 0.0
    %2273 = vmatprep.subr.mxu0 0.0
    %2274 = vmatpush1.msra.mxu0 0.0
    %2275 = vmatprep.subr.mxu0 0.0
    %2276 = vmatpush1.msra.mxu0 0.0
    %2277 = vmatprep.subr.mxu0 0.0
    %2278 = vmatpush1.msra.mxu0 0.0
    %2279 = vmatprep.subr.mxu0 0.0
    %2280 = vmatpush1.msra.mxu0 0.0
    %2281 = vmatprep.subr.mxu0 0.0
    %2282 = vmatpush1.msra.mxu0 0.0
    %2283 = vmatprep.subr.mxu0 0.0
    %2284 = vmatpush1.msra.mxu0 0.0
    %2285 = vmatprep.subr.mxu0 0.0
    %2286 = vmatpush1.msra.mxu0 0.0
    %2287 = vmatprep.subr.mxu0 0.0
    %2288 = vmatpush1.msra.mxu0 0.0
    %2289 = vmatprep.subr.mxu0 0.0
    %v2290 = vand.u32 %v609, 4294901760
    %v2291 = vsub.f32 %v609, %v2290
    %v2292 = vand.u32 %v2291, 4294901760
    %v2293 = vsub.f32 %v2291, %v2292
    %v2294 = vand.u32 %v2293, 4294901760
    %2295 = vmatpush1.msra.mxu0 %v2294
    %2296 = vmatprep.subr.mxu0 0.0
    %v2297 = vand.u32 %v608, 4294901760
    %v2298 = vsub.f32 %v608, %v2297
    %v2299 = vand.u32 %v2298, 4294901760
    %v2300 = vsub.f32 %v2298, %v2299
    %v2301 = vand.u32 %v2300, 4294901760
    %2302 = vmatpush1.msra.mxu0 %v2301
    %2303 = vmatprep.subr.mxu0 0.0
    %v2304 = vand.u32 %v607, 4294901760
    %v2305 = vsub.f32 %v607, %v2304
    %v2306 = vand.u32 %v2305, 4294901760
    %v2307 = vsub.f32 %v2305, %v2306
    %v2308 = vand.u32 %v2307, 4294901760
    %2309 = vmatpush1.msra.mxu0 %v2308
    %2310 = vmatprep.subr.mxu0 0.0
    %v2311 = vand.u32 %v606, 4294901760
    %v2312 = vsub.f32 %v606, %v2311
    %v2313 = vand.u32 %v2312, 4294901760
    %v2314 = vsub.f32 %v2312, %v2313
    %v2315 = vand.u32 %v2314, 4294901760
    %2316 = vmatpush1.msra.mxu0 %v2315
    %2317 = vmatprep.subr.mxu0 0.0
    %2318 = vmatpush2.msra.mxu0 0.0
    %2319 = vmatprep.subr.mxu0 0.0
    %2320 = vmatpush2.msra.mxu0 0.0
    %2321 = vmatprep.subr.mxu0 0.0
    %2322 = vmatpush2.msra.mxu0 0.0
    %2323 = vmatprep.subr.mxu0 0.0
    %2324 = vmatpush2.msra.mxu0 0.0
    %2325 = vmatprep.subr.mxu0 0.0
    %2326 = vmatpush2.msra.mxu0 0.0
    %2327 = vmatprep.subr.mxu0 0.0
    %2328 = vmatpush2.msra.mxu0 0.0
    %2329 = vmatprep.subr.mxu0 0.0
    %2330 = vmatpush2.msra.mxu0 0.0
    %2331 = vmatprep.subr.mxu0 0.0
    %2332 = vmatpush2.msra.mxu0 0.0
    %2333 = vmatprep.subr.mxu0 0.0
    %2334 = vmatpush2.msra.mxu0 0.0
    %2335 = vmatprep.subr.mxu0 0.0
    %2336 = vmatpush2.msra.mxu0 0.0
    %2337 = vmatprep.subr.mxu0 0.0
    %2338 = vmatpush2.msra.mxu0 0.0
    %2339 = vmatprep.subr.mxu0 0.0
    %2340 = vmatpush2.msra.mxu0 0.0
    %2341 = vmatprep.subr.mxu0 0.0
    %2342 = vmatpush2.msra.mxu0 0.0
    %2343 = vmatprep.subr.mxu0 0.0
    %2344 = vmatpush2.msra.mxu0 0.0
    %2345 = vmatprep.subr.mxu0 0.0
    %2346 = vmatpush2.msra.mxu0 0.0
    %2347 = vmatprep.subr.mxu0 0.0
    %2348 = vmatpush2.msra.mxu0 0.0
    %2349 = vmatprep.mubr.f32.mxu0 0.0
    %v2350 = vand.u32 %v2184, 4294901760
    %2351 = vmatmul.mubr.f32.gmra.mxu0 %v2350
    %v2352 = vpop.f32.mrf.mxu0
    %v2353 = vadd.f32 %v2262, %v2352
    %v2354 = vpop.f32.mrf.mxu0
    %2355 = vdwg.mxu0
    %2356 = vmatprep.subr.mxu0 0.0
    %2357 = vmatpush1.msra.mxu0 0.0
    %2358 = vmatprep.subr.mxu0 0.0
    %2359 = vmatpush1.msra.mxu0 0.0
    %2360 = vmatprep.subr.mxu0 0.0
    %2361 = vmatpush1.msra.mxu0 0.0
    %2362 = vmatprep.subr.mxu0 0.0
    %2363 = vmatpush1.msra.mxu0 0.0
    %2364 = vmatprep.subr.mxu0 0.0
    %2365 = vmatpush1.msra.mxu0 0.0
    %2366 = vmatprep.subr.mxu0 0.0
    %2367 = vmatpush1.msra.mxu0 0.0
    %2368 = vmatprep.subr.mxu0 0.0
    %2369 = vmatpush1.msra.mxu0 0.0
    %2370 = vmatprep.subr.mxu0 0.0
    %2371 = vmatpush1.msra.mxu0 0.0
    %2372 = vmatprep.subr.mxu0 0.0
    %2373 = vmatpush1.msra.mxu0 0.0
    %2374 = vmatprep.subr.mxu0 0.0
    %2375 = vmatpush1.msra.mxu0 0.0
    %2376 = vmatprep.subr.mxu0 0.0
    %2377 = vmatpush1.msra.mxu0 0.0
    %2378 = vmatprep.subr.mxu0 0.0
    %2379 = vmatpush1.msra.mxu0 0.0
    %2380 = vmatprep.subr.mxu0 0.0
    %v2381 = vand.u32 %v609, 4294901760
    %v2382 = vsub.f32 %v609, %v2381
    %2383 = vmatpush1.msra.mxu0 %v2382
    %2384 = vmatprep.subr.mxu0 0.0
    %v2385 = vand.u32 %v608, 4294901760
    %v2386 = vsub.f32 %v608, %v2385
    %2387 = vmatpush1.msra.mxu0 %v2386
    %2388 = vmatprep.subr.mxu0 0.0
    %v2389 = vand.u32 %v607, 4294901760
    %v2390 = vsub.f32 %v607, %v2389
    %2391 = vmatpush1.msra.mxu0 %v2390
    %2392 = vmatprep.subr.mxu0 0.0
    %v2393 = vand.u32 %v606, 4294901760
    %v2394 = vsub.f32 %v606, %v2393
    %2395 = vmatpush1.msra.mxu0 %v2394
    %2396 = vmatprep.subr.mxu0 0.0
    %2397 = vmatpush2.msra.mxu0 0.0
    %2398 = vmatprep.subr.mxu0 0.0
    %2399 = vmatpush2.msra.mxu0 0.0
    %2400 = vmatprep.subr.mxu0 0.0
    %2401 = vmatpush2.msra.mxu0 0.0
    %2402 = vmatprep.subr.mxu0 0.0
    %2403 = vmatpush2.msra.mxu0 0.0
    %2404 = vmatprep.subr.mxu0 0.0
    %2405 = vmatpush2.msra.mxu0 0.0
    %2406 = vmatprep.subr.mxu0 0.0
    %2407 = vmatpush2.msra.mxu0 0.0
    %2408 = vmatprep.subr.mxu0 0.0
    %2409 = vmatpush2.msra.mxu0 0.0
    %2410 = vmatprep.subr.mxu0 0.0
    %2411 = vmatpush2.msra.mxu0 0.0
    %2412 = vmatprep.subr.mxu0 0.0
    %2413 = vmatpush2.msra.mxu0 0.0
    %2414 = vmatprep.subr.mxu0 0.0
    %2415 = vmatpush2.msra.mxu0 0.0
    %2416 = vmatprep.subr.mxu0 0.0
    %2417 = vmatpush2.msra.mxu0 0.0
    %2418 = vmatprep.subr.mxu0 0.0
    %2419 = vmatpush2.msra.mxu0 0.0
    %2420 = vmatprep.subr.mxu0 0.0
    %2421 = vmatpush2.msra.mxu0 0.0
    %2422 = vmatprep.subr.mxu0 0.0
    %2423 = vmatpush2.msra.mxu0 0.0
    %2424 = vmatprep.subr.mxu0 0.0
    %2425 = vmatpush2.msra.mxu0 0.0
    %2426 = vmatprep.subr.mxu0 0.0
    %2427 = vmatpush2.msra.mxu0 0.0
    %2428 = vmatprep.mubr.f32.mxu0 0.0
    %v2429 = vand.u32 %v2184, 4294901760
    %v2430 = vsub.f32 %v2184, %v2429
    %2431 = vmatmul.mubr.f32.gmra.mxu0 %v2430
    %v2432 = vpop.f32.mrf.mxu0
    %v2433 = vadd.f32 %v2353, %v2432
    %v2434 = vpop.f32.mrf.mxu0
    %2435 = vdwg.mxu0
    %2436 = vmatprep.subr.mxu0 0.0
    %2437 = vmatpush1.msra.mxu0 0.0
    %2438 = vmatprep.subr.mxu0 0.0
    %2439 = vmatpush1.msra.mxu0 0.0
    %2440 = vmatprep.subr.mxu0 0.0
    %2441 = vmatpush1.msra.mxu0 0.0
    %2442 = vmatprep.subr.mxu0 0.0
    %2443 = vmatpush1.msra.mxu0 0.0
    %2444 = vmatprep.subr.mxu0 0.0
    %2445 = vmatpush1.msra.mxu0 0.0
    %2446 = vmatprep.subr.mxu0 0.0
    %2447 = vmatpush1.msra.mxu0 0.0
    %2448 = vmatprep.subr.mxu0 0.0
    %2449 = vmatpush1.msra.mxu0 0.0
    %2450 = vmatprep.subr.mxu0 0.0
    %2451 = vmatpush1.msra.mxu0 0.0
    %2452 = vmatprep.subr.mxu0 0.0
    %2453 = vmatpush1.msra.mxu0 0.0
    %2454 = vmatprep.subr.mxu0 0.0
    %2455 = vmatpush1.msra.mxu0 0.0
    %2456 = vmatprep.subr.mxu0 0.0
    %2457 = vmatpush1.msra.mxu0 0.0
    %2458 = vmatprep.subr.mxu0 0.0
    %2459 = vmatpush1.msra.mxu0 0.0
    %2460 = vmatprep.subr.mxu0 0.0
    %v2461 = vand.u32 %v609, 4294901760
    %2462 = vmatpush1.msra.mxu0 %v2461
    %2463 = vmatprep.subr.mxu0 0.0
    %v2464 = vand.u32 %v608, 4294901760
    %2465 = vmatpush1.msra.mxu0 %v2464
    %2466 = vmatprep.subr.mxu0 0.0
    %v2467 = vand.u32 %v607, 4294901760
    %2468 = vmatpush1.msra.mxu0 %v2467
    %2469 = vmatprep.subr.mxu0 0.0
    %v2470 = vand.u32 %v606, 4294901760
    %2471 = vmatpush1.msra.mxu0 %v2470
    %2472 = vmatprep.subr.mxu0 0.0
    %2473 = vmatpush2.msra.mxu0 0.0
    %2474 = vmatprep.subr.mxu0 0.0
    %2475 = vmatpush2.msra.mxu0 0.0
    %2476 = vmatprep.subr.mxu0 0.0
    %2477 = vmatpush2.msra.mxu0 0.0
    %2478 = vmatprep.subr.mxu0 0.0
    %2479 = vmatpush2.msra.mxu0 0.0
    %2480 = vmatprep.subr.mxu0 0.0
    %2481 = vmatpush2.msra.mxu0 0.0
    %2482 = vmatprep.subr.mxu0 0.0
    %2483 = vmatpush2.msra.mxu0 0.0
    %2484 = vmatprep.subr.mxu0 0.0
    %2485 = vmatpush2.msra.mxu0 0.0
    %2486 = vmatprep.subr.mxu0 0.0
    %2487 = vmatpush2.msra.mxu0 0.0
    %2488 = vmatprep.subr.mxu0 0.0
    %2489 = vmatpush2.msra.mxu0 0.0
    %2490 = vmatprep.subr.mxu0 0.0
    %2491 = vmatpush2.msra.mxu0 0.0
    %2492 = vmatprep.subr.mxu0 0.0
    %2493 = vmatpush2.msra.mxu0 0.0
    %2494 = vmatprep.subr.mxu0 0.0
    %2495 = vmatpush2.msra.mxu0 0.0
    %2496 = vmatprep.subr.mxu0 0.0
    %2497 = vmatpush2.msra.mxu0 0.0
    %2498 = vmatprep.subr.mxu0 0.0
    %2499 = vmatpush2.msra.mxu0 0.0
    %2500 = vmatprep.subr.mxu0 0.0
    %2501 = vmatpush2.msra.mxu0 0.0
    %2502 = vmatprep.subr.mxu0 0.0
    %2503 = vmatpush2.msra.mxu0 0.0
    %2504 = vmatprep.mubr.f32.mxu0 0.0
    %v2505 = vand.u32 %v2184, 4294901760
    %v2506 = vsub.f32 %v2184, %v2505
    %v2507 = vand.u32 %v2506, 4294901760
    %2508 = vmatmul.mubr.f32.gmra.mxu0 %v2507
    %v2509 = vpop.f32.mrf.mxu0
    %v2510 = vadd.f32 %v2433, %v2509
    %v2511 = vpop.f32.mrf.mxu0
    %2512 = vdwg.mxu0
    %2513 = vmatprep.subr.mxu0 0.0
    %2514 = vmatpush1.msra.mxu0 0.0
    %2515 = vmatprep.subr.mxu0 0.0
    %2516 = vmatpush1.msra.mxu0 0.0
    %2517 = vmatprep.subr.mxu0 0.0
    %2518 = vmatpush1.msra.mxu0 0.0
    %2519 = vmatprep.subr.mxu0 0.0
    %2520 = vmatpush1.msra.mxu0 0.0
    %2521 = vmatprep.subr.mxu0 0.0
    %2522 = vmatpush1.msra.mxu0 0.0
    %2523 = vmatprep.subr.mxu0 0.0
    %2524 = vmatpush1.msra.mxu0 0.0
    %2525 = vmatprep.subr.mxu0 0.0
    %2526 = vmatpush1.msra.mxu0 0.0
    %2527 = vmatprep.subr.mxu0 0.0
    %2528 = vmatpush1.msra.mxu0 0.0
    %2529 = vmatprep.subr.mxu0 0.0
    %2530 = vmatpush1.msra.mxu0 0.0
    %2531 = vmatprep.subr.mxu0 0.0
    %2532 = vmatpush1.msra.mxu0 0.0
    %2533 = vmatprep.subr.mxu0 0.0
    %2534 = vmatpush1.msra.mxu0 0.0
    %2535 = vmatprep.subr.mxu0 0.0
    %2536 = vmatpush1.msra.mxu0 0.0
    %2537 = vmatprep.subr.mxu0 0.0
    %v2538 = vand.u32 %v609, 4294901760
    %v2539 = vsub.f32 %v609, %v2538
    %v2540 = vand.u32 %v2539, 4294901760
    %2541 = vmatpush1.msra.mxu0 %v2540
    %2542 = vmatprep.subr.mxu0 0.0
    %v2543 = vand.u32 %v608, 4294901760
    %v2544 = vsub.f32 %v608, %v2543
    %v2545 = vand.u32 %v2544, 4294901760
    %2546 = vmatpush1.msra.mxu0 %v2545
    %2547 = vmatprep.subr.mxu0 0.0
    %v2548 = vand.u32 %v607, 4294901760
    %v2549 = vsub.f32 %v607, %v2548
    %v2550 = vand.u32 %v2549, 4294901760
    %2551 = vmatpush1.msra.mxu0 %v2550
    %2552 = vmatprep.subr.mxu0 0.0
    %v2553 = vand.u32 %v606, 4294901760
    %v2554 = vsub.f32 %v606, %v2553
    %v2555 = vand.u32 %v2554, 4294901760
    %2556 = vmatpush1.msra.mxu0 %v2555
    %2557 = vmatprep.subr.mxu0 0.0
    %2558 = vmatpush2.msra.mxu0 0.0
    %2559 = vmatprep.subr.mxu0 0.0
    %2560 = vmatpush2.msra.mxu0 0.0
    %2561 = vmatprep.subr.mxu0 0.0
    %2562 = vmatpush2.msra.mxu0 0.0
    %2563 = vmatprep.subr.mxu0 0.0
    %2564 = vmatpush2.msra.mxu0 0.0
    %2565 = vmatprep.subr.mxu0 0.0
    %2566 = vmatpush2.msra.mxu0 0.0
    %2567 = vmatprep.subr.mxu0 0.0
    %2568 = vmatpush2.msra.mxu0 0.0
    %2569 = vmatprep.subr.mxu0 0.0
    %2570 = vmatpush2.msra.mxu0 0.0
    %2571 = vmatprep.subr.mxu0 0.0
    %2572 = vmatpush2.msra.mxu0 0.0
    %2573 = vmatprep.subr.mxu0 0.0
    %2574 = vmatpush2.msra.mxu0 0.0
    %2575 = vmatprep.subr.mxu0 0.0
    %2576 = vmatpush2.msra.mxu0 0.0
    %2577 = vmatprep.subr.mxu0 0.0
    %2578 = vmatpush2.msra.mxu0 0.0
    %2579 = vmatprep.subr.mxu0 0.0
    %2580 = vmatpush2.msra.mxu0 0.0
    %2581 = vmatprep.subr.mxu0 0.0
    %2582 = vmatpush2.msra.mxu0 0.0
    %2583 = vmatprep.subr.mxu0 0.0
    %2584 = vmatpush2.msra.mxu0 0.0
    %2585 = vmatprep.subr.mxu0 0.0
    %2586 = vmatpush2.msra.mxu0 0.0
    %2587 = vmatprep.subr.mxu0 0.0
    %2588 = vmatpush2.msra.mxu0 0.0
    %2589 = vmatprep.mubr.f32.mxu0 0.0
    %v2590 = vand.u32 %v2184, 4294901760
    %2591 = vmatmul.mubr.f32.gmra.mxu0 %v2590
    %v2592 = vpop.f32.mrf.mxu0
    %v2593 = vadd.f32 %v2510, %v2592
    %v2594 = vpop.f32.mrf.mxu0
    %2595 = vdwg.mxu0
    %2596 = vmatprep.subr.mxu0 0.0
    %2597 = vmatpush1.msra.mxu0 0.0
    %2598 = vmatprep.subr.mxu0 0.0
    %2599 = vmatpush1.msra.mxu0 0.0
    %2600 = vmatprep.subr.mxu0 0.0
    %2601 = vmatpush1.msra.mxu0 0.0
    %2602 = vmatprep.subr.mxu0 0.0
    %2603 = vmatpush1.msra.mxu0 0.0
    %2604 = vmatprep.subr.mxu0 0.0
    %2605 = vmatpush1.msra.mxu0 0.0
    %2606 = vmatprep.subr.mxu0 0.0
    %2607 = vmatpush1.msra.mxu0 0.0
    %2608 = vmatprep.subr.mxu0 0.0
    %2609 = vmatpush1.msra.mxu0 0.0
    %2610 = vmatprep.subr.mxu0 0.0
    %2611 = vmatpush1.msra.mxu0 0.0
    %2612 = vmatprep.subr.mxu0 0.0
    %2613 = vmatpush1.msra.mxu0 0.0
    %2614 = vmatprep.subr.mxu0 0.0
    %2615 = vmatpush1.msra.mxu0 0.0
    %2616 = vmatprep.subr.mxu0 0.0
    %2617 = vmatpush1.msra.mxu0 0.0
    %2618 = vmatprep.subr.mxu0 0.0
    %2619 = vmatpush1.msra.mxu0 0.0
    %2620 = vmatprep.subr.mxu0 0.0
    %v2621 = vand.u32 %v609, 4294901760
    %2622 = vmatpush1.msra.mxu0 %v2621
    %2623 = vmatprep.subr.mxu0 0.0
    %v2624 = vand.u32 %v608, 4294901760
    %2625 = vmatpush1.msra.mxu0 %v2624
    %2626 = vmatprep.subr.mxu0 0.0
    %v2627 = vand.u32 %v607, 4294901760
    %2628 = vmatpush1.msra.mxu0 %v2627
    %2629 = vmatprep.subr.mxu0 0.0
    %v2630 = vand.u32 %v606, 4294901760
    %2631 = vmatpush1.msra.mxu0 %v2630
    %2632 = vmatprep.subr.mxu0 0.0
    %2633 = vmatpush2.msra.mxu0 0.0
    %2634 = vmatprep.subr.mxu0 0.0
    %2635 = vmatpush2.msra.mxu0 0.0
    %2636 = vmatprep.subr.mxu0 0.0
    %2637 = vmatpush2.msra.mxu0 0.0
    %2638 = vmatprep.subr.mxu0 0.0
    %2639 = vmatpush2.msra.mxu0 0.0
    %2640 = vmatprep.subr.mxu0 0.0
    %2641 = vmatpush2.msra.mxu0 0.0
    %2642 = vmatprep.subr.mxu0 0.0
    %2643 = vmatpush2.msra.mxu0 0.0
    %2644 = vmatprep.subr.mxu0 0.0
    %2645 = vmatpush2.msra.mxu0 0.0
    %2646 = vmatprep.subr.mxu0 0.0
    %2647 = vmatpush2.msra.mxu0 0.0
    %2648 = vmatprep.subr.mxu0 0.0
    %2649 = vmatpush2.msra.mxu0 0.0
    %2650 = vmatprep.subr.mxu0 0.0
    %2651 = vmatpush2.msra.mxu0 0.0
    %2652 = vmatprep.subr.mxu0 0.0
    %2653 = vmatpush2.msra.mxu0 0.0
    %2654 = vmatprep.subr.mxu0 0.0
    %2655 = vmatpush2.msra.mxu0 0.0
    %2656 = vmatprep.subr.mxu0 0.0
    %2657 = vmatpush2.msra.mxu0 0.0
    %2658 = vmatprep.subr.mxu0 0.0
    %2659 = vmatpush2.msra.mxu0 0.0
    %2660 = vmatprep.subr.mxu0 0.0
    %2661 = vmatpush2.msra.mxu0 0.0
    %2662 = vmatprep.subr.mxu0 0.0
    %2663 = vmatpush2.msra.mxu0 0.0
    %2664 = vmatprep.mubr.f32.mxu0 0.0
    %v2665 = vand.u32 %v2184, 4294901760
    %2666 = vmatmul.mubr.f32.gmra.mxu0 %v2665
    %v2667 = vpop.f32.mrf.mxu0
    %v2668 = vadd.f32 %v2593, %v2667
    %v2669 = vpop.f32.mrf.mxu0
    %2670 = vdwg.mxu0
    %v2671 = vadd.f32 %v602, %v2668
    %v2672 = vtanh.pop %v2671
    %v2673 = vadd.f32 %v2672, 1.0
    %v2674 = vmul.f32 %v2673, 0.5
    %v2676 = vrot.slane %v2173, 6
    %v2678 = vmul.f32 %v2674, %v2676
    %2680 = vrot.lane.b32.xlu0 %v2672, 64
    %v2681 = vpop.permute.xlu0 %2680
    %v2683 = vmul.f32 %v2674, %v2681
    %2685 = vrot.lane.b32.xlu0 %v2683, 32
    %v2686 = vpop.permute.xlu0 %2685
    %v2688 = vadd.f32 %v2678, %v2686
    %v2689 = vtanh.pop %v2688
    %2691 = vrot.lane.b32.xlu0 %v2689, 64
    %v2692 = vpop.permute.xlu0 %2691
    %v2694 = vmul.f32 %v2674, %v2692
    %2696 = vrot.lane.b32.xlu0 %v2694, 32
    %v2697 = vpop.permute.xlu0 %2696
    %v2698 = vsel %vm627, %v2697, 0
    %2700 = vmatprep.subr.mxu0 0.0
    %2701 = vmatpush1.msra.mxu0 0.0
    %2702 = vmatprep.subr.mxu0 0.0
    %2703 = vmatpush1.msra.mxu0 0.0
    %2704 = vmatprep.subr.mxu0 0.0
    %2705 = vmatpush1.msra.mxu0 0.0
    %2706 = vmatprep.subr.mxu0 0.0
    %2707 = vmatpush1.msra.mxu0 0.0
    %2708 = vmatprep.subr.mxu0 0.0
    %2709 = vmatpush1.msra.mxu0 0.0
    %2710 = vmatprep.subr.mxu0 0.0
    %2711 = vmatpush1.msra.mxu0 0.0
    %2712 = vmatprep.subr.mxu0 0.0
    %2713 = vmatpush1.msra.mxu0 0.0
    %2714 = vmatprep.subr.mxu0 0.0
    %2715 = vmatpush1.msra.mxu0 0.0
    %2716 = vmatprep.subr.mxu0 0.0
    %2717 = vmatpush1.msra.mxu0 0.0
    %2718 = vmatprep.subr.mxu0 0.0
    %2719 = vmatpush1.msra.mxu0 0.0
    %2720 = vmatprep.subr.mxu0 0.0
    %2721 = vmatpush1.msra.mxu0 0.0
    %2722 = vmatprep.subr.mxu0 0.0
    %2723 = vmatpush1.msra.mxu0 0.0
    %2724 = vmatprep.subr.mxu0 0.0
    %v2725 = vand.u32 %v609, 4294901760
    %2726 = vmatpush1.msra.mxu0 %v2725
    %2727 = vmatprep.subr.mxu0 0.0
    %v2728 = vand.u32 %v608, 4294901760
    %2729 = vmatpush1.msra.mxu0 %v2728
    %2730 = vmatprep.subr.mxu0 0.0
    %v2731 = vand.u32 %v607, 4294901760
    %2732 = vmatpush1.msra.mxu0 %v2731
    %2733 = vmatprep.subr.mxu0 0.0
    %v2734 = vand.u32 %v606, 4294901760
    %2735 = vmatpush1.msra.mxu0 %v2734
    %2736 = vmatprep.subr.mxu0 0.0
    %2737 = vmatpush2.msra.mxu0 0.0
    %2738 = vmatprep.subr.mxu0 0.0
    %2739 = vmatpush2.msra.mxu0 0.0
    %2740 = vmatprep.subr.mxu0 0.0
    %2741 = vmatpush2.msra.mxu0 0.0
    %2742 = vmatprep.subr.mxu0 0.0
    %2743 = vmatpush2.msra.mxu0 0.0
    %2744 = vmatprep.subr.mxu0 0.0
    %2745 = vmatpush2.msra.mxu0 0.0
    %2746 = vmatprep.subr.mxu0 0.0
    %2747 = vmatpush2.msra.mxu0 0.0
    %2748 = vmatprep.subr.mxu0 0.0
    %2749 = vmatpush2.msra.mxu0 0.0
    %2750 = vmatprep.subr.mxu0 0.0
    %2751 = vmatpush2.msra.mxu0 0.0
    %2752 = vmatprep.subr.mxu0 0.0
    %2753 = vmatpush2.msra.mxu0 0.0
    %2754 = vmatprep.subr.mxu0 0.0
    %2755 = vmatpush2.msra.mxu0 0.0
    %2756 = vmatprep.subr.mxu0 0.0
    %2757 = vmatpush2.msra.mxu0 0.0
    %2758 = vmatprep.subr.mxu0 0.0
    %2759 = vmatpush2.msra.mxu0 0.0
    %2760 = vmatprep.subr.mxu0 0.0
    %2761 = vmatpush2.msra.mxu0 0.0
    %2762 = vmatprep.subr.mxu0 0.0
    %2763 = vmatpush2.msra.mxu0 0.0
    %2764 = vmatprep.subr.mxu0 0.0
    %2765 = vmatpush2.msra.mxu0 0.0
    %2766 = vmatprep.subr.mxu0 0.0
    %2767 = vmatpush2.msra.mxu0 0.0
    %2768 = vmatprep.mubr.f32.mxu0 0.0
    %v2769 = vand.u32 %v2698, 4294901760
    %v2770 = vsub.f32 %v2698, %v2769
    %v2771 = vand.u32 %v2770, 4294901760
    %v2772 = vsub.f32 %v2770, %v2771
    %v2773 = vand.u32 %v2772, 4294901760
    %2774 = vmatmul.mubr.f32.gmra.mxu0 %v2773
    %v2775 = vpop.f32.mrf.mxu0
    %v2776 = vadd.f32 0.0, %v2775
    %v2777 = vpop.f32.mrf.mxu0
    %2778 = vdwg.mxu0
    %2779 = vmatprep.subr.mxu0 0.0
    %2780 = vmatpush1.msra.mxu0 0.0
    %2781 = vmatprep.subr.mxu0 0.0
    %2782 = vmatpush1.msra.mxu0 0.0
    %2783 = vmatprep.subr.mxu0 0.0
    %2784 = vmatpush1.msra.mxu0 0.0
    %2785 = vmatprep.subr.mxu0 0.0
    %2786 = vmatpush1.msra.mxu0 0.0
    %2787 = vmatprep.subr.mxu0 0.0
    %2788 = vmatpush1.msra.mxu0 0.0
    %2789 = vmatprep.subr.mxu0 0.0
    %2790 = vmatpush1.msra.mxu0 0.0
    %2791 = vmatprep.subr.mxu0 0.0
    %2792 = vmatpush1.msra.mxu0 0.0
    %2793 = vmatprep.subr.mxu0 0.0
    %2794 = vmatpush1.msra.mxu0 0.0
    %2795 = vmatprep.subr.mxu0 0.0
    %2796 = vmatpush1.msra.mxu0 0.0
    %2797 = vmatprep.subr.mxu0 0.0
    %2798 = vmatpush1.msra.mxu0 0.0
    %2799 = vmatprep.subr.mxu0 0.0
    %2800 = vmatpush1.msra.mxu0 0.0
    %2801 = vmatprep.subr.mxu0 0.0
    %2802 = vmatpush1.msra.mxu0 0.0
    %2803 = vmatprep.subr.mxu0 0.0
    %v2804 = vand.u32 %v609, 4294901760
    %v2805 = vsub.f32 %v609, %v2804
    %v2806 = vand.u32 %v2805, 4294901760
    %v2807 = vsub.f32 %v2805, %v2806
    %v2808 = vand.u32 %v2807, 4294901760
    %2809 = vmatpush1.msra.mxu0 %v2808
    %2810 = vmatprep.subr.mxu0 0.0
    %v2811 = vand.u32 %v608, 4294901760
    %v2812 = vsub.f32 %v608, %v2811
    %v2813 = vand.u32 %v2812, 4294901760
    %v2814 = vsub.f32 %v2812, %v2813
    %v2815 = vand.u32 %v2814, 4294901760
    %2816 = vmatpush1.msra.mxu0 %v2815
    %2817 = vmatprep.subr.mxu0 0.0
    %v2818 = vand.u32 %v607, 4294901760
    %v2819 = vsub.f32 %v607, %v2818
    %v2820 = vand.u32 %v2819, 4294901760
    %v2821 = vsub.f32 %v2819, %v2820
    %v2822 = vand.u32 %v2821, 4294901760
    %2823 = vmatpush1.msra.mxu0 %v2822
    %2824 = vmatprep.subr.mxu0 0.0
    %v2825 = vand.u32 %v606, 4294901760
    %v2826 = vsub.f32 %v606, %v2825
    %v2827 = vand.u32 %v2826, 4294901760
    %v2828 = vsub.f32 %v2826, %v2827
    %v2829 = vand.u32 %v2828, 4294901760
    %2830 = vmatpush1.msra.mxu0 %v2829
    %2831 = vmatprep.subr.mxu0 0.0
    %2832 = vmatpush2.msra.mxu0 0.0
    %2833 = vmatprep.subr.mxu0 0.0
    %2834 = vmatpush2.msra.mxu0 0.0
    %2835 = vmatprep.subr.mxu0 0.0
    %2836 = vmatpush2.msra.mxu0 0.0
    %2837 = vmatprep.subr.mxu0 0.0
    %2838 = vmatpush2.msra.mxu0 0.0
    %2839 = vmatprep.subr.mxu0 0.0
    %2840 = vmatpush2.msra.mxu0 0.0
    %2841 = vmatprep.subr.mxu0 0.0
    %2842 = vmatpush2.msra.mxu0 0.0
    %2843 = vmatprep.subr.mxu0 0.0
    %2844 = vmatpush2.msra.mxu0 0.0
    %2845 = vmatprep.subr.mxu0 0.0
    %2846 = vmatpush2.msra.mxu0 0.0
    %2847 = vmatprep.subr.mxu0 0.0
    %2848 = vmatpush2.msra.mxu0 0.0
    %2849 = vmatprep.subr.mxu0 0.0
    %2850 = vmatpush2.msra.mxu0 0.0
    %2851 = vmatprep.subr.mxu0 0.0
    %2852 = vmatpush2.msra.mxu0 0.0
    %2853 = vmatprep.subr.mxu0 0.0
    %2854 = vmatpush2.msra.mxu0 0.0
    %2855 = vmatprep.subr.mxu0 0.0
    %2856 = vmatpush2.msra.mxu0 0.0
    %2857 = vmatprep.subr.mxu0 0.0
    %2858 = vmatpush2.msra.mxu0 0.0
    %2859 = vmatprep.subr.mxu0 0.0
    %2860 = vmatpush2.msra.mxu0 0.0
    %2861 = vmatprep.subr.mxu0 0.0
    %2862 = vmatpush2.msra.mxu0 0.0
    %2863 = vmatprep.mubr.f32.mxu0 0.0
    %v2864 = vand.u32 %v2698, 4294901760
    %2865 = vmatmul.mubr.f32.gmra.mxu0 %v2864
    %v2866 = vpop.f32.mrf.mxu0
    %v2867 = vadd.f32 %v2776, %v2866
    %v2868 = vpop.f32.mrf.mxu0
    %2869 = vdwg.mxu0
    %2870 = vmatprep.subr.mxu0 0.0
    %2871 = vmatpush1.msra.mxu0 0.0
    %2872 = vmatprep.subr.mxu0 0.0
    %2873 = vmatpush1.msra.mxu0 0.0
    %2874 = vmatprep.subr.mxu0 0.0
    %2875 = vmatpush1.msra.mxu0 0.0
    %2876 = vmatprep.subr.mxu0 0.0
    %2877 = vmatpush1.msra.mxu0 0.0
    %2878 = vmatprep.subr.mxu0 0.0
    %2879 = vmatpush1.msra.mxu0 0.0
    %2880 = vmatprep.subr.mxu0 0.0
    %2881 = vmatpush1.msra.mxu0 0.0
    %2882 = vmatprep.subr.mxu0 0.0
    %2883 = vmatpush1.msra.mxu0 0.0
    %2884 = vmatprep.subr.mxu0 0.0
    %2885 = vmatpush1.msra.mxu0 0.0
    %2886 = vmatprep.subr.mxu0 0.0
    %2887 = vmatpush1.msra.mxu0 0.0
    %2888 = vmatprep.subr.mxu0 0.0
    %2889 = vmatpush1.msra.mxu0 0.0
    %2890 = vmatprep.subr.mxu0 0.0
    %2891 = vmatpush1.msra.mxu0 0.0
    %2892 = vmatprep.subr.mxu0 0.0
    %2893 = vmatpush1.msra.mxu0 0.0
    %2894 = vmatprep.subr.mxu0 0.0
    %v2895 = vand.u32 %v609, 4294901760
    %v2896 = vsub.f32 %v609, %v2895
    %2897 = vmatpush1.msra.mxu0 %v2896
    %2898 = vmatprep.subr.mxu0 0.0
    %v2899 = vand.u32 %v608, 4294901760
    %v2900 = vsub.f32 %v608, %v2899
    %2901 = vmatpush1.msra.mxu0 %v2900
    %2902 = vmatprep.subr.mxu0 0.0
    %v2903 = vand.u32 %v607, 4294901760
    %v2904 = vsub.f32 %v607, %v2903
    %2905 = vmatpush1.msra.mxu0 %v2904
    %2906 = vmatprep.subr.mxu0 0.0
    %v2907 = vand.u32 %v606, 4294901760
    %v2908 = vsub.f32 %v606, %v2907
    %2909 = vmatpush1.msra.mxu0 %v2908
    %2910 = vmatprep.subr.mxu0 0.0
    %2911 = vmatpush2.msra.mxu0 0.0
    %2912 = vmatprep.subr.mxu0 0.0
    %2913 = vmatpush2.msra.mxu0 0.0
    %2914 = vmatprep.subr.mxu0 0.0
    %2915 = vmatpush2.msra.mxu0 0.0
    %2916 = vmatprep.subr.mxu0 0.0
    %2917 = vmatpush2.msra.mxu0 0.0
    %2918 = vmatprep.subr.mxu0 0.0
    %2919 = vmatpush2.msra.mxu0 0.0
    %2920 = vmatprep.subr.mxu0 0.0
    %2921 = vmatpush2.msra.mxu0 0.0
    %2922 = vmatprep.subr.mxu0 0.0
    %2923 = vmatpush2.msra.mxu0 0.0
    %2924 = vmatprep.subr.mxu0 0.0
    %2925 = vmatpush2.msra.mxu0 0.0
    %2926 = vmatprep.subr.mxu0 0.0
    %2927 = vmatpush2.msra.mxu0 0.0
    %2928 = vmatprep.subr.mxu0 0.0
    %2929 = vmatpush2.msra.mxu0 0.0
    %2930 = vmatprep.subr.mxu0 0.0
    %2931 = vmatpush2.msra.mxu0 0.0
    %2932 = vmatprep.subr.mxu0 0.0
    %2933 = vmatpush2.msra.mxu0 0.0
    %2934 = vmatprep.subr.mxu0 0.0
    %2935 = vmatpush2.msra.mxu0 0.0
    %2936 = vmatprep.subr.mxu0 0.0
    %2937 = vmatpush2.msra.mxu0 0.0
    %2938 = vmatprep.subr.mxu0 0.0
    %2939 = vmatpush2.msra.mxu0 0.0
    %2940 = vmatprep.subr.mxu0 0.0
    %2941 = vmatpush2.msra.mxu0 0.0
    %2942 = vmatprep.mubr.f32.mxu0 0.0
    %v2943 = vand.u32 %v2698, 4294901760
    %v2944 = vsub.f32 %v2698, %v2943
    %2945 = vmatmul.mubr.f32.gmra.mxu0 %v2944
    %v2946 = vpop.f32.mrf.mxu0
    %v2947 = vadd.f32 %v2867, %v2946
    %v2948 = vpop.f32.mrf.mxu0
    %2949 = vdwg.mxu0
    %2950 = vmatprep.subr.mxu0 0.0
    %2951 = vmatpush1.msra.mxu0 0.0
    %2952 = vmatprep.subr.mxu0 0.0
    %2953 = vmatpush1.msra.mxu0 0.0
    %2954 = vmatprep.subr.mxu0 0.0
    %2955 = vmatpush1.msra.mxu0 0.0
    %2956 = vmatprep.subr.mxu0 0.0
    %2957 = vmatpush1.msra.mxu0 0.0
    %2958 = vmatprep.subr.mxu0 0.0
    %2959 = vmatpush1.msra.mxu0 0.0
    %2960 = vmatprep.subr.mxu0 0.0
    %2961 = vmatpush1.msra.mxu0 0.0
    %2962 = vmatprep.subr.mxu0 0.0
    %2963 = vmatpush1.msra.mxu0 0.0
    %2964 = vmatprep.subr.mxu0 0.0
    %2965 = vmatpush1.msra.mxu0 0.0
    %2966 = vmatprep.subr.mxu0 0.0
    %2967 = vmatpush1.msra.mxu0 0.0
    %2968 = vmatprep.subr.mxu0 0.0
    %2969 = vmatpush1.msra.mxu0 0.0
    %2970 = vmatprep.subr.mxu0 0.0
    %2971 = vmatpush1.msra.mxu0 0.0
    %2972 = vmatprep.subr.mxu0 0.0
    %2973 = vmatpush1.msra.mxu0 0.0
    %2974 = vmatprep.subr.mxu0 0.0
    %v2975 = vand.u32 %v609, 4294901760
    %2976 = vmatpush1.msra.mxu0 %v2975
    %2977 = vmatprep.subr.mxu0 0.0
    %v2978 = vand.u32 %v608, 4294901760
    %2979 = vmatpush1.msra.mxu0 %v2978
    %2980 = vmatprep.subr.mxu0 0.0
    %v2981 = vand.u32 %v607, 4294901760
    %2982 = vmatpush1.msra.mxu0 %v2981
    %2983 = vmatprep.subr.mxu0 0.0
    %v2984 = vand.u32 %v606, 4294901760
    %2985 = vmatpush1.msra.mxu0 %v2984
    %2986 = vmatprep.subr.mxu0 0.0
    %2987 = vmatpush2.msra.mxu0 0.0
    %2988 = vmatprep.subr.mxu0 0.0
    %2989 = vmatpush2.msra.mxu0 0.0
    %2990 = vmatprep.subr.mxu0 0.0
    %2991 = vmatpush2.msra.mxu0 0.0
    %2992 = vmatprep.subr.mxu0 0.0
    %2993 = vmatpush2.msra.mxu0 0.0
    %2994 = vmatprep.subr.mxu0 0.0
    %2995 = vmatpush2.msra.mxu0 0.0
    %2996 = vmatprep.subr.mxu0 0.0
    %2997 = vmatpush2.msra.mxu0 0.0
    %2998 = vmatprep.subr.mxu0 0.0
    %2999 = vmatpush2.msra.mxu0 0.0
    %3000 = vmatprep.subr.mxu0 0.0
    %3001 = vmatpush2.msra.mxu0 0.0
    %3002 = vmatprep.subr.mxu0 0.0
    %3003 = vmatpush2.msra.mxu0 0.0
    %3004 = vmatprep.subr.mxu0 0.0
    %3005 = vmatpush2.msra.mxu0 0.0
    %3006 = vmatprep.subr.mxu0 0.0
    %3007 = vmatpush2.msra.mxu0 0.0
    %3008 = vmatprep.subr.mxu0 0.0
    %3009 = vmatpush2.msra.mxu0 0.0
    %3010 = vmatprep.subr.mxu0 0.0
    %3011 = vmatpush2.msra.mxu0 0.0
    %3012 = vmatprep.subr.mxu0 0.0
    %3013 = vmatpush2.msra.mxu0 0.0
    %3014 = vmatprep.subr.mxu0 0.0
    %3015 = vmatpush2.msra.mxu0 0.0
    %3016 = vmatprep.subr.mxu0 0.0
    %3017 = vmatpush2.msra.mxu0 0.0
    %3018 = vmatprep.mubr.f32.mxu0 0.0
    %v3019 = vand.u32 %v2698, 4294901760
    %v3020 = vsub.f32 %v2698, %v3019
    %v3021 = vand.u32 %v3020, 4294901760
    %3022 = vmatmul.mubr.f32.gmra.mxu0 %v3021
    %v3023 = vpop.f32.mrf.mxu0
    %v3024 = vadd.f32 %v2947, %v3023
    %v3025 = vpop.f32.mrf.mxu0
    %3026 = vdwg.mxu0
    %3027 = vmatprep.subr.mxu0 0.0
    %3028 = vmatpush1.msra.mxu0 0.0
    %3029 = vmatprep.subr.mxu0 0.0
    %3030 = vmatpush1.msra.mxu0 0.0
    %3031 = vmatprep.subr.mxu0 0.0
    %3032 = vmatpush1.msra.mxu0 0.0
    %3033 = vmatprep.subr.mxu0 0.0
    %3034 = vmatpush1.msra.mxu0 0.0
    %3035 = vmatprep.subr.mxu0 0.0
    %3036 = vmatpush1.msra.mxu0 0.0
    %3037 = vmatprep.subr.mxu0 0.0
    %3038 = vmatpush1.msra.mxu0 0.0
    %3039 = vmatprep.subr.mxu0 0.0
    %3040 = vmatpush1.msra.mxu0 0.0
    %3041 = vmatprep.subr.mxu0 0.0
    %3042 = vmatpush1.msra.mxu0 0.0
    %3043 = vmatprep.subr.mxu0 0.0
    %3044 = vmatpush1.msra.mxu0 0.0
    %3045 = vmatprep.subr.mxu0 0.0
    %3046 = vmatpush1.msra.mxu0 0.0
    %3047 = vmatprep.subr.mxu0 0.0
    %3048 = vmatpush1.msra.mxu0 0.0
    %3049 = vmatprep.subr.mxu0 0.0
    %3050 = vmatpush1.msra.mxu0 0.0
    %3051 = vmatprep.subr.mxu0 0.0
    %v3052 = vand.u32 %v609, 4294901760
    %v3053 = vsub.f32 %v609, %v3052
    %v3054 = vand.u32 %v3053, 4294901760
    %3055 = vmatpush1.msra.mxu0 %v3054
    %3056 = vmatprep.subr.mxu0 0.0
    %v3057 = vand.u32 %v608, 4294901760
    %v3058 = vsub.f32 %v608, %v3057
    %v3059 = vand.u32 %v3058, 4294901760
    %3060 = vmatpush1.msra.mxu0 %v3059
    %3061 = vmatprep.subr.mxu0 0.0
    %v3062 = vand.u32 %v607, 4294901760
    %v3063 = vsub.f32 %v607, %v3062
    %v3064 = vand.u32 %v3063, 4294901760
    %3065 = vmatpush1.msra.mxu0 %v3064
    %3066 = vmatprep.subr.mxu0 0.0
    %v3067 = vand.u32 %v606, 4294901760
    %v3068 = vsub.f32 %v606, %v3067
    %v3069 = vand.u32 %v3068, 4294901760
    %3070 = vmatpush1.msra.mxu0 %v3069
    %3071 = vmatprep.subr.mxu0 0.0
    %3072 = vmatpush2.msra.mxu0 0.0
    %3073 = vmatprep.subr.mxu0 0.0
    %3074 = vmatpush2.msra.mxu0 0.0
    %3075 = vmatprep.subr.mxu0 0.0
    %3076 = vmatpush2.msra.mxu0 0.0
    %3077 = vmatprep.subr.mxu0 0.0
    %3078 = vmatpush2.msra.mxu0 0.0
    %3079 = vmatprep.subr.mxu0 0.0
    %3080 = vmatpush2.msra.mxu0 0.0
    %3081 = vmatprep.subr.mxu0 0.0
    %3082 = vmatpush2.msra.mxu0 0.0
    %3083 = vmatprep.subr.mxu0 0.0
    %3084 = vmatpush2.msra.mxu0 0.0
    %3085 = vmatprep.subr.mxu0 0.0
    %3086 = vmatpush2.msra.mxu0 0.0
    %3087 = vmatprep.subr.mxu0 0.0
    %3088 = vmatpush2.msra.mxu0 0.0
    %3089 = vmatprep.subr.mxu0 0.0
    %3090 = vmatpush2.msra.mxu0 0.0
    %3091 = vmatprep.subr.mxu0 0.0
    %3092 = vmatpush2.msra.mxu0 0.0
    %3093 = vmatprep.subr.mxu0 0.0
    %3094 = vmatpush2.msra.mxu0 0.0
    %3095 = vmatprep.subr.mxu0 0.0
    %3096 = vmatpush2.msra.mxu0 0.0
    %3097 = vmatprep.subr.mxu0 0.0
    %3098 = vmatpush2.msra.mxu0 0.0
    %3099 = vmatprep.subr.mxu0 0.0
    %3100 = vmatpush2.msra.mxu0 0.0
    %3101 = vmatprep.subr.mxu0 0.0
    %3102 = vmatpush2.msra.mxu0 0.0
    %3103 = vmatprep.mubr.f32.mxu0 0.0
    %v3104 = vand.u32 %v2698, 4294901760
    %3105 = vmatmul.mubr.f32.gmra.mxu0 %v3104
    %v3106 = vpop.f32.mrf.mxu0
    %v3107 = vadd.f32 %v3024, %v3106
    %v3108 = vpop.f32.mrf.mxu0
    %3109 = vdwg.mxu0
    %3110 = vmatprep.subr.mxu0 0.0
    %3111 = vmatpush1.msra.mxu0 0.0
    %3112 = vmatprep.subr.mxu0 0.0
    %3113 = vmatpush1.msra.mxu0 0.0
    %3114 = vmatprep.subr.mxu0 0.0
    %3115 = vmatpush1.msra.mxu0 0.0
    %3116 = vmatprep.subr.mxu0 0.0
    %3117 = vmatpush1.msra.mxu0 0.0
    %3118 = vmatprep.subr.mxu0 0.0
    %3119 = vmatpush1.msra.mxu0 0.0
    %3120 = vmatprep.subr.mxu0 0.0
    %3121 = vmatpush1.msra.mxu0 0.0
    %3122 = vmatprep.subr.mxu0 0.0
    %3123 = vmatpush1.msra.mxu0 0.0
    %3124 = vmatprep.subr.mxu0 0.0
    %3125 = vmatpush1.msra.mxu0 0.0
    %3126 = vmatprep.subr.mxu0 0.0
    %3127 = vmatpush1.msra.mxu0 0.0
    %3128 = vmatprep.subr.mxu0 0.0
    %3129 = vmatpush1.msra.mxu0 0.0
    %3130 = vmatprep.subr.mxu0 0.0
    %3131 = vmatpush1.msra.mxu0 0.0
    %3132 = vmatprep.subr.mxu0 0.0
    %3133 = vmatpush1.msra.mxu0 0.0
    %3134 = vmatprep.subr.mxu0 0.0
    %v3135 = vand.u32 %v609, 4294901760
    %3136 = vmatpush1.msra.mxu0 %v3135
    %3137 = vmatprep.subr.mxu0 0.0
    %v3138 = vand.u32 %v608, 4294901760
    %3139 = vmatpush1.msra.mxu0 %v3138
    %3140 = vmatprep.subr.mxu0 0.0
    %v3141 = vand.u32 %v607, 4294901760
    %3142 = vmatpush1.msra.mxu0 %v3141
    %3143 = vmatprep.subr.mxu0 0.0
    %v3144 = vand.u32 %v606, 4294901760
    %3145 = vmatpush1.msra.mxu0 %v3144
    %3146 = vmatprep.subr.mxu0 0.0
    %3147 = vmatpush2.msra.mxu0 0.0
    %3148 = vmatprep.subr.mxu0 0.0
    %3149 = vmatpush2.msra.mxu0 0.0
    %3150 = vmatprep.subr.mxu0 0.0
    %3151 = vmatpush2.msra.mxu0 0.0
    %3152 = vmatprep.subr.mxu0 0.0
    %3153 = vmatpush2.msra.mxu0 0.0
    %3154 = vmatprep.subr.mxu0 0.0
    %3155 = vmatpush2.msra.mxu0 0.0
    %3156 = vmatprep.subr.mxu0 0.0
    %3157 = vmatpush2.msra.mxu0 0.0
    %3158 = vmatprep.subr.mxu0 0.0
    %3159 = vmatpush2.msra.mxu0 0.0
    %3160 = vmatprep.subr.mxu0 0.0
    %3161 = vmatpush2.msra.mxu0 0.0
    %3162 = vmatprep.subr.mxu0 0.0
    %3163 = vmatpush2.msra.mxu0 0.0
    %3164 = vmatprep.subr.mxu0 0.0
    %3165 = vmatpush2.msra.mxu0 0.0
    %3166 = vmatprep.subr.mxu0 0.0
    %3167 = vmatpush2.msra.mxu0 0.0
    %3168 = vmatprep.subr.mxu0 0.0
    %3169 = vmatpush2.msra.mxu0 0.0
    %3170 = vmatprep.subr.mxu0 0.0
    %3171 = vmatpush2.msra.mxu0 0.0
    %3172 = vmatprep.subr.mxu0 0.0
    %3173 = vmatpush2.msra.mxu0 0.0
    %3174 = vmatprep.subr.mxu0 0.0
    %3175 = vmatpush2.msra.mxu0 0.0
    %3176 = vmatprep.subr.mxu0 0.0
    %3177 = vmatpush2.msra.mxu0 0.0
    %3178 = vmatprep.mubr.f32.mxu0 0.0
    %v3179 = vand.u32 %v2698, 4294901760
    %3180 = vmatmul.mubr.f32.gmra.mxu0 %v3179
    %v3181 = vpop.f32.mrf.mxu0
    %v3182 = vadd.f32 %v3107, %v3181
    %v3183 = vpop.f32.mrf.mxu0
    %3184 = vdwg.mxu0
    %v3186 = vrot.slane %v3182, 6
    %v3188 = vadd.f32 %v602, %v3186
    %v3189 = vtanh.pop %v3188
    %v3190 = vadd.f32 %v3189, 1.0
    %v3191 = vmul.f32 %v3190, 0.5
    %v3193 = vrot.slane %v2688, 6
    %v3195 = vmul.f32 %v3191, %v3193
    %3197 = vrot.lane.b32.xlu0 %v3189, 64
    %v3198 = vpop.permute.xlu0 %3197
    %v3200 = vmul.f32 %v3191, %v3198
    %3202 = vrot.lane.b32.xlu0 %v3200, 32
    %v3203 = vpop.permute.xlu0 %3202
    %v3205 = vadd.f32 %v3195, %v3203
    %v3206 = vtanh.pop %v3205
    %3208 = vrot.lane.b32.xlu0 %v3206, 64
    %v3209 = vpop.permute.xlu0 %3208
    %v3211 = vmul.f32 %v3191, %v3209
    %v3213 = vrot.slane %v3211, 2
    %3214 = vrot.lane.b32.xlu0 %v3213, 32
    %v3215 = vpop.permute.xlu0 %3214
    %v3216 = vsel %vm627, %v3215, 0
    %3218 = vmatprep.subr.mxu0 0.0
    %3219 = vmatpush1.msra.mxu0 0.0
    %3220 = vmatprep.subr.mxu0 0.0
    %3221 = vmatpush1.msra.mxu0 0.0
    %3222 = vmatprep.subr.mxu0 0.0
    %3223 = vmatpush1.msra.mxu0 0.0
    %3224 = vmatprep.subr.mxu0 0.0
    %3225 = vmatpush1.msra.mxu0 0.0
    %3226 = vmatprep.subr.mxu0 0.0
    %3227 = vmatpush1.msra.mxu0 0.0
    %3228 = vmatprep.subr.mxu0 0.0
    %3229 = vmatpush1.msra.mxu0 0.0
    %3230 = vmatprep.subr.mxu0 0.0
    %3231 = vmatpush1.msra.mxu0 0.0
    %3232 = vmatprep.subr.mxu0 0.0
    %3233 = vmatpush1.msra.mxu0 0.0
    %3234 = vmatprep.subr.mxu0 0.0
    %3235 = vmatpush1.msra.mxu0 0.0
    %3236 = vmatprep.subr.mxu0 0.0
    %3237 = vmatpush1.msra.mxu0 0.0
    %3238 = vmatprep.subr.mxu0 0.0
    %3239 = vmatpush1.msra.mxu0 0.0
    %3240 = vmatprep.subr.mxu0 0.0
    %3241 = vmatpush1.msra.mxu0 0.0
    %3242 = vmatprep.subr.mxu0 0.0
    %v3243 = vand.u32 %v609, 4294901760
    %3244 = vmatpush1.msra.mxu0 %v3243
    %3245 = vmatprep.subr.mxu0 0.0
    %v3246 = vand.u32 %v608, 4294901760
    %3247 = vmatpush1.msra.mxu0 %v3246
    %3248 = vmatprep.subr.mxu0 0.0
    %v3249 = vand.u32 %v607, 4294901760
    %3250 = vmatpush1.msra.mxu0 %v3249
    %3251 = vmatprep.subr.mxu0 0.0
    %v3252 = vand.u32 %v606, 4294901760
    %3253 = vmatpush1.msra.mxu0 %v3252
    %3254 = vmatprep.subr.mxu0 0.0
    %3255 = vmatpush2.msra.mxu0 0.0
    %3256 = vmatprep.subr.mxu0 0.0
    %3257 = vmatpush2.msra.mxu0 0.0
    %3258 = vmatprep.subr.mxu0 0.0
    %3259 = vmatpush2.msra.mxu0 0.0
    %3260 = vmatprep.subr.mxu0 0.0
    %3261 = vmatpush2.msra.mxu0 0.0
    %3262 = vmatprep.subr.mxu0 0.0
    %3263 = vmatpush2.msra.mxu0 0.0
    %3264 = vmatprep.subr.mxu0 0.0
    %3265 = vmatpush2.msra.mxu0 0.0
    %3266 = vmatprep.subr.mxu0 0.0
    %3267 = vmatpush2.msra.mxu0 0.0
    %3268 = vmatprep.subr.mxu0 0.0
    %3269 = vmatpush2.msra.mxu0 0.0
    %3270 = vmatprep.subr.mxu0 0.0
    %3271 = vmatpush2.msra.mxu0 0.0
    %3272 = vmatprep.subr.mxu0 0.0
    %3273 = vmatpush2.msra.mxu0 0.0
    %3274 = vmatprep.subr.mxu0 0.0
    %3275 = vmatpush2.msra.mxu0 0.0
    %3276 = vmatprep.subr.mxu0 0.0
    %3277 = vmatpush2.msra.mxu0 0.0
    %3278 = vmatprep.subr.mxu0 0.0
    %3279 = vmatpush2.msra.mxu0 0.0
    %3280 = vmatprep.subr.mxu0 0.0
    %3281 = vmatpush2.msra.mxu0 0.0
    %3282 = vmatprep.subr.mxu0 0.0
    %3283 = vmatpush2.msra.mxu0 0.0
    %3284 = vmatprep.subr.mxu0 0.0
    %3285 = vmatpush2.msra.mxu0 0.0
    %3286 = vmatprep.mubr.f32.mxu0 0.0
    %v3287 = vand.u32 %v3216, 4294901760
    %v3288 = vsub.f32 %v3216, %v3287
    %v3289 = vand.u32 %v3288, 4294901760
    %v3290 = vsub.f32 %v3288, %v3289
    %v3291 = vand.u32 %v3290, 4294901760
    %3292 = vmatmul.mubr.f32.gmra.mxu0 %v3291
    %v3293 = vpop.f32.mrf.mxu0
    %v3294 = vadd.f32 0.0, %v3293
    %v3295 = vpop.f32.mrf.mxu0
    %3296 = vdwg.mxu0
    %3297 = vmatprep.subr.mxu0 0.0
    %3298 = vmatpush1.msra.mxu0 0.0
    %3299 = vmatprep.subr.mxu0 0.0
    %3300 = vmatpush1.msra.mxu0 0.0
    %3301 = vmatprep.subr.mxu0 0.0
    %3302 = vmatpush1.msra.mxu0 0.0
    %3303 = vmatprep.subr.mxu0 0.0
    %3304 = vmatpush1.msra.mxu0 0.0
    %3305 = vmatprep.subr.mxu0 0.0
    %3306 = vmatpush1.msra.mxu0 0.0
    %3307 = vmatprep.subr.mxu0 0.0
    %3308 = vmatpush1.msra.mxu0 0.0
    %3309 = vmatprep.subr.mxu0 0.0
    %3310 = vmatpush1.msra.mxu0 0.0
    %3311 = vmatprep.subr.mxu0 0.0
    %3312 = vmatpush1.msra.mxu0 0.0
    %3313 = vmatprep.subr.mxu0 0.0
    %3314 = vmatpush1.msra.mxu0 0.0
    %3315 = vmatprep.subr.mxu0 0.0
    %3316 = vmatpush1.msra.mxu0 0.0
    %3317 = vmatprep.subr.mxu0 0.0
    %3318 = vmatpush1.msra.mxu0 0.0
    %3319 = vmatprep.subr.mxu0 0.0
    %3320 = vmatpush1.msra.mxu0 0.0
    %3321 = vmatprep.subr.mxu0 0.0
    %v3322 = vand.u32 %v609, 4294901760
    %v3323 = vsub.f32 %v609, %v3322
    %v3324 = vand.u32 %v3323, 4294901760
    %v3325 = vsub.f32 %v3323, %v3324
    %v3326 = vand.u32 %v3325, 4294901760
    %3327 = vmatpush1.msra.mxu0 %v3326
    %3328 = vmatprep.subr.mxu0 0.0
    %v3329 = vand.u32 %v608, 4294901760
    %v3330 = vsub.f32 %v608, %v3329
    %v3331 = vand.u32 %v3330, 4294901760
    %v3332 = vsub.f32 %v3330, %v3331
    %v3333 = vand.u32 %v3332, 4294901760
    %3334 = vmatpush1.msra.mxu0 %v3333
    %3335 = vmatprep.subr.mxu0 0.0
    %v3336 = vand.u32 %v607, 4294901760
    %v3337 = vsub.f32 %v607, %v3336
    %v3338 = vand.u32 %v3337, 4294901760
    %v3339 = vsub.f32 %v3337, %v3338
    %v3340 = vand.u32 %v3339, 4294901760
    %3341 = vmatpush1.msra.mxu0 %v3340
    %3342 = vmatprep.subr.mxu0 0.0
    %v3343 = vand.u32 %v606, 4294901760
    %v3344 = vsub.f32 %v606, %v3343
    %v3345 = vand.u32 %v3344, 4294901760
    %v3346 = vsub.f32 %v3344, %v3345
    %v3347 = vand.u32 %v3346, 4294901760
    %3348 = vmatpush1.msra.mxu0 %v3347
    %3349 = vmatprep.subr.mxu0 0.0
    %3350 = vmatpush2.msra.mxu0 0.0
    %3351 = vmatprep.subr.mxu0 0.0
    %3352 = vmatpush2.msra.mxu0 0.0
    %3353 = vmatprep.subr.mxu0 0.0
    %3354 = vmatpush2.msra.mxu0 0.0
    %3355 = vmatprep.subr.mxu0 0.0
    %3356 = vmatpush2.msra.mxu0 0.0
    %3357 = vmatprep.subr.mxu0 0.0
    %3358 = vmatpush2.msra.mxu0 0.0
    %3359 = vmatprep.subr.mxu0 0.0
    %3360 = vmatpush2.msra.mxu0 0.0
    %3361 = vmatprep.subr.mxu0 0.0
    %3362 = vmatpush2.msra.mxu0 0.0
    %3363 = vmatprep.subr.mxu0 0.0
    %3364 = vmatpush2.msra.mxu0 0.0
    %3365 = vmatprep.subr.mxu0 0.0
    %3366 = vmatpush2.msra.mxu0 0.0
    %3367 = vmatprep.subr.mxu0 0.0
    %3368 = vmatpush2.msra.mxu0 0.0
    %3369 = vmatprep.subr.mxu0 0.0
    %3370 = vmatpush2.msra.mxu0 0.0
    %3371 = vmatprep.subr.mxu0 0.0
    %3372 = vmatpush2.msra.mxu0 0.0
    %3373 = vmatprep.subr.mxu0 0.0
    %3374 = vmatpush2.msra.mxu0 0.0
    %3375 = vmatprep.subr.mxu0 0.0
    %3376 = vmatpush2.msra.mxu0 0.0
    %3377 = vmatprep.subr.mxu0 0.0
    %3378 = vmatpush2.msra.mxu0 0.0
    %3379 = vmatprep.subr.mxu0 0.0
    %3380 = vmatpush2.msra.mxu0 0.0
    %3381 = vmatprep.mubr.f32.mxu0 0.0
    %v3382 = vand.u32 %v3216, 4294901760
    %3383 = vmatmul.mubr.f32.gmra.mxu0 %v3382
    %v3384 = vpop.f32.mrf.mxu0
    %v3385 = vadd.f32 %v3294, %v3384
    %v3386 = vpop.f32.mrf.mxu0
    %3387 = vdwg.mxu0
    %3388 = vmatprep.subr.mxu0 0.0
    %3389 = vmatpush1.msra.mxu0 0.0
    %3390 = vmatprep.subr.mxu0 0.0
    %3391 = vmatpush1.msra.mxu0 0.0
    %3392 = vmatprep.subr.mxu0 0.0
    %3393 = vmatpush1.msra.mxu0 0.0
    %3394 = vmatprep.subr.mxu0 0.0
    %3395 = vmatpush1.msra.mxu0 0.0
    %3396 = vmatprep.subr.mxu0 0.0
    %3397 = vmatpush1.msra.mxu0 0.0
    %3398 = vmatprep.subr.mxu0 0.0
    %3399 = vmatpush1.msra.mxu0 0.0
    %3400 = vmatprep.subr.mxu0 0.0
    %3401 = vmatpush1.msra.mxu0 0.0
    %3402 = vmatprep.subr.mxu0 0.0
    %3403 = vmatpush1.msra.mxu0 0.0
    %3404 = vmatprep.subr.mxu0 0.0
    %3405 = vmatpush1.msra.mxu0 0.0
    %3406 = vmatprep.subr.mxu0 0.0
    %3407 = vmatpush1.msra.mxu0 0.0
    %3408 = vmatprep.subr.mxu0 0.0
    %3409 = vmatpush1.msra.mxu0 0.0
    %3410 = vmatprep.subr.mxu0 0.0
    %3411 = vmatpush1.msra.mxu0 0.0
    %3412 = vmatprep.subr.mxu0 0.0
    %v3413 = vand.u32 %v609, 4294901760
    %v3414 = vsub.f32 %v609, %v3413
    %3415 = vmatpush1.msra.mxu0 %v3414
    %3416 = vmatprep.subr.mxu0 0.0
    %v3417 = vand.u32 %v608, 4294901760
    %v3418 = vsub.f32 %v608, %v3417
    %3419 = vmatpush1.msra.mxu0 %v3418
    %3420 = vmatprep.subr.mxu0 0.0
    %v3421 = vand.u32 %v607, 4294901760
    %v3422 = vsub.f32 %v607, %v3421
    %3423 = vmatpush1.msra.mxu0 %v3422
    %3424 = vmatprep.subr.mxu0 0.0
    %v3425 = vand.u32 %v606, 4294901760
    %v3426 = vsub.f32 %v606, %v3425
    %3427 = vmatpush1.msra.mxu0 %v3426
    %3428 = vmatprep.subr.mxu0 0.0
    %3429 = vmatpush2.msra.mxu0 0.0
    %3430 = vmatprep.subr.mxu0 0.0
    %3431 = vmatpush2.msra.mxu0 0.0
    %3432 = vmatprep.subr.mxu0 0.0
    %3433 = vmatpush2.msra.mxu0 0.0
    %3434 = vmatprep.subr.mxu0 0.0
    %3435 = vmatpush2.msra.mxu0 0.0
    %3436 = vmatprep.subr.mxu0 0.0
    %3437 = vmatpush2.msra.mxu0 0.0
    %3438 = vmatprep.subr.mxu0 0.0
    %3439 = vmatpush2.msra.mxu0 0.0
    %3440 = vmatprep.subr.mxu0 0.0
    %3441 = vmatpush2.msra.mxu0 0.0
    %3442 = vmatprep.subr.mxu0 0.0
    %3443 = vmatpush2.msra.mxu0 0.0
    %3444 = vmatprep.subr.mxu0 0.0
    %3445 = vmatpush2.msra.mxu0 0.0
    %3446 = vmatprep.subr.mxu0 0.0
    %3447 = vmatpush2.msra.mxu0 0.0
    %3448 = vmatprep.subr.mxu0 0.0
    %3449 = vmatpush2.msra.mxu0 0.0
    %3450 = vmatprep.subr.mxu0 0.0
    %3451 = vmatpush2.msra.mxu0 0.0
    %3452 = vmatprep.subr.mxu0 0.0
    %3453 = vmatpush2.msra.mxu0 0.0
    %3454 = vmatprep.subr.mxu0 0.0
    %3455 = vmatpush2.msra.mxu0 0.0
    %3456 = vmatprep.subr.mxu0 0.0
    %3457 = vmatpush2.msra.mxu0 0.0
    %3458 = vmatprep.subr.mxu0 0.0
    %3459 = vmatpush2.msra.mxu0 0.0
    %3460 = vmatprep.mubr.f32.mxu0 0.0
    %v3461 = vand.u32 %v3216, 4294901760
    %v3462 = vsub.f32 %v3216, %v3461
    %3463 = vmatmul.mubr.f32.gmra.mxu0 %v3462
    %v3464 = vpop.f32.mrf.mxu0
    %v3465 = vadd.f32 %v3385, %v3464
    %v3466 = vpop.f32.mrf.mxu0
    %3467 = vdwg.mxu0
    %3468 = vmatprep.subr.mxu0 0.0
    %3469 = vmatpush1.msra.mxu0 0.0
    %3470 = vmatprep.subr.mxu0 0.0
    %3471 = vmatpush1.msra.mxu0 0.0
    %3472 = vmatprep.subr.mxu0 0.0
    %3473 = vmatpush1.msra.mxu0 0.0
    %3474 = vmatprep.subr.mxu0 0.0
    %3475 = vmatpush1.msra.mxu0 0.0
    %3476 = vmatprep.subr.mxu0 0.0
    %3477 = vmatpush1.msra.mxu0 0.0
    %3478 = vmatprep.subr.mxu0 0.0
    %3479 = vmatpush1.msra.mxu0 0.0
    %3480 = vmatprep.subr.mxu0 0.0
    %3481 = vmatpush1.msra.mxu0 0.0
    %3482 = vmatprep.subr.mxu0 0.0
    %3483 = vmatpush1.msra.mxu0 0.0
    %3484 = vmatprep.subr.mxu0 0.0
    %3485 = vmatpush1.msra.mxu0 0.0
    %3486 = vmatprep.subr.mxu0 0.0
    %3487 = vmatpush1.msra.mxu0 0.0
    %3488 = vmatprep.subr.mxu0 0.0
    %3489 = vmatpush1.msra.mxu0 0.0
    %3490 = vmatprep.subr.mxu0 0.0
    %3491 = vmatpush1.msra.mxu0 0.0
    %3492 = vmatprep.subr.mxu0 0.0
    %v3493 = vand.u32 %v609, 4294901760
    %3494 = vmatpush1.msra.mxu0 %v3493
    %3495 = vmatprep.subr.mxu0 0.0
    %v3496 = vand.u32 %v608, 4294901760
    %3497 = vmatpush1.msra.mxu0 %v3496
    %3498 = vmatprep.subr.mxu0 0.0
    %v3499 = vand.u32 %v607, 4294901760
    %3500 = vmatpush1.msra.mxu0 %v3499
    %3501 = vmatprep.subr.mxu0 0.0
    %v3502 = vand.u32 %v606, 4294901760
    %3503 = vmatpush1.msra.mxu0 %v3502
    %3504 = vmatprep.subr.mxu0 0.0
    %3505 = vmatpush2.msra.mxu0 0.0
    %3506 = vmatprep.subr.mxu0 0.0
    %3507 = vmatpush2.msra.mxu0 0.0
    %3508 = vmatprep.subr.mxu0 0.0
    %3509 = vmatpush2.msra.mxu0 0.0
    %3510 = vmatprep.subr.mxu0 0.0
    %3511 = vmatpush2.msra.mxu0 0.0
    %3512 = vmatprep.subr.mxu0 0.0
    %3513 = vmatpush2.msra.mxu0 0.0
    %3514 = vmatprep.subr.mxu0 0.0
    %3515 = vmatpush2.msra.mxu0 0.0
    %3516 = vmatprep.subr.mxu0 0.0
    %3517 = vmatpush2.msra.mxu0 0.0
    %3518 = vmatprep.subr.mxu0 0.0
    %3519 = vmatpush2.msra.mxu0 0.0
    %3520 = vmatprep.subr.mxu0 0.0
    %3521 = vmatpush2.msra.mxu0 0.0
    %3522 = vmatprep.subr.mxu0 0.0
    %3523 = vmatpush2.msra.mxu0 0.0
    %3524 = vmatprep.subr.mxu0 0.0
    %3525 = vmatpush2.msra.mxu0 0.0
    %3526 = vmatprep.subr.mxu0 0.0
    %3527 = vmatpush2.msra.mxu0 0.0
    %3528 = vmatprep.subr.mxu0 0.0
    %3529 = vmatpush2.msra.mxu0 0.0
    %3530 = vmatprep.subr.mxu0 0.0
    %3531 = vmatpush2.msra.mxu0 0.0
    %3532 = vmatprep.subr.mxu0 0.0
    %3533 = vmatpush2.msra.mxu0 0.0
    %3534 = vmatprep.subr.mxu0 0.0
    %3535 = vmatpush2.msra.mxu0 0.0
    %3536 = vmatprep.mubr.f32.mxu0 0.0
    %v3537 = vand.u32 %v3216, 4294901760
    %v3538 = vsub.f32 %v3216, %v3537
    %v3539 = vand.u32 %v3538, 4294901760
    %3540 = vmatmul.mubr.f32.gmra.mxu0 %v3539
    %v3541 = vpop.f32.mrf.mxu0
    %v3542 = vadd.f32 %v3465, %v3541
    %v3543 = vpop.f32.mrf.mxu0
    %3544 = vdwg.mxu0
    %3545 = vmatprep.subr.mxu0 0.0
    %3546 = vmatpush1.msra.mxu0 0.0
    %3547 = vmatprep.subr.mxu0 0.0
    %3548 = vmatpush1.msra.mxu0 0.0
    %3549 = vmatprep.subr.mxu0 0.0
    %3550 = vmatpush1.msra.mxu0 0.0
    %3551 = vmatprep.subr.mxu0 0.0
    %3552 = vmatpush1.msra.mxu0 0.0
    %3553 = vmatprep.subr.mxu0 0.0
    %3554 = vmatpush1.msra.mxu0 0.0
    %3555 = vmatprep.subr.mxu0 0.0
    %3556 = vmatpush1.msra.mxu0 0.0
    %3557 = vmatprep.subr.mxu0 0.0
    %3558 = vmatpush1.msra.mxu0 0.0
    %3559 = vmatprep.subr.mxu0 0.0
    %3560 = vmatpush1.msra.mxu0 0.0
    %3561 = vmatprep.subr.mxu0 0.0
    %3562 = vmatpush1.msra.mxu0 0.0
    %3563 = vmatprep.subr.mxu0 0.0
    %3564 = vmatpush1.msra.mxu0 0.0
    %3565 = vmatprep.subr.mxu0 0.0
    %3566 = vmatpush1.msra.mxu0 0.0
    %3567 = vmatprep.subr.mxu0 0.0
    %3568 = vmatpush1.msra.mxu0 0.0
    %3569 = vmatprep.subr.mxu0 0.0
    %v3570 = vand.u32 %v609, 4294901760
    %v3571 = vsub.f32 %v609, %v3570
    %v3572 = vand.u32 %v3571, 4294901760
    %3573 = vmatpush1.msra.mxu0 %v3572
    %3574 = vmatprep.subr.mxu0 0.0
    %v3575 = vand.u32 %v608, 4294901760
    %v3576 = vsub.f32 %v608, %v3575
    %v3577 = vand.u32 %v3576, 4294901760
    %3578 = vmatpush1.msra.mxu0 %v3577
    %3579 = vmatprep.subr.mxu0 0.0
    %v3580 = vand.u32 %v607, 4294901760
    %v3581 = vsub.f32 %v607, %v3580
    %v3582 = vand.u32 %v3581, 4294901760
    %3583 = vmatpush1.msra.mxu0 %v3582
    %3584 = vmatprep.subr.mxu0 0.0
    %v3585 = vand.u32 %v606, 4294901760
    %v3586 = vsub.f32 %v606, %v3585
    %v3587 = vand.u32 %v3586, 4294901760
    %3588 = vmatpush1.msra.mxu0 %v3587
    %3589 = vmatprep.subr.mxu0 0.0
    %3590 = vmatpush2.msra.mxu0 0.0
    %3591 = vmatprep.subr.mxu0 0.0
    %3592 = vmatpush2.msra.mxu0 0.0
    %3593 = vmatprep.subr.mxu0 0.0
    %3594 = vmatpush2.msra.mxu0 0.0
    %3595 = vmatprep.subr.mxu0 0.0
    %3596 = vmatpush2.msra.mxu0 0.0
    %3597 = vmatprep.subr.mxu0 0.0
    %3598 = vmatpush2.msra.mxu0 0.0
    %3599 = vmatprep.subr.mxu0 0.0
    %3600 = vmatpush2.msra.mxu0 0.0
    %3601 = vmatprep.subr.mxu0 0.0
    %3602 = vmatpush2.msra.mxu0 0.0
    %3603 = vmatprep.subr.mxu0 0.0
    %3604 = vmatpush2.msra.mxu0 0.0
    %3605 = vmatprep.subr.mxu0 0.0
    %3606 = vmatpush2.msra.mxu0 0.0
    %3607 = vmatprep.subr.mxu0 0.0
    %3608 = vmatpush2.msra.mxu0 0.0
    %3609 = vmatprep.subr.mxu0 0.0
    %3610 = vmatpush2.msra.mxu0 0.0
    %3611 = vmatprep.subr.mxu0 0.0
    %3612 = vmatpush2.msra.mxu0 0.0
    %3613 = vmatprep.subr.mxu0 0.0
    %3614 = vmatpush2.msra.mxu0 0.0
    %3615 = vmatprep.subr.mxu0 0.0
    %3616 = vmatpush2.msra.mxu0 0.0
    %3617 = vmatprep.subr.mxu0 0.0
    %3618 = vmatpush2.msra.mxu0 0.0
    %3619 = vmatprep.subr.mxu0 0.0
    %3620 = vmatpush2.msra.mxu0 0.0
    %3621 = vmatprep.mubr.f32.mxu0 0.0
    %v3622 = vand.u32 %v3216, 4294901760
    %3623 = vmatmul.mubr.f32.gmra.mxu0 %v3622
    %v3624 = vpop.f32.mrf.mxu0
    %v3625 = vadd.f32 %v3542, %v3624
    %v3626 = vpop.f32.mrf.mxu0
    %3627 = vdwg.mxu0
    %3628 = vmatprep.subr.mxu0 0.0
    %3629 = vmatpush1.msra.mxu0 0.0
    %3630 = vmatprep.subr.mxu0 0.0
    %3631 = vmatpush1.msra.mxu0 0.0
    %3632 = vmatprep.subr.mxu0 0.0
    %3633 = vmatpush1.msra.mxu0 0.0
    %3634 = vmatprep.subr.mxu0 0.0
    %3635 = vmatpush1.msra.mxu0 0.0
    %3636 = vmatprep.subr.mxu0 0.0
    %3637 = vmatpush1.msra.mxu0 0.0
    %3638 = vmatprep.subr.mxu0 0.0
    %3639 = vmatpush1.msra.mxu0 0.0
    %3640 = vmatprep.subr.mxu0 0.0
    %3641 = vmatpush1.msra.mxu0 0.0
    %3642 = vmatprep.subr.mxu0 0.0
    %3643 = vmatpush1.msra.mxu0 0.0
    %3644 = vmatprep.subr.mxu0 0.0
    %3645 = vmatpush1.msra.mxu0 0.0
    %3646 = vmatprep.subr.mxu0 0.0
    %3647 = vmatpush1.msra.mxu0 0.0
    %3648 = vmatprep.subr.mxu0 0.0
    %3649 = vmatpush1.msra.mxu0 0.0
    %3650 = vmatprep.subr.mxu0 0.0
    %3651 = vmatpush1.msra.mxu0 0.0
    %3652 = vmatprep.subr.mxu0 0.0
    %v3653 = vand.u32 %v609, 4294901760
    %3654 = vmatpush1.msra.mxu0 %v3653
    %3655 = vmatprep.subr.mxu0 0.0
    %v3656 = vand.u32 %v608, 4294901760
    %3657 = vmatpush1.msra.mxu0 %v3656
    %3658 = vmatprep.subr.mxu0 0.0
    %v3659 = vand.u32 %v607, 4294901760
    %3660 = vmatpush1.msra.mxu0 %v3659
    %3661 = vmatprep.subr.mxu0 0.0
    %v3662 = vand.u32 %v606, 4294901760
    %3663 = vmatpush1.msra.mxu0 %v3662
    %3664 = vmatprep.subr.mxu0 0.0
    %3665 = vmatpush2.msra.mxu0 0.0
    %3666 = vmatprep.subr.mxu0 0.0
    %3667 = vmatpush2.msra.mxu0 0.0
    %3668 = vmatprep.subr.mxu0 0.0
    %3669 = vmatpush2.msra.mxu0 0.0
    %3670 = vmatprep.subr.mxu0 0.0
    %3671 = vmatpush2.msra.mxu0 0.0
    %3672 = vmatprep.subr.mxu0 0.0
    %3673 = vmatpush2.msra.mxu0 0.0
    %3674 = vmatprep.subr.mxu0 0.0
    %3675 = vmatpush2.msra.mxu0 0.0
    %3676 = vmatprep.subr.mxu0 0.0
    %3677 = vmatpush2.msra.mxu0 0.0
    %3678 = vmatprep.subr.mxu0 0.0
    %3679 = vmatpush2.msra.mxu0 0.0
    %3680 = vmatprep.subr.mxu0 0.0
    %3681 = vmatpush2.msra.mxu0 0.0
    %3682 = vmatprep.subr.mxu0 0.0
    %3683 = vmatpush2.msra.mxu0 0.0
    %3684 = vmatprep.subr.mxu0 0.0
    %3685 = vmatpush2.msra.mxu0 0.0
    %3686 = vmatprep.subr.mxu0 0.0
    %3687 = vmatpush2.msra.mxu0 0.0
    %3688 = vmatprep.subr.mxu0 0.0
    %3689 = vmatpush2.msra.mxu0 0.0
    %3690 = vmatprep.subr.mxu0 0.0
    %3691 = vmatpush2.msra.mxu0 0.0
    %3692 = vmatprep.subr.mxu0 0.0
    %3693 = vmatpush2.msra.mxu0 0.0
    %3694 = vmatprep.subr.mxu0 0.0
    %3695 = vmatpush2.msra.mxu0 0.0
    %3696 = vmatprep.mubr.f32.mxu0 0.0
    %v3697 = vand.u32 %v3216, 4294901760
    %3698 = vmatmul.mubr.f32.gmra.mxu0 %v3697
    %v3699 = vpop.f32.mrf.mxu0
    %v3700 = vadd.f32 %v3625, %v3699
    %v3701 = vpop.f32.mrf.mxu0
    %3702 = vdwg.mxu0
    %v3704 = vrot.slane %v3700, 4
    %v3706 = vadd.f32 %v602, %v3704
    %v3707 = vtanh.pop %v3706
    %v3708 = vadd.f32 %v3707, 1.0
    %v3709 = vmul.f32 %v3708, 0.5
    %v3711 = vrot.slane %v3205, 6
    %v3713 = vmul.f32 %v3709, %v3711
    %3715 = vrot.lane.b32.xlu0 %v3707, 64
    %v3716 = vpop.permute.xlu0 %3715
    %v3718 = vmul.f32 %v3709, %v3716
    %3720 = vrot.lane.b32.xlu0 %v3718, 32
    %v3721 = vpop.permute.xlu0 %3720
    %v3723 = vadd.f32 %v3713, %v3721
    %v3724 = vtanh.pop %v3723
    %3726 = vrot.lane.b32.xlu0 %v3724, 64
    %v3727 = vpop.permute.xlu0 %3726
    %v3729 = vmul.f32 %v3709, %v3727
    %v3731 = vrot.slane %v3729, 4
    %3732 = vrot.lane.b32.xlu0 %v3731, 32
    %v3733 = vpop.permute.xlu0 %3732
    %v3734 = vsel %vm627, %v3733, 0
    %3736 = vmatprep.subr.mxu0 0.0
    %3737 = vmatpush1.msra.mxu0 0.0
    %3738 = vmatprep.subr.mxu0 0.0
    %3739 = vmatpush1.msra.mxu0 0.0
    %3740 = vmatprep.subr.mxu0 0.0
    %3741 = vmatpush1.msra.mxu0 0.0
    %3742 = vmatprep.subr.mxu0 0.0
    %3743 = vmatpush1.msra.mxu0 0.0
    %3744 = vmatprep.subr.mxu0 0.0
    %3745 = vmatpush1.msra.mxu0 0.0
    %3746 = vmatprep.subr.mxu0 0.0
    %3747 = vmatpush1.msra.mxu0 0.0
    %3748 = vmatprep.subr.mxu0 0.0
    %3749 = vmatpush1.msra.mxu0 0.0
    %3750 = vmatprep.subr.mxu0 0.0
    %3751 = vmatpush1.msra.mxu0 0.0
    %3752 = vmatprep.subr.mxu0 0.0
    %3753 = vmatpush1.msra.mxu0 0.0
    %3754 = vmatprep.subr.mxu0 0.0
    %3755 = vmatpush1.msra.mxu0 0.0
    %3756 = vmatprep.subr.mxu0 0.0
    %3757 = vmatpush1.msra.mxu0 0.0
    %3758 = vmatprep.subr.mxu0 0.0
    %3759 = vmatpush1.msra.mxu0 0.0
    %3760 = vmatprep.subr.mxu0 0.0
    %v3761 = vand.u32 %v609, 4294901760
    %3762 = vmatpush1.msra.mxu0 %v3761
    %3763 = vmatprep.subr.mxu0 0.0
    %v3764 = vand.u32 %v608, 4294901760
    %3765 = vmatpush1.msra.mxu0 %v3764
    %3766 = vmatprep.subr.mxu0 0.0
    %v3767 = vand.u32 %v607, 4294901760
    %3768 = vmatpush1.msra.mxu0 %v3767
    %3769 = vmatprep.subr.mxu0 0.0
    %v3770 = vand.u32 %v606, 4294901760
    %3771 = vmatpush1.msra.mxu0 %v3770
    %3772 = vmatprep.subr.mxu0 0.0
    %3773 = vmatpush2.msra.mxu0 0.0
    %3774 = vmatprep.subr.mxu0 0.0
    %3775 = vmatpush2.msra.mxu0 0.0
    %3776 = vmatprep.subr.mxu0 0.0
    %3777 = vmatpush2.msra.mxu0 0.0
    %3778 = vmatprep.subr.mxu0 0.0
    %3779 = vmatpush2.msra.mxu0 0.0
    %3780 = vmatprep.subr.mxu0 0.0
    %3781 = vmatpush2.msra.mxu0 0.0
    %3782 = vmatprep.subr.mxu0 0.0
    %3783 = vmatpush2.msra.mxu0 0.0
    %3784 = vmatprep.subr.mxu0 0.0
    %3785 = vmatpush2.msra.mxu0 0.0
    %3786 = vmatprep.subr.mxu0 0.0
    %3787 = vmatpush2.msra.mxu0 0.0
    %3788 = vmatprep.subr.mxu0 0.0
    %3789 = vmatpush2.msra.mxu0 0.0
    %3790 = vmatprep.subr.mxu0 0.0
    %3791 = vmatpush2.msra.mxu0 0.0
    %3792 = vmatprep.subr.mxu0 0.0
    %3793 = vmatpush2.msra.mxu0 0.0
    %3794 = vmatprep.subr.mxu0 0.0
    %3795 = vmatpush2.msra.mxu0 0.0
    %3796 = vmatprep.subr.mxu0 0.0
    %3797 = vmatpush2.msra.mxu0 0.0
    %3798 = vmatprep.subr.mxu0 0.0
    %3799 = vmatpush2.msra.mxu0 0.0
    %3800 = vmatprep.subr.mxu0 0.0
    %3801 = vmatpush2.msra.mxu0 0.0
    %3802 = vmatprep.subr.mxu0 0.0
    %3803 = vmatpush2.msra.mxu0 0.0
    %3804 = vmatprep.mubr.f32.mxu0 0.0
    %v3805 = vand.u32 %v3734, 4294901760
    %v3806 = vsub.f32 %v3734, %v3805
    %v3807 = vand.u32 %v3806, 4294901760
    %v3808 = vsub.f32 %v3806, %v3807
    %v3809 = vand.u32 %v3808, 4294901760
    %3810 = vmatmul.mubr.f32.gmra.mxu0 %v3809
    %v3811 = vpop.f32.mrf.mxu0
    %v3812 = vadd.f32 0.0, %v3811
    %v3813 = vpop.f32.mrf.mxu0
    %3814 = vdwg.mxu0
    %3815 = vmatprep.subr.mxu0 0.0
    %3816 = vmatpush1.msra.mxu0 0.0
    %3817 = vmatprep.subr.mxu0 0.0
    %3818 = vmatpush1.msra.mxu0 0.0
    %3819 = vmatprep.subr.mxu0 0.0
    %3820 = vmatpush1.msra.mxu0 0.0
    %3821 = vmatprep.subr.mxu0 0.0
    %3822 = vmatpush1.msra.mxu0 0.0
    %3823 = vmatprep.subr.mxu0 0.0
    %3824 = vmatpush1.msra.mxu0 0.0
    %3825 = vmatprep.subr.mxu0 0.0
    %3826 = vmatpush1.msra.mxu0 0.0
    %3827 = vmatprep.subr.mxu0 0.0
    %3828 = vmatpush1.msra.mxu0 0.0
    %3829 = vmatprep.subr.mxu0 0.0
    %3830 = vmatpush1.msra.mxu0 0.0
    %3831 = vmatprep.subr.mxu0 0.0
    %3832 = vmatpush1.msra.mxu0 0.0
    %3833 = vmatprep.subr.mxu0 0.0
    %3834 = vmatpush1.msra.mxu0 0.0
    %3835 = vmatprep.subr.mxu0 0.0
    %3836 = vmatpush1.msra.mxu0 0.0
    %3837 = vmatprep.subr.mxu0 0.0
    %3838 = vmatpush1.msra.mxu0 0.0
    %3839 = vmatprep.subr.mxu0 0.0
    %v3840 = vand.u32 %v609, 4294901760
    %v3841 = vsub.f32 %v609, %v3840
    %v3842 = vand.u32 %v3841, 4294901760
    %v3843 = vsub.f32 %v3841, %v3842
    %v3844 = vand.u32 %v3843, 4294901760
    %3845 = vmatpush1.msra.mxu0 %v3844
    %3846 = vmatprep.subr.mxu0 0.0
    %v3847 = vand.u32 %v608, 4294901760
    %v3848 = vsub.f32 %v608, %v3847
    %v3849 = vand.u32 %v3848, 4294901760
    %v3850 = vsub.f32 %v3848, %v3849
    %v3851 = vand.u32 %v3850, 4294901760
    %3852 = vmatpush1.msra.mxu0 %v3851
    %3853 = vmatprep.subr.mxu0 0.0
    %v3854 = vand.u32 %v607, 4294901760
    %v3855 = vsub.f32 %v607, %v3854
    %v3856 = vand.u32 %v3855, 4294901760
    %v3857 = vsub.f32 %v3855, %v3856
    %v3858 = vand.u32 %v3857, 4294901760
    %3859 = vmatpush1.msra.mxu0 %v3858
    %3860 = vmatprep.subr.mxu0 0.0
    %v3861 = vand.u32 %v606, 4294901760
    %v3862 = vsub.f32 %v606, %v3861
    %v3863 = vand.u32 %v3862, 4294901760
    %v3864 = vsub.f32 %v3862, %v3863
    %v3865 = vand.u32 %v3864, 4294901760
    %3866 = vmatpush1.msra.mxu0 %v3865
    %3867 = vmatprep.subr.mxu0 0.0
    %3868 = vmatpush2.msra.mxu0 0.0
    %3869 = vmatprep.subr.mxu0 0.0
    %3870 = vmatpush2.msra.mxu0 0.0
    %3871 = vmatprep.subr.mxu0 0.0
    %3872 = vmatpush2.msra.mxu0 0.0
    %3873 = vmatprep.subr.mxu0 0.0
    %3874 = vmatpush2.msra.mxu0 0.0
    %3875 = vmatprep.subr.mxu0 0.0
    %3876 = vmatpush2.msra.mxu0 0.0
    %3877 = vmatprep.subr.mxu0 0.0
    %3878 = vmatpush2.msra.mxu0 0.0
    %3879 = vmatprep.subr.mxu0 0.0
    %3880 = vmatpush2.msra.mxu0 0.0
    %3881 = vmatprep.subr.mxu0 0.0
    %3882 = vmatpush2.msra.mxu0 0.0
    %3883 = vmatprep.subr.mxu0 0.0
    %3884 = vmatpush2.msra.mxu0 0.0
    %3885 = vmatprep.subr.mxu0 0.0
    %3886 = vmatpush2.msra.mxu0 0.0
    %3887 = vmatprep.subr.mxu0 0.0
    %3888 = vmatpush2.msra.mxu0 0.0
    %3889 = vmatprep.subr.mxu0 0.0
    %3890 = vmatpush2.msra.mxu0 0.0
    %3891 = vmatprep.subr.mxu0 0.0
    %3892 = vmatpush2.msra.mxu0 0.0
    %3893 = vmatprep.subr.mxu0 0.0
    %3894 = vmatpush2.msra.mxu0 0.0
    %3895 = vmatprep.subr.mxu0 0.0
    %3896 = vmatpush2.msra.mxu0 0.0
    %3897 = vmatprep.subr.mxu0 0.0
    %3898 = vmatpush2.msra.mxu0 0.0
    %3899 = vmatprep.mubr.f32.mxu0 0.0
    %v3900 = vand.u32 %v3734, 4294901760
    %3901 = vmatmul.mubr.f32.gmra.mxu0 %v3900
    %v3902 = vpop.f32.mrf.mxu0
    %v3903 = vadd.f32 %v3812, %v3902
    %v3904 = vpop.f32.mrf.mxu0
    %3905 = vdwg.mxu0
    %3906 = vmatprep.subr.mxu0 0.0
    %3907 = vmatpush1.msra.mxu0 0.0
    %3908 = vmatprep.subr.mxu0 0.0
    %3909 = vmatpush1.msra.mxu0 0.0
    %3910 = vmatprep.subr.mxu0 0.0
    %3911 = vmatpush1.msra.mxu0 0.0
    %3912 = vmatprep.subr.mxu0 0.0
    %3913 = vmatpush1.msra.mxu0 0.0
    %3914 = vmatprep.subr.mxu0 0.0
    %3915 = vmatpush1.msra.mxu0 0.0
    %3916 = vmatprep.subr.mxu0 0.0
    %3917 = vmatpush1.msra.mxu0 0.0
    %3918 = vmatprep.subr.mxu0 0.0
    %3919 = vmatpush1.msra.mxu0 0.0
    %3920 = vmatprep.subr.mxu0 0.0
    %3921 = vmatpush1.msra.mxu0 0.0
    %3922 = vmatprep.subr.mxu0 0.0
    %3923 = vmatpush1.msra.mxu0 0.0
    %3924 = vmatprep.subr.mxu0 0.0
    %3925 = vmatpush1.msra.mxu0 0.0
    %3926 = vmatprep.subr.mxu0 0.0
    %3927 = vmatpush1.msra.mxu0 0.0
    %3928 = vmatprep.subr.mxu0 0.0
    %3929 = vmatpush1.msra.mxu0 0.0
    %3930 = vmatprep.subr.mxu0 0.0
    %v3931 = vand.u32 %v609, 4294901760
    %v3932 = vsub.f32 %v609, %v3931
    %3933 = vmatpush1.msra.mxu0 %v3932
    %3934 = vmatprep.subr.mxu0 0.0
    %v3935 = vand.u32 %v608, 4294901760
    %v3936 = vsub.f32 %v608, %v3935
    %3937 = vmatpush1.msra.mxu0 %v3936
    %3938 = vmatprep.subr.mxu0 0.0
    %v3939 = vand.u32 %v607, 4294901760
    %v3940 = vsub.f32 %v607, %v3939
    %3941 = vmatpush1.msra.mxu0 %v3940
    %3942 = vmatprep.subr.mxu0 0.0
    %v3943 = vand.u32 %v606, 4294901760
    %v3944 = vsub.f32 %v606, %v3943
    %3945 = vmatpush1.msra.mxu0 %v3944
    %3946 = vmatprep.subr.mxu0 0.0
    %3947 = vmatpush2.msra.mxu0 0.0
    %3948 = vmatprep.subr.mxu0 0.0
    %3949 = vmatpush2.msra.mxu0 0.0
    %3950 = vmatprep.subr.mxu0 0.0
    %3951 = vmatpush2.msra.mxu0 0.0
    %3952 = vmatprep.subr.mxu0 0.0
    %3953 = vmatpush2.msra.mxu0 0.0
    %3954 = vmatprep.subr.mxu0 0.0
    %3955 = vmatpush2.msra.mxu0 0.0
    %3956 = vmatprep.subr.mxu0 0.0
    %3957 = vmatpush2.msra.mxu0 0.0
    %3958 = vmatprep.subr.mxu0 0.0
    %3959 = vmatpush2.msra.mxu0 0.0
    %3960 = vmatprep.subr.mxu0 0.0
    %3961 = vmatpush2.msra.mxu0 0.0
    %3962 = vmatprep.subr.mxu0 0.0
    %3963 = vmatpush2.msra.mxu0 0.0
    %3964 = vmatprep.subr.mxu0 0.0
    %3965 = vmatpush2.msra.mxu0 0.0
    %3966 = vmatprep.subr.mxu0 0.0
    %3967 = vmatpush2.msra.mxu0 0.0
    %3968 = vmatprep.subr.mxu0 0.0
    %3969 = vmatpush2.msra.mxu0 0.0
    %3970 = vmatprep.subr.mxu0 0.0
    %3971 = vmatpush2.msra.mxu0 0.0
    %3972 = vmatprep.subr.mxu0 0.0
    %3973 = vmatpush2.msra.mxu0 0.0
    %3974 = vmatprep.subr.mxu0 0.0
    %3975 = vmatpush2.msra.mxu0 0.0
    %3976 = vmatprep.subr.mxu0 0.0
    %3977 = vmatpush2.msra.mxu0 0.0
    %3978 = vmatprep.mubr.f32.mxu0 0.0
    %v3979 = vand.u32 %v3734, 4294901760
    %v3980 = vsub.f32 %v3734, %v3979
    %3981 = vmatmul.mubr.f32.gmra.mxu0 %v3980
    %v3982 = vpop.f32.mrf.mxu0
    %v3983 = vadd.f32 %v3903, %v3982
    %v3984 = vpop.f32.mrf.mxu0
    %3985 = vdwg.mxu0
    %3986 = vmatprep.subr.mxu0 0.0
    %3987 = vmatpush1.msra.mxu0 0.0
    %3988 = vmatprep.subr.mxu0 0.0
    %3989 = vmatpush1.msra.mxu0 0.0
    %3990 = vmatprep.subr.mxu0 0.0
    %3991 = vmatpush1.msra.mxu0 0.0
    %3992 = vmatprep.subr.mxu0 0.0
    %3993 = vmatpush1.msra.mxu0 0.0
    %3994 = vmatprep.subr.mxu0 0.0
    %3995 = vmatpush1.msra.mxu0 0.0
    %3996 = vmatprep.subr.mxu0 0.0
    %3997 = vmatpush1.msra.mxu0 0.0
    %3998 = vmatprep.subr.mxu0 0.0
    %3999 = vmatpush1.msra.mxu0 0.0
    %4000 = vmatprep.subr.mxu0 0.0
    %4001 = vmatpush1.msra.mxu0 0.0
    %4002 = vmatprep.subr.mxu0 0.0
    %4003 = vmatpush1.msra.mxu0 0.0
    %4004 = vmatprep.subr.mxu0 0.0
    %4005 = vmatpush1.msra.mxu0 0.0
    %4006 = vmatprep.subr.mxu0 0.0
    %4007 = vmatpush1.msra.mxu0 0.0
    %4008 = vmatprep.subr.mxu0 0.0
    %4009 = vmatpush1.msra.mxu0 0.0
    %4010 = vmatprep.subr.mxu0 0.0
    %v4011 = vand.u32 %v609, 4294901760
    %4012 = vmatpush1.msra.mxu0 %v4011
    %4013 = vmatprep.subr.mxu0 0.0
    %v4014 = vand.u32 %v608, 4294901760
    %4015 = vmatpush1.msra.mxu0 %v4014
    %4016 = vmatprep.subr.mxu0 0.0
    %v4017 = vand.u32 %v607, 4294901760
    %4018 = vmatpush1.msra.mxu0 %v4017
    %4019 = vmatprep.subr.mxu0 0.0
    %v4020 = vand.u32 %v606, 4294901760
    %4021 = vmatpush1.msra.mxu0 %v4020
    %4022 = vmatprep.subr.mxu0 0.0
    %4023 = vmatpush2.msra.mxu0 0.0
    %4024 = vmatprep.subr.mxu0 0.0
    %4025 = vmatpush2.msra.mxu0 0.0
    %4026 = vmatprep.subr.mxu0 0.0
    %4027 = vmatpush2.msra.mxu0 0.0
    %4028 = vmatprep.subr.mxu0 0.0
    %4029 = vmatpush2.msra.mxu0 0.0
    %4030 = vmatprep.subr.mxu0 0.0
    %4031 = vmatpush2.msra.mxu0 0.0
    %4032 = vmatprep.subr.mxu0 0.0
    %4033 = vmatpush2.msra.mxu0 0.0
    %4034 = vmatprep.subr.mxu0 0.0
    %4035 = vmatpush2.msra.mxu0 0.0
    %4036 = vmatprep.subr.mxu0 0.0
    %4037 = vmatpush2.msra.mxu0 0.0
    %4038 = vmatprep.subr.mxu0 0.0
    %4039 = vmatpush2.msra.mxu0 0.0
    %4040 = vmatprep.subr.mxu0 0.0
    %4041 = vmatpush2.msra.mxu0 0.0
    %4042 = vmatprep.subr.mxu0 0.0
    %4043 = vmatpush2.msra.mxu0 0.0
    %4044 = vmatprep.subr.mxu0 0.0
    %4045 = vmatpush2.msra.mxu0 0.0
    %4046 = vmatprep.subr.mxu0 0.0
    %4047 = vmatpush2.msra.mxu0 0.0
    %4048 = vmatprep.subr.mxu0 0.0
    %4049 = vmatpush2.msra.mxu0 0.0
    %4050 = vmatprep.subr.mxu0 0.0
    %4051 = vmatpush2.msra.mxu0 0.0
    %4052 = vmatprep.subr.mxu0 0.0
    %4053 = vmatpush2.msra.mxu0 0.0
    %4054 = vmatprep.mubr.f32.mxu0 0.0
    %v4055 = vand.u32 %v3734, 4294901760
    %v4056 = vsub.f32 %v3734, %v4055
    %v4057 = vand.u32 %v4056, 4294901760
    %4058 = vmatmul.mubr.f32.gmra.mxu0 %v4057
    %v4059 = vpop.f32.mrf.mxu0
    %v4060 = vadd.f32 %v3983, %v4059
    %v4061 = vpop.f32.mrf.mxu0
    %4062 = vdwg.mxu0
    %4063 = vmatprep.subr.mxu0 0.0
    %4064 = vmatpush1.msra.mxu0 0.0
    %4065 = vmatprep.subr.mxu0 0.0
    %4066 = vmatpush1.msra.mxu0 0.0
    %4067 = vmatprep.subr.mxu0 0.0
    %4068 = vmatpush1.msra.mxu0 0.0
    %4069 = vmatprep.subr.mxu0 0.0
    %4070 = vmatpush1.msra.mxu0 0.0
    %4071 = vmatprep.subr.mxu0 0.0
    %4072 = vmatpush1.msra.mxu0 0.0
    %4073 = vmatprep.subr.mxu0 0.0
    %4074 = vmatpush1.msra.mxu0 0.0
    %4075 = vmatprep.subr.mxu0 0.0
    %4076 = vmatpush1.msra.mxu0 0.0
    %4077 = vmatprep.subr.mxu0 0.0
    %4078 = vmatpush1.msra.mxu0 0.0
    %4079 = vmatprep.subr.mxu0 0.0
    %4080 = vmatpush1.msra.mxu0 0.0
    %4081 = vmatprep.subr.mxu0 0.0
    %4082 = vmatpush1.msra.mxu0 0.0
    %4083 = vmatprep.subr.mxu0 0.0
    %4084 = vmatpush1.msra.mxu0 0.0
    %4085 = vmatprep.subr.mxu0 0.0
    %4086 = vmatpush1.msra.mxu0 0.0
    %4087 = vmatprep.subr.mxu0 0.0
    %v4088 = vand.u32 %v609, 4294901760
    %v4089 = vsub.f32 %v609, %v4088
    %v4090 = vand.u32 %v4089, 4294901760
    %4091 = vmatpush1.msra.mxu0 %v4090
    %4092 = vmatprep.subr.mxu0 0.0
    %v4093 = vand.u32 %v608, 4294901760
    %v4094 = vsub.f32 %v608, %v4093
    %v4095 = vand.u32 %v4094, 4294901760
    %4096 = vmatpush1.msra.mxu0 %v4095
    %4097 = vmatprep.subr.mxu0 0.0
    %v4098 = vand.u32 %v607, 4294901760
    %v4099 = vsub.f32 %v607, %v4098
    %v4100 = vand.u32 %v4099, 4294901760
    %4101 = vmatpush1.msra.mxu0 %v4100
    %4102 = vmatprep.subr.mxu0 0.0
    %v4103 = vand.u32 %v606, 4294901760
    %v4104 = vsub.f32 %v606, %v4103
    %v4105 = vand.u32 %v4104, 4294901760
    %4106 = vmatpush1.msra.mxu0 %v4105
    %4107 = vmatprep.subr.mxu0 0.0
    %4108 = vmatpush2.msra.mxu0 0.0
    %4109 = vmatprep.subr.mxu0 0.0
    %4110 = vmatpush2.msra.mxu0 0.0
    %4111 = vmatprep.subr.mxu0 0.0
    %4112 = vmatpush2.msra.mxu0 0.0
    %4113 = vmatprep.subr.mxu0 0.0
    %4114 = vmatpush2.msra.mxu0 0.0
    %4115 = vmatprep.subr.mxu0 0.0
    %4116 = vmatpush2.msra.mxu0 0.0
    %4117 = vmatprep.subr.mxu0 0.0
    %4118 = vmatpush2.msra.mxu0 0.0
    %4119 = vmatprep.subr.mxu0 0.0
    %4120 = vmatpush2.msra.mxu0 0.0
    %4121 = vmatprep.subr.mxu0 0.0
    %4122 = vmatpush2.msra.mxu0 0.0
    %4123 = vmatprep.subr.mxu0 0.0
    %4124 = vmatpush2.msra.mxu0 0.0
    %4125 = vmatprep.subr.mxu0 0.0
    %4126 = vmatpush2.msra.mxu0 0.0
    %4127 = vmatprep.subr.mxu0 0.0
    %4128 = vmatpush2.msra.mxu0 0.0
    %4129 = vmatprep.subr.mxu0 0.0
    %4130 = vmatpush2.msra.mxu0 0.0
    %4131 = vmatprep.subr.mxu0 0.0
    %4132 = vmatpush2.msra.mxu0 0.0
    %4133 = vmatprep.subr.mxu0 0.0
    %4134 = vmatpush2.msra.mxu0 0.0
    %4135 = vmatprep.subr.mxu0 0.0
    %4136 = vmatpush2.msra.mxu0 0.0
    %4137 = vmatprep.subr.mxu0 0.0
    %4138 = vmatpush2.msra.mxu0 0.0
    %4139 = vmatprep.mubr.f32.mxu0 0.0
    %v4140 = vand.u32 %v3734, 4294901760
    %4141 = vmatmul.mubr.f32.gmra.mxu0 %v4140
    %v4142 = vpop.f32.mrf.mxu0
    %v4143 = vadd.f32 %v4060, %v4142
    %v4144 = vpop.f32.mrf.mxu0
    %4145 = vdwg.mxu0
    %4146 = vmatprep.subr.mxu0 0.0
    %4147 = vmatpush1.msra.mxu0 0.0
    %4148 = vmatprep.subr.mxu0 0.0
    %4149 = vmatpush1.msra.mxu0 0.0
    %4150 = vmatprep.subr.mxu0 0.0
    %4151 = vmatpush1.msra.mxu0 0.0
    %4152 = vmatprep.subr.mxu0 0.0
    %4153 = vmatpush1.msra.mxu0 0.0
    %4154 = vmatprep.subr.mxu0 0.0
    %4155 = vmatpush1.msra.mxu0 0.0
    %4156 = vmatprep.subr.mxu0 0.0
    %4157 = vmatpush1.msra.mxu0 0.0
    %4158 = vmatprep.subr.mxu0 0.0
    %4159 = vmatpush1.msra.mxu0 0.0
    %4160 = vmatprep.subr.mxu0 0.0
    %4161 = vmatpush1.msra.mxu0 0.0
    %4162 = vmatprep.subr.mxu0 0.0
    %4163 = vmatpush1.msra.mxu0 0.0
    %4164 = vmatprep.subr.mxu0 0.0
    %4165 = vmatpush1.msra.mxu0 0.0
    %4166 = vmatprep.subr.mxu0 0.0
    %4167 = vmatpush1.msra.mxu0 0.0
    %4168 = vmatprep.subr.mxu0 0.0
    %4169 = vmatpush1.msra.mxu0 0.0
    %4170 = vmatprep.subr.mxu0 0.0
    %v4171 = vand.u32 %v609, 4294901760
    %4172 = vmatpush1.msra.mxu0 %v4171
    %4173 = vmatprep.subr.mxu0 0.0
    %v4174 = vand.u32 %v608, 4294901760
    %4175 = vmatpush1.msra.mxu0 %v4174
    %4176 = vmatprep.subr.mxu0 0.0
    %v4177 = vand.u32 %v607, 4294901760
    %4178 = vmatpush1.msra.mxu0 %v4177
    %4179 = vmatprep.subr.mxu0 0.0
    %v4180 = vand.u32 %v606, 4294901760
    %4181 = vmatpush1.msra.mxu0 %v4180
    %4182 = vmatprep.subr.mxu0 0.0
    %4183 = vmatpush2.msra.mxu0 0.0
    %4184 = vmatprep.subr.mxu0 0.0
    %4185 = vmatpush2.msra.mxu0 0.0
    %4186 = vmatprep.subr.mxu0 0.0
    %4187 = vmatpush2.msra.mxu0 0.0
    %4188 = vmatprep.subr.mxu0 0.0
    %4189 = vmatpush2.msra.mxu0 0.0
    %4190 = vmatprep.subr.mxu0 0.0
    %4191 = vmatpush2.msra.mxu0 0.0
    %4192 = vmatprep.subr.mxu0 0.0
    %4193 = vmatpush2.msra.mxu0 0.0
    %4194 = vmatprep.subr.mxu0 0.0
    %4195 = vmatpush2.msra.mxu0 0.0
    %4196 = vmatprep.subr.mxu0 0.0
    %4197 = vmatpush2.msra.mxu0 0.0
    %4198 = vmatprep.subr.mxu0 0.0
    %4199 = vmatpush2.msra.mxu0 0.0
    %4200 = vmatprep.subr.mxu0 0.0
    %4201 = vmatpush2.msra.mxu0 0.0
    %4202 = vmatprep.subr.mxu0 0.0
    %4203 = vmatpush2.msra.mxu0 0.0
    %4204 = vmatprep.subr.mxu0 0.0
    %4205 = vmatpush2.msra.mxu0 0.0
    %4206 = vmatprep.subr.mxu0 0.0
    %4207 = vmatpush2.msra.mxu0 0.0
    %4208 = vmatprep.subr.mxu0 0.0
    %4209 = vmatpush2.msra.mxu0 0.0
    %4210 = vmatprep.subr.mxu0 0.0
    %4211 = vmatpush2.msra.mxu0 0.0
    %4212 = vmatprep.subr.mxu0 0.0
    %4213 = vmatpush2.msra.mxu0 0.0
    %4214 = vmatprep.mubr.f32.mxu0 0.0
    %v4215 = vand.u32 %v3734, 4294901760
    %4216 = vmatmul.mubr.f32.gmra.mxu0 %v4215
    %v4217 = vpop.f32.mrf.mxu0
    %v4218 = vadd.f32 %v4143, %v4217
    %v4219 = vpop.f32.mrf.mxu0
    %4220 = vdwg.mxu0
    %v4222 = vrot.slane %v4218, 2
    %v4224 = vadd.f32 %v602, %v4222
    %v4225 = vtanh.pop %v4224
    %v4226 = vadd.f32 %v4225, 1.0
    %v4227 = vmul.f32 %v4226, 0.5
    %v4229 = vrot.slane %v3723, 6
    %v4231 = vmul.f32 %v4227, %v4229
    %4233 = vrot.lane.b32.xlu0 %v4225, 64
    %v4234 = vpop.permute.xlu0 %4233
    %v4236 = vmul.f32 %v4227, %v4234
    %4238 = vrot.lane.b32.xlu0 %v4236, 32
    %v4239 = vpop.permute.xlu0 %4238
    %v4241 = vadd.f32 %v4231, %v4239
    %v4242 = vtanh.pop %v4241
    %4244 = vrot.lane.b32.xlu0 %v4242, 64
    %v4245 = vpop.permute.xlu0 %4244
    %v4247 = vmul.f32 %v4227, %v4245
    %v4248 = vtanh.pop %v604
    %v4249 = vadd.f32 %v4248, 1.0
    %v4250 = vmul.f32 %v4249, 0.5
    %4252 = vrot.lane.b32.xlu0 %v4248, 64
    %v4253 = vpop.permute.xlu0 %4252
    %v4255 = vmul.f32 %v4250, %v4253
    %v4256 = vtanh.pop %v4255
    %4258 = vrot.lane.b32.xlu0 %v4256, 96
    %v4259 = vpop.permute.xlu0 %4258
    %v4261 = vmul.f32 %v4250, %v4259
    %4263 = vrot.lane.b32.xlu0 %v4247, 32
    %v4264 = vpop.permute.xlu0 %4263
    %4267 = vrot.lane.b32.xlu0 %v4261, 64
    %v4268 = vpop.permute.xlu0 %4267
    %v4270 = vsel %vm627, %v4264, %v4268
    %vm4271 = vcmask 523270
    %v4272 = vsel %vm4271, %v4270, 0.0
    %4273 = vadd.xlane.f32.xlu0 %v4272
    %v4274 = vpop.xlane.xlu0 %4273
    %v4275 = vrcp.pop 64.0
    %v4276 = vmul.f32 %v4274, %v4275
    %v4277 = vsub.f32 %v4270, %v4276
    %v4278 = vmul.f32 %v4277, %v4277
    %v4279 = vsel %vm4271, %v4278, 0.0
    %4280 = vadd.xlane.f32.xlu0 %v4279
    %v4281 = vpop.xlane.xlu0 %4280
    %v4282 = vmul.f32 %v4281, %v4275
    %v4283 = vadd.f32 %v4282, 1e-05
    %v4284 = vrsqrt.pop %v4283
    %v4285 = vmul.f32 %v4277, %v4284
    %v4286 = vld [vmem:[#allocation5 + $0x81] ss:$0 sm:$0xff]
    %v4287 = vmul.f32 %v4285, %v4286
    %v4288 = vld [vmem:[#allocation5 + $0x82] ss:$0 sm:$0xff]
    %v4289 = vadd.f32 %v4287, %v4288
    %v4290 = vld [vmem:[#allocation5] sm:$0xff]
    %v4291 = vld [vmem:[#allocation5 + $0x10] sm:$0xff]
    %v4292 = vld [vmem:[#allocation5 + $0x20] sm:$0xff]
    %v4293 = vld [vmem:[#allocation5 + $0x30] sm:$0xff]
    %v4294 = vld [vmem:[#allocation5 + $0x40] sm:$0xff]
    %v4295 = vld [vmem:[#allocation5 + $0x50] sm:$0xff]
    %v4296 = vld [vmem:[#allocation5 + $0x60] sm:$0xff]
    %v4297 = vld [vmem:[#allocation5 + $0x70] sm:$0xff]
    %v4298 = vld [vmem:[#allocation5 + $0x80] ss:$0 sm:$0xff]
    %v4300 = vrot.slane %v4289, 6
    %vm4301 = vcmask 523264
    %v4302 = vsel %vm4301, %v4300, 0
    %4304 = vmatprep.subr.mxu0 0.0
    %4305 = vmatpush1.msra.mxu0 0.0
    %4306 = vmatprep.subr.mxu0 0.0
    %4307 = vmatpush1.msra.mxu0 0.0
    %4308 = vmatprep.subr.mxu0 0.0
    %4309 = vmatpush1.msra.mxu0 0.0
    %4310 = vmatprep.subr.mxu0 0.0
    %4311 = vmatpush1.msra.mxu0 0.0
    %4312 = vmatprep.subr.mxu0 0.0
    %4313 = vmatpush1.msra.mxu0 0.0
    %4314 = vmatprep.subr.mxu0 0.0
    %4315 = vmatpush1.msra.mxu0 0.0
    %4316 = vmatprep.subr.mxu0 0.0
    %4317 = vmatpush1.msra.mxu0 0.0
    %4318 = vmatprep.subr.mxu0 0.0
    %4319 = vmatpush1.msra.mxu0 0.0
    %4320 = vmatprep.subr.mxu0 0.0
    %v4321 = vand.u32 %v4297, 4294901760
    %4322 = vmatpush1.msra.mxu0 %v4321
    %4323 = vmatprep.subr.mxu0 0.0
    %v4324 = vand.u32 %v4296, 4294901760
    %4325 = vmatpush1.msra.mxu0 %v4324
    %4326 = vmatprep.subr.mxu0 0.0
    %v4327 = vand.u32 %v4295, 4294901760
    %4328 = vmatpush1.msra.mxu0 %v4327
    %4329 = vmatprep.subr.mxu0 0.0
    %v4330 = vand.u32 %v4294, 4294901760
    %4331 = vmatpush1.msra.mxu0 %v4330
    %4332 = vmatprep.subr.mxu0 0.0
    %v4333 = vand.u32 %v4293, 4294901760
    %4334 = vmatpush1.msra.mxu0 %v4333
    %4335 = vmatprep.subr.mxu0 0.0
    %v4336 = vand.u32 %v4292, 4294901760
    %4337 = vmatpush1.msra.mxu0 %v4336
    %4338 = vmatprep.subr.mxu0 0.0
    %v4339 = vand.u32 %v4291, 4294901760
    %4340 = vmatpush1.msra.mxu0 %v4339
    %4341 = vmatprep.subr.mxu0 0.0
    %v4342 = vand.u32 %v4290, 4294901760
    %4343 = vmatpush1.msra.mxu0 %v4342
    %4344 = vmatprep.subr.mxu0 0.0
    %4345 = vmatpush2.msra.mxu0 0.0
    %4346 = vmatprep.subr.mxu0 0.0
    %4347 = vmatpush2.msra.mxu0 0.0
    %4348 = vmatprep.subr.mxu0 0.0
    %4349 = vmatpush2.msra.mxu0 0.0
    %4350 = vmatprep.subr.mxu0 0.0
    %4351 = vmatpush2.msra.mxu0 0.0
    %4352 = vmatprep.subr.mxu0 0.0
    %4353 = vmatpush2.msra.mxu0 0.0
    %4354 = vmatprep.subr.mxu0 0.0
    %4355 = vmatpush2.msra.mxu0 0.0
    %4356 = vmatprep.subr.mxu0 0.0
    %4357 = vmatpush2.msra.mxu0 0.0
    %4358 = vmatprep.subr.mxu0 0.0
    %4359 = vmatpush2.msra.mxu0 0.0
    %4360 = vmatprep.subr.mxu0 0.0
    %4361 = vmatpush2.msra.mxu0 0.0
    %4362 = vmatprep.subr.mxu0 0.0
    %4363 = vmatpush2.msra.mxu0 0.0
    %4364 = vmatprep.subr.mxu0 0.0
    %4365 = vmatpush2.msra.mxu0 0.0
    %4366 = vmatprep.subr.mxu0 0.0
    %4367 = vmatpush2.msra.mxu0 0.0
    %4368 = vmatprep.subr.mxu0 0.0
    %4369 = vmatpush2.msra.mxu0 0.0
    %4370 = vmatprep.subr.mxu0 0.0
    %4371 = vmatpush2.msra.mxu0 0.0
    %4372 = vmatprep.subr.mxu0 0.0
    %4373 = vmatpush2.msra.mxu0 0.0
    %4374 = vmatprep.subr.mxu0 0.0
    %4375 = vmatpush2.msra.mxu0 0.0
    %4376 = vmatprep.mubr.f32.mxu0 0.0
    %v4377 = vand.u32 %v4302, 4294901760
    %v4378 = vsub.f32 %v4302, %v4377
    %v4379 = vand.u32 %v4378, 4294901760
    %v4380 = vsub.f32 %v4378, %v4379
    %v4381 = vand.u32 %v4380, 4294901760
    %4382 = vmatmul.mubr.f32.gmra.mxu0 %v4381
    %v4383 = vpop.f32.mrf.mxu0
    %v4384 = vadd.f32 %v4298, %v4383
    %v4385 = vpop.f32.mrf.mxu0
    %4386 = vdwg.mxu0
    %4387 = vmatprep.subr.mxu0 0.0
    %4388 = vmatpush1.msra.mxu0 0.0
    %4389 = vmatprep.subr.mxu0 0.0
    %4390 = vmatpush1.msra.mxu0 0.0
    %4391 = vmatprep.subr.mxu0 0.0
    %4392 = vmatpush1.msra.mxu0 0.0
    %4393 = vmatprep.subr.mxu0 0.0
    %4394 = vmatpush1.msra.mxu0 0.0
    %4395 = vmatprep.subr.mxu0 0.0
    %4396 = vmatpush1.msra.mxu0 0.0
    %4397 = vmatprep.subr.mxu0 0.0
    %4398 = vmatpush1.msra.mxu0 0.0
    %4399 = vmatprep.subr.mxu0 0.0
    %4400 = vmatpush1.msra.mxu0 0.0
    %4401 = vmatprep.subr.mxu0 0.0
    %4402 = vmatpush1.msra.mxu0 0.0
    %4403 = vmatprep.subr.mxu0 0.0
    %v4404 = vand.u32 %v4297, 4294901760
    %v4405 = vsub.f32 %v4297, %v4404
    %v4406 = vand.u32 %v4405, 4294901760
    %v4407 = vsub.f32 %v4405, %v4406
    %v4408 = vand.u32 %v4407, 4294901760
    %4409 = vmatpush1.msra.mxu0 %v4408
    %4410 = vmatprep.subr.mxu0 0.0
    %v4411 = vand.u32 %v4296, 4294901760
    %v4412 = vsub.f32 %v4296, %v4411
    %v4413 = vand.u32 %v4412, 4294901760
    %v4414 = vsub.f32 %v4412, %v4413
    %v4415 = vand.u32 %v4414, 4294901760
    %4416 = vmatpush1.msra.mxu0 %v4415
    %4417 = vmatprep.subr.mxu0 0.0
    %v4418 = vand.u32 %v4295, 4294901760
    %v4419 = vsub.f32 %v4295, %v4418
    %v4420 = vand.u32 %v4419, 4294901760
    %v4421 = vsub.f32 %v4419, %v4420
    %v4422 = vand.u32 %v4421, 4294901760
    %4423 = vmatpush1.msra.mxu0 %v4422
    %4424 = vmatprep.subr.mxu0 0.0
    %v4425 = vand.u32 %v4294, 4294901760
    %v4426 = vsub.f32 %v4294, %v4425
    %v4427 = vand.u32 %v4426, 4294901760
    %v4428 = vsub.f32 %v4426, %v4427
    %v4429 = vand.u32 %v4428, 4294901760
    %4430 = vmatpush1.msra.mxu0 %v4429
    %4431 = vmatprep.subr.mxu0 0.0
    %v4432 = vand.u32 %v4293, 4294901760
    %v4433 = vsub.f32 %v4293, %v4432
    %v4434 = vand.u32 %v4433, 4294901760
    %v4435 = vsub.f32 %v4433, %v4434
    %v4436 = vand.u32 %v4435, 4294901760
    %4437 = vmatpush1.msra.mxu0 %v4436
    %4438 = vmatprep.subr.mxu0 0.0
    %v4439 = vand.u32 %v4292, 4294901760
    %v4440 = vsub.f32 %v4292, %v4439
    %v4441 = vand.u32 %v4440, 4294901760
    %v4442 = vsub.f32 %v4440, %v4441
    %v4443 = vand.u32 %v4442, 4294901760
    %4444 = vmatpush1.msra.mxu0 %v4443
    %4445 = vmatprep.subr.mxu0 0.0
    %v4446 = vand.u32 %v4291, 4294901760
    %v4447 = vsub.f32 %v4291, %v4446
    %v4448 = vand.u32 %v4447, 4294901760
    %v4449 = vsub.f32 %v4447, %v4448
    %v4450 = vand.u32 %v4449, 4294901760
    %4451 = vmatpush1.msra.mxu0 %v4450
    %4452 = vmatprep.subr.mxu0 0.0
    %v4453 = vand.u32 %v4290, 4294901760
    %v4454 = vsub.f32 %v4290, %v4453
    %v4455 = vand.u32 %v4454, 4294901760
    %v4456 = vsub.f32 %v4454, %v4455
    %v4457 = vand.u32 %v4456, 4294901760
    %4458 = vmatpush1.msra.mxu0 %v4457
    %4459 = vmatprep.subr.mxu0 0.0
    %4460 = vmatpush2.msra.mxu0 0.0
    %4461 = vmatprep.subr.mxu0 0.0
    %4462 = vmatpush2.msra.mxu0 0.0
    %4463 = vmatprep.subr.mxu0 0.0
    %4464 = vmatpush2.msra.mxu0 0.0
    %4465 = vmatprep.subr.mxu0 0.0
    %4466 = vmatpush2.msra.mxu0 0.0
    %4467 = vmatprep.subr.mxu0 0.0
    %4468 = vmatpush2.msra.mxu0 0.0
    %4469 = vmatprep.subr.mxu0 0.0
    %4470 = vmatpush2.msra.mxu0 0.0
    %4471 = vmatprep.subr.mxu0 0.0
    %4472 = vmatpush2.msra.mxu0 0.0
    %4473 = vmatprep.subr.mxu0 0.0
    %4474 = vmatpush2.msra.mxu0 0.0
    %4475 = vmatprep.subr.mxu0 0.0
    %4476 = vmatpush2.msra.mxu0 0.0
    %4477 = vmatprep.subr.mxu0 0.0
    %4478 = vmatpush2.msra.mxu0 0.0
    %4479 = vmatprep.subr.mxu0 0.0
    %4480 = vmatpush2.msra.mxu0 0.0
    %4481 = vmatprep.subr.mxu0 0.0
    %4482 = vmatpush2.msra.mxu0 0.0
    %4483 = vmatprep.subr.mxu0 0.0
    %4484 = vmatpush2.msra.mxu0 0.0
    %4485 = vmatprep.subr.mxu0 0.0
    %4486 = vmatpush2.msra.mxu0 0.0
    %4487 = vmatprep.subr.mxu0 0.0
    %4488 = vmatpush2.msra.mxu0 0.0
    %4489 = vmatprep.subr.mxu0 0.0
    %4490 = vmatpush2.msra.mxu0 0.0
    %4491 = vmatprep.mubr.f32.mxu0 0.0
    %v4492 = vand.u32 %v4302, 4294901760
    %4493 = vmatmul.mubr.f32.gmra.mxu0 %v4492
    %v4494 = vpop.f32.mrf.mxu0
    %v4495 = vadd.f32 %v4384, %v4494
    %v4496 = vpop.f32.mrf.mxu0
    %4497 = vdwg.mxu0
    %4498 = vmatprep.subr.mxu0 0.0
    %4499 = vmatpush1.msra.mxu0 0.0
    %4500 = vmatprep.subr.mxu0 0.0
    %4501 = vmatpush1.msra.mxu0 0.0
    %4502 = vmatprep.subr.mxu0 0.0
    %4503 = vmatpush1.msra.mxu0 0.0
    %4504 = vmatprep.subr.mxu0 0.0
    %4505 = vmatpush1.msra.mxu0 0.0
    %4506 = vmatprep.subr.mxu0 0.0
    %4507 = vmatpush1.msra.mxu0 0.0
    %4508 = vmatprep.subr.mxu0 0.0
    %4509 = vmatpush1.msra.mxu0 0.0
    %4510 = vmatprep.subr.mxu0 0.0
    %4511 = vmatpush1.msra.mxu0 0.0
    %4512 = vmatprep.subr.mxu0 0.0
    %4513 = vmatpush1.msra.mxu0 0.0
    %4514 = vmatprep.subr.mxu0 0.0
    %v4515 = vand.u32 %v4297, 4294901760
    %v4516 = vsub.f32 %v4297, %v4515
    %4517 = vmatpush1.msra.mxu0 %v4516
    %4518 = vmatprep.subr.mxu0 0.0
    %v4519 = vand.u32 %v4296, 4294901760
    %v4520 = vsub.f32 %v4296, %v4519
    %4521 = vmatpush1.msra.mxu0 %v4520
    %4522 = vmatprep.subr.mxu0 0.0
    %v4523 = vand.u32 %v4295, 4294901760
    %v4524 = vsub.f32 %v4295, %v4523
    %4525 = vmatpush1.msra.mxu0 %v4524
    %4526 = vmatprep.subr.mxu0 0.0
    %v4527 = vand.u32 %v4294, 4294901760
    %v4528 = vsub.f32 %v4294, %v4527
    %4529 = vmatpush1.msra.mxu0 %v4528
    %4530 = vmatprep.subr.mxu0 0.0
    %v4531 = vand.u32 %v4293, 4294901760
    %v4532 = vsub.f32 %v4293, %v4531
    %4533 = vmatpush1.msra.mxu0 %v4532
    %4534 = vmatprep.subr.mxu0 0.0
    %v4535 = vand.u32 %v4292, 4294901760
    %v4536 = vsub.f32 %v4292, %v4535
    %4537 = vmatpush1.msra.mxu0 %v4536
    %4538 = vmatprep.subr.mxu0 0.0
    %v4539 = vand.u32 %v4291, 4294901760
    %v4540 = vsub.f32 %v4291, %v4539
    %4541 = vmatpush1.msra.mxu0 %v4540
    %4542 = vmatprep.subr.mxu0 0.0
    %v4543 = vand.u32 %v4290, 4294901760
    %v4544 = vsub.f32 %v4290, %v4543
    %4545 = vmatpush1.msra.mxu0 %v4544
    %4546 = vmatprep.subr.mxu0 0.0
    %4547 = vmatpush2.msra.mxu0 0.0
    %4548 = vmatprep.subr.mxu0 0.0
    %4549 = vmatpush2.msra.mxu0 0.0
    %4550 = vmatprep.subr.mxu0 0.0
    %4551 = vmatpush2.msra.mxu0 0.0
    %4552 = vmatprep.subr.mxu0 0.0
    %4553 = vmatpush2.msra.mxu0 0.0
    %4554 = vmatprep.subr.mxu0 0.0
    %4555 = vmatpush2.msra.mxu0 0.0
    %4556 = vmatprep.subr.mxu0 0.0
    %4557 = vmatpush2.msra.mxu0 0.0
    %4558 = vmatprep.subr.mxu0 0.0
    %4559 = vmatpush2.msra.mxu0 0.0
    %4560 = vmatprep.subr.mxu0 0.0
    %4561 = vmatpush2.msra.mxu0 0.0
    %4562 = vmatprep.subr.mxu0 0.0
    %4563 = vmatpush2.msra.mxu0 0.0
    %4564 = vmatprep.subr.mxu0 0.0
    %4565 = vmatpush2.msra.mxu0 0.0
    %4566 = vmatprep.subr.mxu0 0.0
    %4567 = vmatpush2.msra.mxu0 0.0
    %4568 = vmatprep.subr.mxu0 0.0
    %4569 = vmatpush2.msra.mxu0 0.0
    %4570 = vmatprep.subr.mxu0 0.0
    %4571 = vmatpush2.msra.mxu0 0.0
    %4572 = vmatprep.subr.mxu0 0.0
    %4573 = vmatpush2.msra.mxu0 0.0
    %4574 = vmatprep.subr.mxu0 0.0
    %4575 = vmatpush2.msra.mxu0 0.0
    %4576 = vmatprep.subr.mxu0 0.0
    %4577 = vmatpush2.msra.mxu0 0.0
    %4578 = vmatprep.mubr.f32.mxu0 0.0
    %v4579 = vand.u32 %v4302, 4294901760
    %v4580 = vsub.f32 %v4302, %v4579
    %4581 = vmatmul.mubr.f32.gmra.mxu0 %v4580
    %v4582 = vpop.f32.mrf.mxu0
    %v4583 = vadd.f32 %v4495, %v4582
    %v4584 = vpop.f32.mrf.mxu0
    %4585 = vdwg.mxu0
    %4586 = vmatprep.subr.mxu0 0.0
    %4587 = vmatpush1.msra.mxu0 0.0
    %4588 = vmatprep.subr.mxu0 0.0
    %4589 = vmatpush1.msra.mxu0 0.0
    %4590 = vmatprep.subr.mxu0 0.0
    %4591 = vmatpush1.msra.mxu0 0.0
    %4592 = vmatprep.subr.mxu0 0.0
    %4593 = vmatpush1.msra.mxu0 0.0
    %4594 = vmatprep.subr.mxu0 0.0
    %4595 = vmatpush1.msra.mxu0 0.0
    %4596 = vmatprep.subr.mxu0 0.0
    %4597 = vmatpush1.msra.mxu0 0.0
    %4598 = vmatprep.subr.mxu0 0.0
    %4599 = vmatpush1.msra.mxu0 0.0
    %4600 = vmatprep.subr.mxu0 0.0
    %4601 = vmatpush1.msra.mxu0 0.0
    %4602 = vmatprep.subr.mxu0 0.0
    %v4603 = vand.u32 %v4297, 4294901760
    %4604 = vmatpush1.msra.mxu0 %v4603
    %4605 = vmatprep.subr.mxu0 0.0
    %v4606 = vand.u32 %v4296, 4294901760
    %4607 = vmatpush1.msra.mxu0 %v4606
    %4608 = vmatprep.subr.mxu0 0.0
    %v4609 = vand.u32 %v4295, 4294901760
    %4610 = vmatpush1.msra.mxu0 %v4609
    %4611 = vmatprep.subr.mxu0 0.0
    %v4612 = vand.u32 %v4294, 4294901760
    %4613 = vmatpush1.msra.mxu0 %v4612
    %4614 = vmatprep.subr.mxu0 0.0
    %v4615 = vand.u32 %v4293, 4294901760
    %4616 = vmatpush1.msra.mxu0 %v4615
    %4617 = vmatprep.subr.mxu0 0.0
    %v4618 = vand.u32 %v4292, 4294901760
    %4619 = vmatpush1.msra.mxu0 %v4618
    %4620 = vmatprep.subr.mxu0 0.0
    %v4621 = vand.u32 %v4291, 4294901760
    %4622 = vmatpush1.msra.mxu0 %v4621
    %4623 = vmatprep.subr.mxu0 0.0
    %v4624 = vand.u32 %v4290, 4294901760
    %4625 = vmatpush1.msra.mxu0 %v4624
    %4626 = vmatprep.subr.mxu0 0.0
    %4627 = vmatpush2.msra.mxu0 0.0
    %4628 = vmatprep.subr.mxu0 0.0
    %4629 = vmatpush2.msra.mxu0 0.0
    %4630 = vmatprep.subr.mxu0 0.0
    %4631 = vmatpush2.msra.mxu0 0.0
    %4632 = vmatprep.subr.mxu0 0.0
    %4633 = vmatpush2.msra.mxu0 0.0
    %4634 = vmatprep.subr.mxu0 0.0
    %4635 = vmatpush2.msra.mxu0 0.0
    %4636 = vmatprep.subr.mxu0 0.0
    %4637 = vmatpush2.msra.mxu0 0.0
    %4638 = vmatprep.subr.mxu0 0.0
    %4639 = vmatpush2.msra.mxu0 0.0
    %4640 = vmatprep.subr.mxu0 0.0
    %4641 = vmatpush2.msra.mxu0 0.0
    %4642 = vmatprep.subr.mxu0 0.0
    %4643 = vmatpush2.msra.mxu0 0.0
    %4644 = vmatprep.subr.mxu0 0.0
    %4645 = vmatpush2.msra.mxu0 0.0
    %4646 = vmatprep.subr.mxu0 0.0
    %4647 = vmatpush2.msra.mxu0 0.0
    %4648 = vmatprep.subr.mxu0 0.0
    %4649 = vmatpush2.msra.mxu0 0.0
    %4650 = vmatprep.subr.mxu0 0.0
    %4651 = vmatpush2.msra.mxu0 0.0
    %4652 = vmatprep.subr.mxu0 0.0
    %4653 = vmatpush2.msra.mxu0 0.0
    %4654 = vmatprep.subr.mxu0 0.0
    %4655 = vmatpush2.msra.mxu0 0.0
    %4656 = vmatprep.subr.mxu0 0.0
    %4657 = vmatpush2.msra.mxu0 0.0
    %4658 = vmatprep.mubr.f32.mxu0 0.0
    %v4659 = vand.u32 %v4302, 4294901760
    %v4660 = vsub.f32 %v4302, %v4659
    %v4661 = vand.u32 %v4660, 4294901760
    %4662 = vmatmul.mubr.f32.gmra.mxu0 %v4661
    %v4663 = vpop.f32.mrf.mxu0
    %v4664 = vadd.f32 %v4583, %v4663
    %v4665 = vpop.f32.mrf.mxu0
    %4666 = vdwg.mxu0
    %4667 = vmatprep.subr.mxu0 0.0
    %4668 = vmatpush1.msra.mxu0 0.0
    %4669 = vmatprep.subr.mxu0 0.0
    %4670 = vmatpush1.msra.mxu0 0.0
    %4671 = vmatprep.subr.mxu0 0.0
    %4672 = vmatpush1.msra.mxu0 0.0
    %4673 = vmatprep.subr.mxu0 0.0
    %4674 = vmatpush1.msra.mxu0 0.0
    %4675 = vmatprep.subr.mxu0 0.0
    %4676 = vmatpush1.msra.mxu0 0.0
    %4677 = vmatprep.subr.mxu0 0.0
    %4678 = vmatpush1.msra.mxu0 0.0
    %4679 = vmatprep.subr.mxu0 0.0
    %4680 = vmatpush1.msra.mxu0 0.0
    %4681 = vmatprep.subr.mxu0 0.0
    %4682 = vmatpush1.msra.mxu0 0.0
    %4683 = vmatprep.subr.mxu0 0.0
    %v4684 = vand.u32 %v4297, 4294901760
    %v4685 = vsub.f32 %v4297, %v4684
    %v4686 = vand.u32 %v4685, 4294901760
    %4687 = vmatpush1.msra.mxu0 %v4686
    %4688 = vmatprep.subr.mxu0 0.0
    %v4689 = vand.u32 %v4296, 4294901760
    %v4690 = vsub.f32 %v4296, %v4689
    %v4691 = vand.u32 %v4690, 4294901760
    %4692 = vmatpush1.msra.mxu0 %v4691
    %4693 = vmatprep.subr.mxu0 0.0
    %v4694 = vand.u32 %v4295, 4294901760
    %v4695 = vsub.f32 %v4295, %v4694
    %v4696 = vand.u32 %v4695, 4294901760
    %4697 = vmatpush1.msra.mxu0 %v4696
    %4698 = vmatprep.subr.mxu0 0.0
    %v4699 = vand.u32 %v4294, 4294901760
    %v4700 = vsub.f32 %v4294, %v4699
    %v4701 = vand.u32 %v4700, 4294901760
    %4702 = vmatpush1.msra.mxu0 %v4701
    %4703 = vmatprep.subr.mxu0 0.0
    %v4704 = vand.u32 %v4293, 4294901760
    %v4705 = vsub.f32 %v4293, %v4704
    %v4706 = vand.u32 %v4705, 4294901760
    %4707 = vmatpush1.msra.mxu0 %v4706
    %4708 = vmatprep.subr.mxu0 0.0
    %v4709 = vand.u32 %v4292, 4294901760
    %v4710 = vsub.f32 %v4292, %v4709
    %v4711 = vand.u32 %v4710, 4294901760
    %4712 = vmatpush1.msra.mxu0 %v4711
    %4713 = vmatprep.subr.mxu0 0.0
    %v4714 = vand.u32 %v4291, 4294901760
    %v4715 = vsub.f32 %v4291, %v4714
    %v4716 = vand.u32 %v4715, 4294901760
    %4717 = vmatpush1.msra.mxu0 %v4716
    %4718 = vmatprep.subr.mxu0 0.0
    %v4719 = vand.u32 %v4290, 4294901760
    %v4720 = vsub.f32 %v4290, %v4719
    %v4721 = vand.u32 %v4720, 4294901760
    %4722 = vmatpush1.msra.mxu0 %v4721
    %4723 = vmatprep.subr.mxu0 0.0
    %4724 = vmatpush2.msra.mxu0 0.0
    %4725 = vmatprep.subr.mxu0 0.0
    %4726 = vmatpush2.msra.mxu0 0.0
    %4727 = vmatprep.subr.mxu0 0.0
    %4728 = vmatpush2.msra.mxu0 0.0
    %4729 = vmatprep.subr.mxu0 0.0
    %4730 = vmatpush2.msra.mxu0 0.0
    %4731 = vmatprep.subr.mxu0 0.0
    %4732 = vmatpush2.msra.mxu0 0.0
    %4733 = vmatprep.subr.mxu0 0.0
    %4734 = vmatpush2.msra.mxu0 0.0
    %4735 = vmatprep.subr.mxu0 0.0
    %4736 = vmatpush2.msra.mxu0 0.0
    %4737 = vmatprep.subr.mxu0 0.0
    %4738 = vmatpush2.msra.mxu0 0.0
    %4739 = vmatprep.subr.mxu0 0.0
    %4740 = vmatpush2.msra.mxu0 0.0
    %4741 = vmatprep.subr.mxu0 0.0
    %4742 = vmatpush2.msra.mxu0 0.0
    %4743 = vmatprep.subr.mxu0 0.0
    %4744 = vmatpush2.msra.mxu0 0.0
    %4745 = vmatprep.subr.mxu0 0.0
    %4746 = vmatpush2.msra.mxu0 0.0
    %4747 = vmatprep.subr.mxu0 0.0
    %4748 = vmatpush2.msra.mxu0 0.0
    %4749 = vmatprep.subr.mxu0 0.0
    %4750 = vmatpush2.msra.mxu0 0.0
    %4751 = vmatprep.subr.mxu0 0.0
    %4752 = vmatpush2.msra.mxu0 0.0
    %4753 = vmatprep.subr.mxu0 0.0
    %4754 = vmatpush2.msra.mxu0 0.0
    %4755 = vmatprep.mubr.f32.mxu0 0.0
    %v4756 = vand.u32 %v4302, 4294901760
    %4757 = vmatmul.mubr.f32.gmra.mxu0 %v4756
    %v4758 = vpop.f32.mrf.mxu0
    %v4759 = vadd.f32 %v4664, %v4758
    %v4760 = vpop.f32.mrf.mxu0
    %4761 = vdwg.mxu0
    %4762 = vmatprep.subr.mxu0 0.0
    %4763 = vmatpush1.msra.mxu0 0.0
    %4764 = vmatprep.subr.mxu0 0.0
    %4765 = vmatpush1.msra.mxu0 0.0
    %4766 = vmatprep.subr.mxu0 0.0
    %4767 = vmatpush1.msra.mxu0 0.0
    %4768 = vmatprep.subr.mxu0 0.0
    %4769 = vmatpush1.msra.mxu0 0.0
    %4770 = vmatprep.subr.mxu0 0.0
    %4771 = vmatpush1.msra.mxu0 0.0
    %4772 = vmatprep.subr.mxu0 0.0
    %4773 = vmatpush1.msra.mxu0 0.0
    %4774 = vmatprep.subr.mxu0 0.0
    %4775 = vmatpush1.msra.mxu0 0.0
    %4776 = vmatprep.subr.mxu0 0.0
    %4777 = vmatpush1.msra.mxu0 0.0
    %4778 = vmatprep.subr.mxu0 0.0
    %v4779 = vand.u32 %v4297, 4294901760
    %4780 = vmatpush1.msra.mxu0 %v4779
    %4781 = vmatprep.subr.mxu0 0.0
    %v4782 = vand.u32 %v4296, 4294901760
    %4783 = vmatpush1.msra.mxu0 %v4782
    %4784 = vmatprep.subr.mxu0 0.0
    %v4785 = vand.u32 %v4295, 4294901760
    %4786 = vmatpush1.msra.mxu0 %v4785
    %4787 = vmatprep.subr.mxu0 0.0
    %v4788 = vand.u32 %v4294, 4294901760
    %4789 = vmatpush1.msra.mxu0 %v4788
    %4790 = vmatprep.subr.mxu0 0.0
    %v4791 = vand.u32 %v4293, 4294901760
    %4792 = vmatpush1.msra.mxu0 %v4791
    %4793 = vmatprep.subr.mxu0 0.0
    %v4794 = vand.u32 %v4292, 4294901760
    %4795 = vmatpush1.msra.mxu0 %v4794
    %4796 = vmatprep.subr.mxu0 0.0
    %v4797 = vand.u32 %v4291, 4294901760
    %4798 = vmatpush1.msra.mxu0 %v4797
    %4799 = vmatprep.subr.mxu0 0.0
    %v4800 = vand.u32 %v4290, 4294901760
    %4801 = vmatpush1.msra.mxu0 %v4800
    %4802 = vmatprep.subr.mxu0 0.0
    %4803 = vmatpush2.msra.mxu0 0.0
    %4804 = vmatprep.subr.mxu0 0.0
    %4805 = vmatpush2.msra.mxu0 0.0
    %4806 = vmatprep.subr.mxu0 0.0
    %4807 = vmatpush2.msra.mxu0 0.0
    %4808 = vmatprep.subr.mxu0 0.0
    %4809 = vmatpush2.msra.mxu0 0.0
    %4810 = vmatprep.subr.mxu0 0.0
    %4811 = vmatpush2.msra.mxu0 0.0
    %4812 = vmatprep.subr.mxu0 0.0
    %4813 = vmatpush2.msra.mxu0 0.0
    %4814 = vmatprep.subr.mxu0 0.0
    %4815 = vmatpush2.msra.mxu0 0.0
    %4816 = vmatprep.subr.mxu0 0.0
    %4817 = vmatpush2.msra.mxu0 0.0
    %4818 = vmatprep.subr.mxu0 0.0
    %4819 = vmatpush2.msra.mxu0 0.0
    %4820 = vmatprep.subr.mxu0 0.0
    %4821 = vmatpush2.msra.mxu0 0.0
    %4822 = vmatprep.subr.mxu0 0.0
    %4823 = vmatpush2.msra.mxu0 0.0
    %4824 = vmatprep.subr.mxu0 0.0
    %4825 = vmatpush2.msra.mxu0 0.0
    %4826 = vmatprep.subr.mxu0 0.0
    %4827 = vmatpush2.msra.mxu0 0.0
    %4828 = vmatprep.subr.mxu0 0.0
    %4829 = vmatpush2.msra.mxu0 0.0
    %4830 = vmatprep.subr.mxu0 0.0
    %4831 = vmatpush2.msra.mxu0 0.0
    %4832 = vmatprep.subr.mxu0 0.0
    %4833 = vmatpush2.msra.mxu0 0.0
    %4834 = vmatprep.mubr.f32.mxu0 0.0
    %v4835 = vand.u32 %v4302, 4294901760
    %4836 = vmatmul.mubr.f32.gmra.mxu0 %v4835
    %v4837 = vpop.f32.mrf.mxu0
    %v4838 = vadd.f32 %v4759, %v4837
    %v4839 = vpop.f32.mrf.mxu0
    %4840 = vdwg.mxu0
    %v4841 = vxor.u32 %v4838, 2147483648
    %v4842 = vmul.f32 %v4841, 1.442695
    %v4843 = vpow.pop %v4842
    %v4844 = vadd.f32 %v4843, 1.0
    %v4845 = vrcp.pop %v4844
    %v4846 = vmul.f32 1.0, %v4845
    %vm4847 = vcmask 58368
    %4848 = vst.msk [vmem:[#allocation7] sm:$0x3] %vm4847, %v4846
    // Predicated region
    $region26: #{bilstm_forward.1} parent=1 // pred_check
      _
    $region27: #{bilstm_forward.1} parent=1 // pred_check_branch
      %4850 = sbr.rel (0) target = $region29
    $region28: #{bilstm_forward.1} parent=1 // pred_region
      %s4852 = ssub.s32 32, 32
      %4853 = vsyncadd [#allocation4], %s4852
      %s4855 = sshll.u32 [#allocation7], 4
      %s4856 = int_to_ptr.vmem [resolvable:$true] %s4855
      %4858 = dma.vmem_to_hbm [thread:$0]  %s4856, 32, %s4, [#allocation4]
    $region29: #{bilstm_forward.1} parent=1 // pred_fallthru
      _
    // Predicated region
    $region30: #{bilstm_forward.1} parent=1 // pred_check
      _
    $region31: #{bilstm_forward.1} parent=1 // pred_check_branch
      %4860 = sbr.rel (0) target = $region33
    $region32: #{bilstm_forward.1} parent=1 // pred_region
      %4861 = dma.done [#allocation4], 32
    $region33: #{bilstm_forward.1} parent=1 // pred_fallthru
      _
    %4862 = vsyncpa [#allocation3], 1
    %4863 = vsyncpa [#allocation6], 1
    %4864 = vsyncpa [#allocation4], 1

</llo_original>
